<compile_context>
chip_gen: v7x
topology: tpu7x:2x2x1
jax: 0.10.0
libtpu: 0.0.40
codegen_flags: <defaults>
</compile_context>

<pallas_src>
import math

import jax
import jax.numpy as jnp
from jax import lax
from jax.experimental import pallas as pl
from jax.experimental.pallas import tpu as pltpu

# ---------------- configuration (small, consistent with the module) ----------------
B = 2          # batch
S = 8          # decoder sequence length
SG = 8         # graph encoder sequence length
ST = 8         # text encoder sequence length
H = 32         # hidden_size
F = 64         # ffn_inner_hidden_size
N_HEADS = 4
DH = H // N_HEADS
N_LAYERS = 2
LN_EPS = 1e-5

# bf16 MXU operands (f32 accumulation) on every TPU generation; LayerNorm / softmax /
# residual math stays f32.
MXU_DTYPE = jnp.bfloat16

# Row indices inside the packed small-parameter array (L, N_VEC_ROWS, 128).
ROW_BQKV, ROW_BQC, ROW_BKVG, ROW_BKVT = 0, 1, 2, 3
ROW_BO_S, ROW_FUSB, ROW_B1, ROW_B2 = 4, 5, 6, 7
ROW_LNG1, ROW_LNB1, ROW_LNG2, ROW_LNB2, ROW_LNG3, ROW_LNB3 = 8, 9, 10, 11, 12, 13
N_VEC_ROWS = 14


# ---------------------------- in-kernel helpers ----------------------------
def _layer_norm(z, gamma, beta):
    # var = E[z^2] - mu^2: the two reductions are independent (overlap on XLU).
    mu = jnp.mean(z, axis=-1, keepdims=True)
    ms = jnp.mean(z * z, axis=-1, keepdims=True)
    var = ms - mu * mu
    return (z - mu) * lax.rsqrt(var + LN_EPS) * gamma + beta


def _stack_heads(a, seq):
    """(B*seq, H) -> (B*N_HEADS*seq, DH), row order (b, h, s)."""
    blocks = [a[b * seq:(b + 1) * seq, h * DH:(h + 1) * DH]
              for b in range(B) for h in range(N_HEADS)]
    return jnp.concatenate(blocks, axis=0)


def _unstack_heads(c, seq):
    """(B*N_HEADS*seq, DH) -> (B*seq, H): concat heads back onto the lane axis."""
    rows = []
    for b in range(B):
        heads = [c[(b * N_HEADS + h) * seq:(b * N_HEADS + h + 1) * seq, :]
                 for h in range(N_HEADS)]
        rows.append(jnp.concatenate(heads, axis=1))
    return jnp.concatenate(rows, axis=0)


# ---------------------------- fused decoder kernel ----------------------------
def bass_decoder_kernel(
    x_ref, g_ref, t_ref,                      # (B*S,H) f32 / (B*SG,H) bf16 / (B*ST,H) bf16
    sm_ref, gm_ref, tm_ref,                   # head/batch block-diag additive masks, f32
    wqkv_ref, wqc_ref, wkvg_ref, wkvt_ref,    # (L,H,3H) (L,H,2H) (L,H,2H) (L,H,2H)  bf16
    wos_ref, wogf_ref, wotf_ref,              # (L,H,H) x3 bf16 (graph/text folded with proj)
    w1_ref, w2_ref,                           # (L,H,F), (L,F,H) bf16
    vecs_ref,                                 # (L, N_VEC_ROWS, 128) f32 packed biases / LN
    out_ref,                                  # (B*S, H) f32
):
    f32 = jnp.float32
    cdt = wqkv_ref.dtype                      # MXU operand dtype (bf16)
    scale = 1.0 / math.sqrt(DH)

    x = x_ref[...].astype(f32)                # (B*S, H)
    g = g_ref[...]                            # (B*SG, H), already MXU dtype
    t = t_ref[...]                            # (B*ST, H)
    sm = sm_ref[...]
    gm = gm_ref[...]
    tm = tm_ref[...]

    def attend(q, k, v, mask_add):
        # q: (B*Sq, H) f32; k, v: (B*Sk, H) f32; mask_add: (B*NH*Sq, B*NH*Sk) f32.
        sq = q.shape[0] // B
        sk = k.shape[0] // B
        qs = _stack_heads(q, sq).astype(cdt)          # (B*NH*Sq, DH)
        ks = _stack_heads(k, sk).astype(cdt)          # (B*NH*Sk, DH)
        vs = _stack_heads(v, sk).astype(cdt)
        s = lax.dot_general(qs, ks, (((1,), (1,)), ((), ())),
                            preferred_element_type=f32) * scale + mask_add
        s = s - jnp.max(s, axis=-1, keepdims=True)
        p = jnp.exp(s)
        p = p * pl.reciprocal(jnp.sum(p, axis=-1, keepdims=True), approx=True)
        ctx = jnp.dot(p.astype(cdt), vs, preferred_element_type=f32)   # (B*NH*Sq, DH)
        return _unstack_heads(ctx, sq)                # (B*Sq, H) f32

    h_act = x                                 # carried activation, f32
    n_layers = wqkv_ref.shape[0]
    for l in range(n_layers):                 # static unroll over fused layers
        vl = vecs_ref[l]                      # (N_VEC_ROWS, 128) f32

        # ---- 1) causal self attention + residual block 1 ----
        qkv = (jnp.dot(h_act.astype(cdt), wqkv_ref[l], preferred_element_type=f32)
               + vl[ROW_BQKV, :3 * H])                                   # (B*S, 3H)
        ctx_s = attend(qkv[:, 0:H], qkv[:, H:2 * H], qkv[:, 2 * H:3 * H], sm)
        sa = (jnp.dot(ctx_s.astype(cdt), wos_ref[l], preferred_element_type=f32)
              + vl[ROW_BO_S, :H])
        inter = _layer_norm(h_act + sa, vl[ROW_LNG1, :H], vl[ROW_LNB1, :H])

        # ---- 2) graph / text cross attention (fused Q proj, fused K|V projs) ----
        q_gt = (jnp.dot(inter.astype(cdt), wqc_ref[l], preferred_element_type=f32)
                + vl[ROW_BQC, :2 * H])                                   # (B*S, 2H)
        kv_g = (jnp.dot(g, wkvg_ref[l], preferred_element_type=f32)
                + vl[ROW_BKVG, :2 * H])                                  # (B*SG, 2H)
        kv_t = (jnp.dot(t, wkvt_ref[l], preferred_element_type=f32)
                + vl[ROW_BKVT, :2 * H])                                  # (B*ST, 2H)
        ctx_g = attend(q_gt[:, 0:H], kv_g[:, 0:H], kv_g[:, H:2 * H], gm)
        ctx_t = attend(q_gt[:, H:2 * H], kv_t[:, 0:H], kv_t[:, H:2 * H], tm)

        # ---- 3) fusion projection (graph/text out-proj pre-folded) + residual 2 ----
        fusion = (jnp.dot(ctx_g.astype(cdt), wogf_ref[l], preferred_element_type=f32)
                  + jnp.dot(ctx_t.astype(cdt), wotf_ref[l], preferred_element_type=f32)
                  + vl[ROW_FUSB, :H])
        inter2 = _layer_norm(inter + fusion, vl[ROW_LNG2, :H], vl[ROW_LNB2, :H])

        # ---- 4) feed-forward network + residual block 3 ----
        h1 = jnp.maximum(
            jnp.dot(inter2.astype(cdt), w1_ref[l], preferred_element_type=f32)
            + vl[ROW_B1, :F], 0.0)
        ffn = (jnp.dot(h1.astype(cdt), w2_ref[l], preferred_element_type=f32)
               + vl[ROW_B2, :H])
        h_act = _layer_norm(inter2 + ffn, vl[ROW_LNG3, :H], vl[ROW_LNB3, :H])

    out_ref[...] = h_act.astype(out_ref.dtype)


# ---------------------------- wrapper ----------------------------
def _build_big_mask(mask):
    """(B, Sq, Sk) keep-mask (1=attend) -> additive (B*NH*Sq, B*NH*Sk) mask that also
    blocks cross-batch and cross-head entries of the head/batch-stacked scores."""
    b_, sq, sk = mask.shape
    eye_b = jnp.eye(b_, dtype=jnp.float32)
    eye_h = jnp.eye(N_HEADS, dtype=jnp.float32)
    keep = (eye_b[:, None, None, :, None, None]
            * eye_h[None, :, None, None, :, None]
            * mask.astype(jnp.float32)[:, None, :, None, None, :])
    keep = keep.reshape(b_ * N_HEADS * sq, b_ * N_HEADS * sk)
    return (keep - 1.0) * jnp.float32(1e9)


def prepare_params(p, mxu_dtype=MXU_DTYPE):
    """One-time parameter prep: bf16 weight pre-cast, output-proj/fusion folding, and
    packing of the small bias / LayerNorm vectors into one (L, 14, 128) f32 array."""
    wo_s, wo_g, wo_t = p["wo"][:, 0], p["wo"][:, 1], p["wo"][:, 2]
    # Fold graph/text attention output projections into the fusion projection.
    wog_f = jnp.einsum("lij,ljk->lik", wo_g, p["projw_g"])
    wot_f = jnp.einsum("lij,ljk->lik", wo_t, p["projw_t"])
    fus_b = (jnp.einsum("lj,ljk->lk", p["bo"][:, 1], p["projw_g"])
             + jnp.einsum("lj,ljk->lk", p["bo"][:, 2], p["projw_t"])
             + p["projb"])

    def pad128(v):  # (L, n) -> (L, 128)
        return jnp.pad(v.astype(jnp.float32), ((0, 0), (0, 128 - v.shape[-1])))

    vec_rows = [
        p["bqkv_s"], p["bq_c"], p["bkv_g"], p["bkv_t"],
        p["bo"][:, 0], fus_b, p["b1"], p["b2"],
        p["lng"][:, 0], p["lnb"][:, 0],
        p["lng"][:, 1], p["lnb"][:, 1],
        p["lng"][:, 2], p["lnb"][:, 2],
    ]
    vecs = jnp.stack([pad128(v) for v in vec_rows], axis=1)   # (L, 14, 128)

    cast = lambda w: w.astype(mxu_dtype)
    return {
        "wqkv_s": cast(p["wqkv_s"]), "wq_c": cast(p["wq_c"]),
        "wkv_g": cast(p["wkv_g"]), "wkv_t": cast(p["wkv_t"]),
        "wo_s": cast(wo_s), "wog_f": cast(wog_f), "wot_f": cast(wot_f),
        "w1": cast(p["w1"]), "w2": cast(p["w2"]),
        "vecs": vecs,
    }


def bass_decoder(x, graph_out, text_out, self_mask, graph_mask, text_mask, prep):
    """Full N-layer BassDecoder forward as one grid-less pallas_call (batch folded)."""
    bsz, s_, h_ = x.shape
    sg_ = graph_out.shape[1]
    st_ = text_out.shape[1]
    mxu_dtype = prep["wqkv_s"].dtype

    x2 = x.reshape(bsz * s_, h_)
    g2 = graph_out.reshape(bsz * sg_, h_).astype(mxu_dtype)   # only ever an MXU operand
    t2 = text_out.reshape(bsz * st_, h_).astype(mxu_dtype)

    sm_big = _build_big_mask(self_mask)
    gm_big = _build_big_mask(graph_mask)
    tm_big = _build_big_mask(text_mask)

    inputs = [x2, g2, t2, sm_big, gm_big, tm_big,
              prep["wqkv_s"], prep["wq_c"], prep["wkv_g"], prep["wkv_t"],
              prep["wo_s"], prep["wog_f"], prep["wot_f"],
              prep["w1"], prep["w2"], prep["vecs"]]

    out2 = pl.pallas_call(
        bass_decoder_kernel,
        out_shape=jax.ShapeDtypeStruct((bsz * s_, h_), x.dtype),
        in_specs=[pl.BlockSpec(memory_space=pltpu.MemorySpace.VMEM)] * len(inputs),
        out_specs=pl.BlockSpec(memory_space=pltpu.MemorySpace.VMEM),
    )(*inputs)
    return out2.reshape(bsz, s_, h_)


# ---------------------------- deterministic parameter init ----------------------------
def init_params(key):
    """Module-like parameterization; all layers stacked on a leading N_LAYERS axis."""
    ks = jax.random.split(key, 9)
    sc = 0.05
    L = N_LAYERS
    return {
        "wqkv_s": jax.random.normal(ks[0], (L, H, 3 * H), jnp.float32) * sc,
        "bqkv_s": jnp.zeros((L, 3 * H), jnp.float32),
        "wq_c":   jax.random.normal(ks[1], (L, H, 2 * H), jnp.float32) * sc,
        "bq_c":   jnp.zeros((L, 2 * H), jnp.float32),
        "wkv_g":  jax.random.normal(ks[2], (L, H, 2 * H), jnp.float32) * sc,
        "bkv_g":  jnp.zeros((L, 2 * H), jnp.float32),
        "wkv_t":  jax.random.normal(ks[3], (L, H, 2 * H), jnp.float32) * sc,
        "bkv_t":  jnp.zeros((L, 2 * H), jnp.float32),
        "wo":     jax.random.normal(ks[4], (L, 3, H, H), jnp.float32) * sc,
        "bo":     jnp.zeros((L, 3, H), jnp.float32),
        "projw_g": jax.random.normal(ks[5], (L, H, H), jnp.float32) * sc,
        "projw_t": jax.random.normal(ks[6], (L, H, H), jnp.float32) * sc,
        "projb":  jnp.zeros((L, H), jnp.float32),
        "w1":     jax.random.normal(ks[7], (L, H, F), jnp.float32) * sc,
        "b1":     jnp.zeros((L, F), jnp.float32),
        "w2":     jax.random.normal(ks[8], (L, F, H), jnp.float32) * sc,
        "b2":     jnp.zeros((L, H), jnp.float32),
        "lng":    jnp.ones((L, 3, H), jnp.float32),
        "lnb":    jnp.zeros((L, 3, H), jnp.float32),
    }


if __name__ == "__main__":
    key = jax.random.PRNGKey(0)
    k_x, k_g, k_t, k_p = jax.random.split(key, 4)

    x = jax.random.normal(k_x, (B, S, H), jnp.float32)
    graph_out = jax.random.normal(k_g, (B, SG, H), jnp.float32)
    text_out = jax.random.normal(k_t, (B, ST, H), jnp.float32)

    # causal self-attention mask (1 = keep), full-visibility encoder masks
    self_mask = jnp.broadcast_to(jnp.tril(jnp.ones((S, S), jnp.float32)), (B, S, S))
    graph_mask = jnp.ones((B, S, SG), jnp.float32)
    text_mask = jnp.ones((B, S, ST), jnp.float32)

    params = init_params(k_p)
    prepared = prepare_params(params)

    out = bass_decoder(x, graph_out, text_out, self_mask, graph_mask, text_mask,
                       prepared)
    jax.block_until_ready(out)
    assert out.shape == (B, S, H)
    assert bool(jnp.all(jnp.isfinite(out)))
    print("KERNEL_OK")
</pallas_src>

<mosaic_0001>
module attributes {stable_mosaic.version = 11 : i64} {
  func.func @bass_decoder_kernel(%arg0: memref<16x32xf32, #tpu.memory_space<vmem>>, %arg1: memref<16x32xbf16, #tpu.memory_space<vmem>>, %arg2: memref<16x32xbf16, #tpu.memory_space<vmem>>, %arg3: memref<64x64xf32, #tpu.memory_space<vmem>>, %arg4: memref<64x64xf32, #tpu.memory_space<vmem>>, %arg5: memref<64x64xf32, #tpu.memory_space<vmem>>, %arg6: memref<2x32x96xbf16, #tpu.memory_space<vmem>>, %arg7: memref<2x32x64xbf16, #tpu.memory_space<vmem>>, %arg8: memref<2x32x64xbf16, #tpu.memory_space<vmem>>, %arg9: memref<2x32x64xbf16, #tpu.memory_space<vmem>>, %arg10: memref<2x32x32xbf16, #tpu.memory_space<vmem>>, %arg11: memref<2x32x32xbf16, #tpu.memory_space<vmem>>, %arg12: memref<2x32x32xbf16, #tpu.memory_space<vmem>>, %arg13: memref<2x32x64xbf16, #tpu.memory_space<vmem>>, %arg14: memref<2x64x32xbf16, #tpu.memory_space<vmem>>, %arg15: memref<2x14x128xf32, #tpu.memory_space<vmem>>, %arg16: memref<16x32xf32, #tpu.memory_space<vmem>>) attributes {dimension_semantics = [], scalar_prefetch = 0 : i64, scratch_operands = 0 : i64, tpu.core_type = #tpu.core_type<tc>} {
    %c0 = arith.constant 0 : index
    %c0_0 = arith.constant 0 : index
    %0 = vector.load %arg0[%c0, %c0_0] : memref<16x32xf32, #tpu.memory_space<vmem>>, vector<16x32xf32>
    %c0_1 = arith.constant 0 : index
    %c0_2 = arith.constant 0 : index
    %1 = vector.load %arg1[%c0_1, %c0_2] : memref<16x32xbf16, #tpu.memory_space<vmem>>, vector<16x32xbf16>
    %c0_3 = arith.constant 0 : index
    %c0_4 = arith.constant 0 : index
    %2 = vector.load %arg2[%c0_3, %c0_4] : memref<16x32xbf16, #tpu.memory_space<vmem>>, vector<16x32xbf16>
    %c0_5 = arith.constant 0 : index
    %c0_6 = arith.constant 0 : index
    %3 = vector.load %arg3[%c0_5, %c0_6] : memref<64x64xf32, #tpu.memory_space<vmem>>, vector<64x64xf32>
    %c0_7 = arith.constant 0 : index
    %c0_8 = arith.constant 0 : index
    %4 = vector.load %arg4[%c0_7, %c0_8] : memref<64x64xf32, #tpu.memory_space<vmem>>, vector<64x64xf32>
    %c0_9 = arith.constant 0 : index
    %c0_10 = arith.constant 0 : index
    %5 = vector.load %arg5[%c0_9, %c0_10] : memref<64x64xf32, #tpu.memory_space<vmem>>, vector<64x64xf32>
    %c0_11 = arith.constant 0 : index
    %c0_12 = arith.constant 0 : index
    %c0_13 = arith.constant 0 : index
    %6 = vector.load %arg15[%c0_11, %c0_12, %c0_13] : memref<2x14x128xf32, #tpu.memory_space<vmem>>, vector<1x14x128xf32>
    %7 = vector.shape_cast %6 : vector<1x14x128xf32> to vector<14x128xf32>
    %8 = arith.truncf %0 : vector<16x32xf32> to vector<16x32xbf16>
    %c0_14 = arith.constant 0 : index
    %c0_15 = arith.constant 0 : index
    %c0_16 = arith.constant 0 : index
    %9 = vector.load %arg6[%c0_14, %c0_15, %c0_16] : memref<2x32x96xbf16, #tpu.memory_space<vmem>>, vector<1x32x96xbf16>
    %10 = vector.shape_cast %9 : vector<1x32x96xbf16> to vector<32x96xbf16>
    %cst = arith.constant dense<0.000000e+00> : vector<16x96xf32>
    %11 = tpu.matmul %8, %10, %cst {dimension_numbers = #tpu.dot_dimension_numbers<[1], [0], [0], [1], [0, 0, 1, 1], [], []>} : vector<16x32xbf16>, vector<32x96xbf16>, vector<16x96xf32> -> vector<16x96xf32>
    %12 = vector.extract_strided_slice %7 {offsets = [0, 0], sizes = [1, 96], strides = [1, 1]} : vector<14x128xf32> to vector<1x96xf32>
    %13 = vector.shape_cast %12 : vector<1x96xf32> to vector<96xf32>
    %14 = vector.shape_cast %13 : vector<96xf32> to vector<1x96xf32>
    %15 = vector.broadcast %14 : vector<1x96xf32> to vector<16x96xf32>
    %16 = arith.addf %11, %15 : vector<16x96xf32>
    %17 = vector.extract_strided_slice %16 {offsets = [0, 0], sizes = [16, 32], strides = [1, 1]} : vector<16x96xf32> to vector<16x32xf32>
    %18 = vector.extract_strided_slice %16 {offsets = [0, 32], sizes = [16, 32], strides = [1, 1]} : vector<16x96xf32> to vector<16x32xf32>
    %19 = vector.extract_strided_slice %16 {offsets = [0, 64], sizes = [16, 32], strides = [1, 1]} : vector<16x96xf32> to vector<16x32xf32>
    %20 = vector.extract_strided_slice %17 {offsets = [0, 0], sizes = [8, 8], strides = [1, 1]} : vector<16x32xf32> to vector<8x8xf32>
    %21 = vector.extract_strided_slice %17 {offsets = [0, 8], sizes = [8, 8], strides = [1, 1]} : vector<16x32xf32> to vector<8x8xf32>
    %22 = vector.extract_strided_slice %17 {offsets = [0, 16], sizes = [8, 8], strides = [1, 1]} : vector<16x32xf32> to vector<8x8xf32>
    %23 = vector.extract_strided_slice %17 {offsets = [0, 24], sizes = [8, 8], strides = [1, 1]} : vector<16x32xf32> to vector<8x8xf32>
    %24 = vector.extract_strided_slice %17 {offsets = [8, 0], sizes = [8, 8], strides = [1, 1]} : vector<16x32xf32> to vector<8x8xf32>
    %25 = vector.extract_strided_slice %17 {offsets = [8, 8], sizes = [8, 8], strides = [1, 1]} : vector<16x32xf32> to vector<8x8xf32>
    %26 = vector.extract_strided_slice %17 {offsets = [8, 16], sizes = [8, 8], strides = [1, 1]} : vector<16x32xf32> to vector<8x8xf32>
    %27 = vector.extract_strided_slice %17 {offsets = [8, 24], sizes = [8, 8], strides = [1, 1]} : vector<16x32xf32> to vector<8x8xf32>
    %28 = tpu.concatenate %20, %21, %22, %23, %24, %25, %26, %27 in 0 : vector<8x8xf32>, vector<8x8xf32>, vector<8x8xf32>, vector<8x8xf32>, vector<8x8xf32>, vector<8x8xf32>, vector<8x8xf32>, vector<8x8xf32> -> vector<64x8xf32>
    %29 = arith.truncf %28 : vector<64x8xf32> to vector<64x8xbf16>
    %30 = vector.extract_strided_slice %18 {offsets = [0, 0], sizes = [8, 8], strides = [1, 1]} : vector<16x32xf32> to vector<8x8xf32>
    %31 = vector.extract_strided_slice %18 {offsets = [0, 8], sizes = [8, 8], strides = [1, 1]} : vector<16x32xf32> to vector<8x8xf32>
    %32 = vector.extract_strided_slice %18 {offsets = [0, 16], sizes = [8, 8], strides = [1, 1]} : vector<16x32xf32> to vector<8x8xf32>
    %33 = vector.extract_strided_slice %18 {offsets = [0, 24], sizes = [8, 8], strides = [1, 1]} : vector<16x32xf32> to vector<8x8xf32>
    %34 = vector.extract_strided_slice %18 {offsets = [8, 0], sizes = [8, 8], strides = [1, 1]} : vector<16x32xf32> to vector<8x8xf32>
    %35 = vector.extract_strided_slice %18 {offsets = [8, 8], sizes = [8, 8], strides = [1, 1]} : vector<16x32xf32> to vector<8x8xf32>
    %36 = vector.extract_strided_slice %18 {offsets = [8, 16], sizes = [8, 8], strides = [1, 1]} : vector<16x32xf32> to vector<8x8xf32>
    %37 = vector.extract_strided_slice %18 {offsets = [8, 24], sizes = [8, 8], strides = [1, 1]} : vector<16x32xf32> to vector<8x8xf32>
    %38 = tpu.concatenate %30, %31, %32, %33, %34, %35, %36, %37 in 0 : vector<8x8xf32>, vector<8x8xf32>, vector<8x8xf32>, vector<8x8xf32>, vector<8x8xf32>, vector<8x8xf32>, vector<8x8xf32>, vector<8x8xf32> -> vector<64x8xf32>
    %39 = arith.truncf %38 : vector<64x8xf32> to vector<64x8xbf16>
    %40 = vector.extract_strided_slice %19 {offsets = [0, 0], sizes = [8, 8], strides = [1, 1]} : vector<16x32xf32> to vector<8x8xf32>
    %41 = vector.extract_strided_slice %19 {offsets = [0, 8], sizes = [8, 8], strides = [1, 1]} : vector<16x32xf32> to vector<8x8xf32>
    %42 = vector.extract_strided_slice %19 {offsets = [0, 16], sizes = [8, 8], strides = [1, 1]} : vector<16x32xf32> to vector<8x8xf32>
    %43 = vector.extract_strided_slice %19 {offsets = [0, 24], sizes = [8, 8], strides = [1, 1]} : vector<16x32xf32> to vector<8x8xf32>
    %44 = vector.extract_strided_slice %19 {offsets = [8, 0], sizes = [8, 8], strides = [1, 1]} : vector<16x32xf32> to vector<8x8xf32>
    %45 = vector.extract_strided_slice %19 {offsets = [8, 8], sizes = [8, 8], strides = [1, 1]} : vector<16x32xf32> to vector<8x8xf32>
    %46 = vector.extract_strided_slice %19 {offsets = [8, 16], sizes = [8, 8], strides = [1, 1]} : vector<16x32xf32> to vector<8x8xf32>
    %47 = vector.extract_strided_slice %19 {offsets = [8, 24], sizes = [8, 8], strides = [1, 1]} : vector<16x32xf32> to vector<8x8xf32>
    %48 = tpu.concatenate %40, %41, %42, %43, %44, %45, %46, %47 in 0 : vector<8x8xf32>, vector<8x8xf32>, vector<8x8xf32>, vector<8x8xf32>, vector<8x8xf32>, vector<8x8xf32>, vector<8x8xf32>, vector<8x8xf32> -> vector<64x8xf32>
    %49 = arith.truncf %48 : vector<64x8xf32> to vector<64x8xbf16>
    %cst_17 = arith.constant dense<0.000000e+00> : vector<64x64xf32>
    %50 = tpu.matmul %29, %39, %cst_17 {dimension_numbers = #tpu.dot_dimension_numbers<[1], [1], [0], [0], [0, 0, 1, 0], [], []>} : vector<64x8xbf16>, vector<64x8xbf16>, vector<64x64xf32> -> vector<64x64xf32>
    %cst_18 = arith.constant 0.353553385 : f32
    %51 = vector.broadcast %cst_18 : f32 to vector<64x64xf32>
    %52 = arith.mulf %50, %51 : vector<64x64xf32>
    %53 = arith.addf %52, %3 : vector<64x64xf32>
    %cst_19 = arith.constant dense<0xFF800000> : vector<64xf32>
    %54 = vector.multi_reduction <maximumf>, %53, %cst_19 [1] : vector<64x64xf32> to vector<64xf32>
    %55 = vector.shape_cast %54 : vector<64xf32> to vector<64x1xf32>
    %56 = vector.broadcast %55 : vector<64x1xf32> to vector<64x64xf32>
    %57 = arith.subf %53, %56 : vector<64x64xf32>
    %58 = math.exp %57 : vector<64x64xf32>
    %cst_20 = arith.constant dense<0.000000e+00> : vector<64xf32>
    %59 = vector.multi_reduction <add>, %58, %cst_20 [1] : vector<64x64xf32> to vector<64xf32>
    %60 = vector.shape_cast %59 : vector<64xf32> to vector<64x1xf32>
    %61 = tpu.reciprocal %60 {approx = true} : vector<64x1xf32> -> vector<64x1xf32>
    %62 = vector.broadcast %61 : vector<64x1xf32> to vector<64x64xf32>
    %63 = arith.mulf %58, %62 : vector<64x64xf32>
    %64 = arith.truncf %63 : vector<64x64xf32> to vector<64x64xbf16>
    %cst_21 = arith.constant dense<0.000000e+00> : vector<64x8xf32>
    %65 = tpu.matmul %64, %49, %cst_21 {dimension_numbers = #tpu.dot_dimension_numbers<[1], [0], [0], [1], [0, 0, 1, 1], [], []>} : vector<64x64xbf16>, vector<64x8xbf16>, vector<64x8xf32> -> vector<64x8xf32>
    %66 = vector.extract_strided_slice %65 {offsets = [0, 0], sizes = [8, 8], strides = [1, 1]} : vector<64x8xf32> to vector<8x8xf32>
    %67 = vector.extract_strided_slice %65 {offsets = [8, 0], sizes = [8, 8], strides = [1, 1]} : vector<64x8xf32> to vector<8x8xf32>
    %68 = vector.extract_strided_slice %65 {offsets = [16, 0], sizes = [8, 8], strides = [1, 1]} : vector<64x8xf32> to vector<8x8xf32>
    %69 = vector.extract_strided_slice %65 {offsets = [24, 0], sizes = [8, 8], strides = [1, 1]} : vector<64x8xf32> to vector<8x8xf32>
    %70 = tpu.concatenate %66, %67, %68, %69 in 1 : vector<8x8xf32>, vector<8x8xf32>, vector<8x8xf32>, vector<8x8xf32> -> vector<8x32xf32>
    %71 = vector.extract_strided_slice %65 {offsets = [32, 0], sizes = [8, 8], strides = [1, 1]} : vector<64x8xf32> to vector<8x8xf32>
    %72 = vector.extract_strided_slice %65 {offsets = [40, 0], sizes = [8, 8], strides = [1, 1]} : vector<64x8xf32> to vector<8x8xf32>
    %73 = vector.extract_strided_slice %65 {offsets = [48, 0], sizes = [8, 8], strides = [1, 1]} : vector<64x8xf32> to vector<8x8xf32>
    %74 = vector.extract_strided_slice %65 {offsets = [56, 0], sizes = [8, 8], strides = [1, 1]} : vector<64x8xf32> to vector<8x8xf32>
    %75 = tpu.concatenate %71, %72, %73, %74 in 1 : vector<8x8xf32>, vector<8x8xf32>, vector<8x8xf32>, vector<8x8xf32> -> vector<8x32xf32>
    %76 = tpu.concatenate %70, %75 in 0 : vector<8x32xf32>, vector<8x32xf32> -> vector<16x32xf32>
    %77 = arith.truncf %76 : vector<16x32xf32> to vector<16x32xbf16>
    %c0_22 = arith.constant 0 : index
    %c0_23 = arith.constant 0 : index
    %c0_24 = arith.constant 0 : index
    %78 = vector.load %arg10[%c0_22, %c0_23, %c0_24] : memref<2x32x32xbf16, #tpu.memory_space<vmem>>, vector<1x32x32xbf16>
    %79 = vector.shape_cast %78 : vector<1x32x32xbf16> to vector<32x32xbf16>
    %cst_25 = arith.constant dense<0.000000e+00> : vector<16x32xf32>
    %80 = tpu.matmul %77, %79, %cst_25 {dimension_numbers = #tpu.dot_dimension_numbers<[1], [0], [0], [1], [0, 0, 1, 1], [], []>} : vector<16x32xbf16>, vector<32x32xbf16>, vector<16x32xf32> -> vector<16x32xf32>
    %81 = vector.extract_strided_slice %7 {offsets = [4, 0], sizes = [1, 32], strides = [1, 1]} : vector<14x128xf32> to vector<1x32xf32>
    %82 = vector.shape_cast %81 : vector<1x32xf32> to vector<32xf32>
    %83 = vector.shape_cast %82 : vector<32xf32> to vector<1x32xf32>
    %84 = vector.broadcast %83 : vector<1x32xf32> to vector<16x32xf32>
    %85 = arith.addf %80, %84 : vector<16x32xf32>
    %86 = arith.addf %0, %85 : vector<16x32xf32>
    %87 = vector.extract_strided_slice %7 {offsets = [8, 0], sizes = [1, 32], strides = [1, 1]} : vector<14x128xf32> to vector<1x32xf32>
    %88 = vector.shape_cast %87 : vector<1x32xf32> to vector<32xf32>
    %89 = vector.extract_strided_slice %7 {offsets = [9, 0], sizes = [1, 32], strides = [1, 1]} : vector<14x128xf32> to vector<1x32xf32>
    %90 = vector.shape_cast %89 : vector<1x32xf32> to vector<32xf32>
    %cst_26 = arith.constant dense<0.000000e+00> : vector<16xf32>
    %91 = vector.multi_reduction <add>, %86, %cst_26 [1] : vector<16x32xf32> to vector<16xf32>
    %92 = vector.shape_cast %91 : vector<16xf32> to vector<16x1xf32>
    %cst_27 = arith.constant 3.200000e+01 : f32
    %93 = vector.broadcast %cst_27 : f32 to vector<16x1xf32>
    %94 = arith.divf %92, %93 : vector<16x1xf32>
    %95 = arith.mulf %86, %86 : vector<16x32xf32>
    %cst_28 = arith.constant dense<0.000000e+00> : vector<16xf32>
    %96 = vector.multi_reduction <add>, %95, %cst_28 [1] : vector<16x32xf32> to vector<16xf32>
    %97 = vector.shape_cast %96 : vector<16xf32> to vector<16x1xf32>
    %cst_29 = arith.constant 3.200000e+01 : f32
    %98 = vector.broadcast %cst_29 : f32 to vector<16x1xf32>
    %99 = arith.divf %97, %98 : vector<16x1xf32>
    %100 = arith.mulf %94, %94 : vector<16x1xf32>
    %101 = arith.subf %99, %100 : vector<16x1xf32>
    %102 = vector.broadcast %94 : vector<16x1xf32> to vector<16x32xf32>
    %103 = arith.subf %86, %102 : vector<16x32xf32>
    %cst_30 = arith.constant 9.99999974E-6 : f32
    %104 = vector.broadcast %cst_30 : f32 to vector<16x1xf32>
    %105 = arith.addf %101, %104 : vector<16x1xf32>
    %106 = math.rsqrt %105 : vector<16x1xf32>
    %107 = vector.broadcast %106 : vector<16x1xf32> to vector<16x32xf32>
    %108 = arith.mulf %103, %107 : vector<16x32xf32>
    %109 = vector.shape_cast %88 : vector<32xf32> to vector<1x32xf32>
    %110 = vector.broadcast %109 : vector<1x32xf32> to vector<16x32xf32>
    %111 = arith.mulf %108, %110 : vector<16x32xf32>
    %112 = vector.shape_cast %90 : vector<32xf32> to vector<1x32xf32>
    %113 = vector.broadcast %112 : vector<1x32xf32> to vector<16x32xf32>
    %114 = arith.addf %111, %113 : vector<16x32xf32>
    %115 = arith.truncf %114 : vector<16x32xf32> to vector<16x32xbf16>
    %c0_31 = arith.constant 0 : index
    %c0_32 = arith.constant 0 : index
    %c0_33 = arith.constant 0 : index
    %116 = vector.load %arg7[%c0_31, %c0_32, %c0_33] : memref<2x32x64xbf16, #tpu.memory_space<vmem>>, vector<1x32x64xbf16>
    %117 = vector.shape_cast %116 : vector<1x32x64xbf16> to vector<32x64xbf16>
    %cst_34 = arith.constant dense<0.000000e+00> : vector<16x64xf32>
    %118 = tpu.matmul %115, %117, %cst_34 {dimension_numbers = #tpu.dot_dimension_numbers<[1], [0], [0], [1], [0, 0, 1, 1], [], []>} : vector<16x32xbf16>, vector<32x64xbf16>, vector<16x64xf32> -> vector<16x64xf32>
    %119 = vector.extract_strided_slice %7 {offsets = [1, 0], sizes = [1, 64], strides = [1, 1]} : vector<14x128xf32> to vector<1x64xf32>
    %120 = vector.shape_cast %119 : vector<1x64xf32> to vector<64xf32>
    %121 = vector.shape_cast %120 : vector<64xf32> to vector<1x64xf32>
    %122 = vector.broadcast %121 : vector<1x64xf32> to vector<16x64xf32>
    %123 = arith.addf %118, %122 : vector<16x64xf32>
    %c0_35 = arith.constant 0 : index
    %c0_36 = arith.constant 0 : index
    %c0_37 = arith.constant 0 : index
    %124 = vector.load %arg8[%c0_35, %c0_36, %c0_37] : memref<2x32x64xbf16, #tpu.memory_space<vmem>>, vector<1x32x64xbf16>
    %125 = vector.shape_cast %124 : vector<1x32x64xbf16> to vector<32x64xbf16>
    %cst_38 = arith.constant dense<0.000000e+00> : vector<16x64xf32>
    %126 = tpu.matmul %1, %125, %cst_38 {dimension_numbers = #tpu.dot_dimension_numbers<[1], [0], [0], [1], [0, 0, 1, 1], [], []>} : vector<16x32xbf16>, vector<32x64xbf16>, vector<16x64xf32> -> vector<16x64xf32>
    %127 = vector.extract_strided_slice %7 {offsets = [2, 0], sizes = [1, 64], strides = [1, 1]} : vector<14x128xf32> to vector<1x64xf32>
    %128 = vector.shape_cast %127 : vector<1x64xf32> to vector<64xf32>
    %129 = vector.shape_cast %128 : vector<64xf32> to vector<1x64xf32>
    %130 = vector.broadcast %129 : vector<1x64xf32> to vector<16x64xf32>
    %131 = arith.addf %126, %130 : vector<16x64xf32>
    %c0_39 = arith.constant 0 : index
    %c0_40 = arith.constant 0 : index
    %c0_41 = arith.constant 0 : index
    %132 = vector.load %arg9[%c0_39, %c0_40, %c0_41] : memref<2x32x64xbf16, #tpu.memory_space<vmem>>, vector<1x32x64xbf16>
    %133 = vector.shape_cast %132 : vector<1x32x64xbf16> to vector<32x64xbf16>
    %cst_42 = arith.constant dense<0.000000e+00> : vector<16x64xf32>
    %134 = tpu.matmul %2, %133, %cst_42 {dimension_numbers = #tpu.dot_dimension_numbers<[1], [0], [0], [1], [0, 0, 1, 1], [], []>} : vector<16x32xbf16>, vector<32x64xbf16>, vector<16x64xf32> -> vector<16x64xf32>
    %135 = vector.extract_strided_slice %7 {offsets = [3, 0], sizes = [1, 64], strides = [1, 1]} : vector<14x128xf32> to vector<1x64xf32>
    %136 = vector.shape_cast %135 : vector<1x64xf32> to vector<64xf32>
    %137 = vector.shape_cast %136 : vector<64xf32> to vector<1x64xf32>
    %138 = vector.broadcast %137 : vector<1x64xf32> to vector<16x64xf32>
    %139 = arith.addf %134, %138 : vector<16x64xf32>
    %140 = vector.extract_strided_slice %123 {offsets = [0, 0], sizes = [16, 32], strides = [1, 1]} : vector<16x64xf32> to vector<16x32xf32>
    %141 = vector.extract_strided_slice %131 {offsets = [0, 0], sizes = [16, 32], strides = [1, 1]} : vector<16x64xf32> to vector<16x32xf32>
    %142 = vector.extract_strided_slice %131 {offsets = [0, 32], sizes = [16, 32], strides = [1, 1]} : vector<16x64xf32> to vector<16x32xf32>
    %143 = vector.extract_strided_slice %140 {offsets = [0, 0], sizes = [8, 8], strides = [1, 1]} : vector<16x32xf32> to vector<8x8xf32>
    %144 = vector.extract_strided_slice %140 {offsets = [0, 8], sizes = [8, 8], strides = [1, 1]} : vector<16x32xf32> to vector<8x8xf32>
    %145 = vector.extract_strided_slice %140 {offsets = [0, 16], sizes = [8, 8], strides = [1, 1]} : vector<16x32xf32> to vector<8x8xf32>
    %146 = vector.extract_strided_slice %140 {offsets = [0, 24], sizes = [8, 8], strides = [1, 1]} : vector<16x32xf32> to vector<8x8xf32>
    %147 = vector.extract_strided_slice %140 {offsets = [8, 0], sizes = [8, 8], strides = [1, 1]} : vector<16x32xf32> to vector<8x8xf32>
    %148 = vector.extract_strided_slice %140 {offsets = [8, 8], sizes = [8, 8], strides = [1, 1]} : vector<16x32xf32> to vector<8x8xf32>
    %149 = vector.extract_strided_slice %140 {offsets = [8, 16], sizes = [8, 8], strides = [1, 1]} : vector<16x32xf32> to vector<8x8xf32>
    %150 = vector.extract_strided_slice %140 {offsets = [8, 24], sizes = [8, 8], strides = [1, 1]} : vector<16x32xf32> to vector<8x8xf32>
    %151 = tpu.concatenate %143, %144, %145, %146, %147, %148, %149, %150 in 0 : vector<8x8xf32>, vector<8x8xf32>, vector<8x8xf32>, vector<8x8xf32>, vector<8x8xf32>, vector<8x8xf32>, vector<8x8xf32>, vector<8x8xf32> -> vector<64x8xf32>
    %152 = arith.truncf %151 : vector<64x8xf32> to vector<64x8xbf16>
    %153 = vector.extract_strided_slice %141 {offsets = [0, 0], sizes = [8, 8], strides = [1, 1]} : vector<16x32xf32> to vector<8x8xf32>
    %154 = vector.extract_strided_slice %141 {offsets = [0, 8], sizes = [8, 8], strides = [1, 1]} : vector<16x32xf32> to vector<8x8xf32>
    %155 = vector.extract_strided_slice %141 {offsets = [0, 16], sizes = [8, 8], strides = [1, 1]} : vector<16x32xf32> to vector<8x8xf32>
    %156 = vector.extract_strided_slice %141 {offsets = [0, 24], sizes = [8, 8], strides = [1, 1]} : vector<16x32xf32> to vector<8x8xf32>
    %157 = vector.extract_strided_slice %141 {offsets = [8, 0], sizes = [8, 8], strides = [1, 1]} : vector<16x32xf32> to vector<8x8xf32>
    %158 = vector.extract_strided_slice %141 {offsets = [8, 8], sizes = [8, 8], strides = [1, 1]} : vector<16x32xf32> to vector<8x8xf32>
    %159 = vector.extract_strided_slice %141 {offsets = [8, 16], sizes = [8, 8], strides = [1, 1]} : vector<16x32xf32> to vector<8x8xf32>
    %160 = vector.extract_strided_slice %141 {offsets = [8, 24], sizes = [8, 8], strides = [1, 1]} : vector<16x32xf32> to vector<8x8xf32>
    %161 = tpu.concatenate %153, %154, %155, %156, %157, %158, %159, %160 in 0 : vector<8x8xf32>, vector<8x8xf32>, vector<8x8xf32>, vector<8x8xf32>, vector<8x8xf32>, vector<8x8xf32>, vector<8x8xf32>, vector<8x8xf32> -> vector<64x8xf32>
    %162 = arith.truncf %161 : vector<64x8xf32> to vector<64x8xbf16>
    %163 = vector.extract_strided_slice %142 {offsets = [0, 0], sizes = [8, 8], strides = [1, 1]} : vector<16x32xf32> to vector<8x8xf32>
    %164 = vector.extract_strided_slice %142 {offsets = [0, 8], sizes = [8, 8], strides = [1, 1]} : vector<16x32xf32> to vector<8x8xf32>
    %165 = vector.extract_strided_slice %142 {offsets = [0, 16], sizes = [8, 8], strides = [1, 1]} : vector<16x32xf32> to vector<8x8xf32>
    %166 = vector.extract_strided_slice %142 {offsets = [0, 24], sizes = [8, 8], strides = [1, 1]} : vector<16x32xf32> to vector<8x8xf32>
    %167 = vector.extract_strided_slice %142 {offsets = [8, 0], sizes = [8, 8], strides = [1, 1]} : vector<16x32xf32> to vector<8x8xf32>
    %168 = vector.extract_strided_slice %142 {offsets = [8, 8], sizes = [8, 8], strides = [1, 1]} : vector<16x32xf32> to vector<8x8xf32>
    %169 = vector.extract_strided_slice %142 {offsets = [8, 16], sizes = [8, 8], strides = [1, 1]} : vector<16x32xf32> to vector<8x8xf32>
    %170 = vector.extract_strided_slice %142 {offsets = [8, 24], sizes = [8, 8], strides = [1, 1]} : vector<16x32xf32> to vector<8x8xf32>
    %171 = tpu.concatenate %163, %164, %165, %166, %167, %168, %169, %170 in 0 : vector<8x8xf32>, vector<8x8xf32>, vector<8x8xf32>, vector<8x8xf32>, vector<8x8xf32>, vector<8x8xf32>, vector<8x8xf32>, vector<8x8xf32> -> vector<64x8xf32>
    %172 = arith.truncf %171 : vector<64x8xf32> to vector<64x8xbf16>
    %cst_43 = arith.constant dense<0.000000e+00> : vector<64x64xf32>
    %173 = tpu.matmul %152, %162, %cst_43 {dimension_numbers = #tpu.dot_dimension_numbers<[1], [1], [0], [0], [0, 0, 1, 0], [], []>} : vector<64x8xbf16>, vector<64x8xbf16>, vector<64x64xf32> -> vector<64x64xf32>
    %cst_44 = arith.constant 0.353553385 : f32
    %174 = vector.broadcast %cst_44 : f32 to vector<64x64xf32>
    %175 = arith.mulf %173, %174 : vector<64x64xf32>
    %176 = arith.addf %175, %4 : vector<64x64xf32>
    %cst_45 = arith.constant dense<0xFF800000> : vector<64xf32>
    %177 = vector.multi_reduction <maximumf>, %176, %cst_45 [1] : vector<64x64xf32> to vector<64xf32>
    %178 = vector.shape_cast %177 : vector<64xf32> to vector<64x1xf32>
    %179 = vector.broadcast %178 : vector<64x1xf32> to vector<64x64xf32>
    %180 = arith.subf %176, %179 : vector<64x64xf32>
    %181 = math.exp %180 : vector<64x64xf32>
    %cst_46 = arith.constant dense<0.000000e+00> : vector<64xf32>
    %182 = vector.multi_reduction <add>, %181, %cst_46 [1] : vector<64x64xf32> to vector<64xf32>
    %183 = vector.shape_cast %182 : vector<64xf32> to vector<64x1xf32>
    %184 = tpu.reciprocal %183 {approx = true} : vector<64x1xf32> -> vector<64x1xf32>
    %185 = vector.broadcast %184 : vector<64x1xf32> to vector<64x64xf32>
    %186 = arith.mulf %181, %185 : vector<64x64xf32>
    %187 = arith.truncf %186 : vector<64x64xf32> to vector<64x64xbf16>
    %cst_47 = arith.constant dense<0.000000e+00> : vector<64x8xf32>
    %188 = tpu.matmul %187, %172, %cst_47 {dimension_numbers = #tpu.dot_dimension_numbers<[1], [0], [0], [1], [0, 0, 1, 1], [], []>} : vector<64x64xbf16>, vector<64x8xbf16>, vector<64x8xf32> -> vector<64x8xf32>
    %189 = vector.extract_strided_slice %188 {offsets = [0, 0], sizes = [8, 8], strides = [1, 1]} : vector<64x8xf32> to vector<8x8xf32>
    %190 = vector.extract_strided_slice %188 {offsets = [8, 0], sizes = [8, 8], strides = [1, 1]} : vector<64x8xf32> to vector<8x8xf32>
    %191 = vector.extract_strided_slice %188 {offsets = [16, 0], sizes = [8, 8], strides = [1, 1]} : vector<64x8xf32> to vector<8x8xf32>
    %192 = vector.extract_strided_slice %188 {offsets = [24, 0], sizes = [8, 8], strides = [1, 1]} : vector<64x8xf32> to vector<8x8xf32>
    %193 = tpu.concatenate %189, %190, %191, %192 in 1 : vector<8x8xf32>, vector<8x8xf32>, vector<8x8xf32>, vector<8x8xf32> -> vector<8x32xf32>
    %194 = vector.extract_strided_slice %188 {offsets = [32, 0], sizes = [8, 8], strides = [1, 1]} : vector<64x8xf32> to vector<8x8xf32>
    %195 = vector.extract_strided_slice %188 {offsets = [40, 0], sizes = [8, 8], strides = [1, 1]} : vector<64x8xf32> to vector<8x8xf32>
    %196 = vector.extract_strided_slice %188 {offsets = [48, 0], sizes = [8, 8], strides = [1, 1]} : vector<64x8xf32> to vector<8x8xf32>
    %197 = vector.extract_strided_slice %188 {offsets = [56, 0], sizes = [8, 8], strides = [1, 1]} : vector<64x8xf32> to vector<8x8xf32>
    %198 = tpu.concatenate %194, %195, %196, %197 in 1 : vector<8x8xf32>, vector<8x8xf32>, vector<8x8xf32>, vector<8x8xf32> -> vector<8x32xf32>
    %199 = tpu.concatenate %193, %198 in 0 : vector<8x32xf32>, vector<8x32xf32> -> vector<16x32xf32>
    %200 = vector.extract_strided_slice %123 {offsets = [0, 32], sizes = [16, 32], strides = [1, 1]} : vector<16x64xf32> to vector<16x32xf32>
    %201 = vector.extract_strided_slice %139 {offsets = [0, 0], sizes = [16, 32], strides = [1, 1]} : vector<16x64xf32> to vector<16x32xf32>
    %202 = vector.extract_strided_slice %139 {offsets = [0, 32], sizes = [16, 32], strides = [1, 1]} : vector<16x64xf32> to vector<16x32xf32>
    %203 = vector.extract_strided_slice %200 {offsets = [0, 0], sizes = [8, 8], strides = [1, 1]} : vector<16x32xf32> to vector<8x8xf32>
    %204 = vector.extract_strided_slice %200 {offsets = [0, 8], sizes = [8, 8], strides = [1, 1]} : vector<16x32xf32> to vector<8x8xf32>
    %205 = vector.extract_strided_slice %200 {offsets = [0, 16], sizes = [8, 8], strides = [1, 1]} : vector<16x32xf32> to vector<8x8xf32>
    %206 = vector.extract_strided_slice %200 {offsets = [0, 24], sizes = [8, 8], strides = [1, 1]} : vector<16x32xf32> to vector<8x8xf32>
    %207 = vector.extract_strided_slice %200 {offsets = [8, 0], sizes = [8, 8], strides = [1, 1]} : vector<16x32xf32> to vector<8x8xf32>
    %208 = vector.extract_strided_slice %200 {offsets = [8, 8], sizes = [8, 8], strides = [1, 1]} : vector<16x32xf32> to vector<8x8xf32>
    %209 = vector.extract_strided_slice %200 {offsets = [8, 16], sizes = [8, 8], strides = [1, 1]} : vector<16x32xf32> to vector<8x8xf32>
    %210 = vector.extract_strided_slice %200 {offsets = [8, 24], sizes = [8, 8], strides = [1, 1]} : vector<16x32xf32> to vector<8x8xf32>
    %211 = tpu.concatenate %203, %204, %205, %206, %207, %208, %209, %210 in 0 : vector<8x8xf32>, vector<8x8xf32>, vector<8x8xf32>, vector<8x8xf32>, vector<8x8xf32>, vector<8x8xf32>, vector<8x8xf32>, vector<8x8xf32> -> vector<64x8xf32>
    %212 = arith.truncf %211 : vector<64x8xf32> to vector<64x8xbf16>
    %213 = vector.extract_strided_slice %201 {offsets = [0, 0], sizes = [8, 8], strides = [1, 1]} : vector<16x32xf32> to vector<8x8xf32>
    %214 = vector.extract_strided_slice %201 {offsets = [0, 8], sizes = [8, 8], strides = [1, 1]} : vector<16x32xf32> to vector<8x8xf32>
    %215 = vector.extract_strided_slice %201 {offsets = [0, 16], sizes = [8, 8], strides = [1, 1]} : vector<16x32xf32> to vector<8x8xf32>
    %216 = vector.extract_strided_slice %201 {offsets = [0, 24], sizes = [8, 8], strides = [1, 1]} : vector<16x32xf32> to vector<8x8xf32>
    %217 = vector.extract_strided_slice %201 {offsets = [8, 0], sizes = [8, 8], strides = [1, 1]} : vector<16x32xf32> to vector<8x8xf32>
    %218 = vector.extract_strided_slice %201 {offsets = [8, 8], sizes = [8, 8], strides = [1, 1]} : vector<16x32xf32> to vector<8x8xf32>
    %219 = vector.extract_strided_slice %201 {offsets = [8, 16], sizes = [8, 8], strides = [1, 1]} : vector<16x32xf32> to vector<8x8xf32>
    %220 = vector.extract_strided_slice %201 {offsets = [8, 24], sizes = [8, 8], strides = [1, 1]} : vector<16x32xf32> to vector<8x8xf32>
    %221 = tpu.concatenate %213, %214, %215, %216, %217, %218, %219, %220 in 0 : vector<8x8xf32>, vector<8x8xf32>, vector<8x8xf32>, vector<8x8xf32>, vector<8x8xf32>, vector<8x8xf32>, vector<8x8xf32>, vector<8x8xf32> -> vector<64x8xf32>
    %222 = arith.truncf %221 : vector<64x8xf32> to vector<64x8xbf16>
    %223 = vector.extract_strided_slice %202 {offsets = [0, 0], sizes = [8, 8], strides = [1, 1]} : vector<16x32xf32> to vector<8x8xf32>
    %224 = vector.extract_strided_slice %202 {offsets = [0, 8], sizes = [8, 8], strides = [1, 1]} : vector<16x32xf32> to vector<8x8xf32>
    %225 = vector.extract_strided_slice %202 {offsets = [0, 16], sizes = [8, 8], strides = [1, 1]} : vector<16x32xf32> to vector<8x8xf32>
    %226 = vector.extract_strided_slice %202 {offsets = [0, 24], sizes = [8, 8], strides = [1, 1]} : vector<16x32xf32> to vector<8x8xf32>
    %227 = vector.extract_strided_slice %202 {offsets = [8, 0], sizes = [8, 8], strides = [1, 1]} : vector<16x32xf32> to vector<8x8xf32>
    %228 = vector.extract_strided_slice %202 {offsets = [8, 8], sizes = [8, 8], strides = [1, 1]} : vector<16x32xf32> to vector<8x8xf32>
    %229 = vector.extract_strided_slice %202 {offsets = [8, 16], sizes = [8, 8], strides = [1, 1]} : vector<16x32xf32> to vector<8x8xf32>
    %230 = vector.extract_strided_slice %202 {offsets = [8, 24], sizes = [8, 8], strides = [1, 1]} : vector<16x32xf32> to vector<8x8xf32>
    %231 = tpu.concatenate %223, %224, %225, %226, %227, %228, %229, %230 in 0 : vector<8x8xf32>, vector<8x8xf32>, vector<8x8xf32>, vector<8x8xf32>, vector<8x8xf32>, vector<8x8xf32>, vector<8x8xf32>, vector<8x8xf32> -> vector<64x8xf32>
    %232 = arith.truncf %231 : vector<64x8xf32> to vector<64x8xbf16>
    %cst_48 = arith.constant dense<0.000000e+00> : vector<64x64xf32>
    %233 = tpu.matmul %212, %222, %cst_48 {dimension_numbers = #tpu.dot_dimension_numbers<[1], [1], [0], [0], [0, 0, 1, 0], [], []>} : vector<64x8xbf16>, vector<64x8xbf16>, vector<64x64xf32> -> vector<64x64xf32>
    %cst_49 = arith.constant 0.353553385 : f32
    %234 = vector.broadcast %cst_49 : f32 to vector<64x64xf32>
    %235 = arith.mulf %233, %234 : vector<64x64xf32>
    %236 = arith.addf %235, %5 : vector<64x64xf32>
    %cst_50 = arith.constant dense<0xFF800000> : vector<64xf32>
    %237 = vector.multi_reduction <maximumf>, %236, %cst_50 [1] : vector<64x64xf32> to vector<64xf32>
    %238 = vector.shape_cast %237 : vector<64xf32> to vector<64x1xf32>
    %239 = vector.broadcast %238 : vector<64x1xf32> to vector<64x64xf32>
    %240 = arith.subf %236, %239 : vector<64x64xf32>
    %241 = math.exp %240 : vector<64x64xf32>
    %cst_51 = arith.constant dense<0.000000e+00> : vector<64xf32>
    %242 = vector.multi_reduction <add>, %241, %cst_51 [1] : vector<64x64xf32> to vector<64xf32>
    %243 = vector.shape_cast %242 : vector<64xf32> to vector<64x1xf32>
    %244 = tpu.reciprocal %243 {approx = true} : vector<64x1xf32> -> vector<64x1xf32>
    %245 = vector.broadcast %244 : vector<64x1xf32> to vector<64x64xf32>
    %246 = arith.mulf %241, %245 : vector<64x64xf32>
    %247 = arith.truncf %246 : vector<64x64xf32> to vector<64x64xbf16>
    %cst_52 = arith.constant dense<0.000000e+00> : vector<64x8xf32>
    %248 = tpu.matmul %247, %232, %cst_52 {dimension_numbers = #tpu.dot_dimension_numbers<[1], [0], [0], [1], [0, 0, 1, 1], [], []>} : vector<64x64xbf16>, vector<64x8xbf16>, vector<64x8xf32> -> vector<64x8xf32>
    %249 = vector.extract_strided_slice %248 {offsets = [0, 0], sizes = [8, 8], strides = [1, 1]} : vector<64x8xf32> to vector<8x8xf32>
    %250 = vector.extract_strided_slice %248 {offsets = [8, 0], sizes = [8, 8], strides = [1, 1]} : vector<64x8xf32> to vector<8x8xf32>
    %251 = vector.extract_strided_slice %248 {offsets = [16, 0], sizes = [8, 8], strides = [1, 1]} : vector<64x8xf32> to vector<8x8xf32>
    %252 = vector.extract_strided_slice %248 {offsets = [24, 0], sizes = [8, 8], strides = [1, 1]} : vector<64x8xf32> to vector<8x8xf32>
    %253 = tpu.concatenate %249, %250, %251, %252 in 1 : vector<8x8xf32>, vector<8x8xf32>, vector<8x8xf32>, vector<8x8xf32> -> vector<8x32xf32>
    %254 = vector.extract_strided_slice %248 {offsets = [32, 0], sizes = [8, 8], strides = [1, 1]} : vector<64x8xf32> to vector<8x8xf32>
    %255 = vector.extract_strided_slice %248 {offsets = [40, 0], sizes = [8, 8], strides = [1, 1]} : vector<64x8xf32> to vector<8x8xf32>
    %256 = vector.extract_strided_slice %248 {offsets = [48, 0], sizes = [8, 8], strides = [1, 1]} : vector<64x8xf32> to vector<8x8xf32>
    %257 = vector.extract_strided_slice %248 {offsets = [56, 0], sizes = [8, 8], strides = [1, 1]} : vector<64x8xf32> to vector<8x8xf32>
    %258 = tpu.concatenate %254, %255, %256, %257 in 1 : vector<8x8xf32>, vector<8x8xf32>, vector<8x8xf32>, vector<8x8xf32> -> vector<8x32xf32>
    %259 = tpu.concatenate %253, %258 in 0 : vector<8x32xf32>, vector<8x32xf32> -> vector<16x32xf32>
    %260 = arith.truncf %199 : vector<16x32xf32> to vector<16x32xbf16>
    %c0_53 = arith.constant 0 : index
    %c0_54 = arith.constant 0 : index
    %c0_55 = arith.constant 0 : index
    %261 = vector.load %arg11[%c0_53, %c0_54, %c0_55] : memref<2x32x32xbf16, #tpu.memory_space<vmem>>, vector<1x32x32xbf16>
    %262 = vector.shape_cast %261 : vector<1x32x32xbf16> to vector<32x32xbf16>
    %cst_56 = arith.constant dense<0.000000e+00> : vector<16x32xf32>
    %263 = tpu.matmul %260, %262, %cst_56 {dimension_numbers = #tpu.dot_dimension_numbers<[1], [0], [0], [1], [0, 0, 1, 1], [], []>} : vector<16x32xbf16>, vector<32x32xbf16>, vector<16x32xf32> -> vector<16x32xf32>
    %264 = arith.truncf %259 : vector<16x32xf32> to vector<16x32xbf16>
    %c0_57 = arith.constant 0 : index
    %c0_58 = arith.constant 0 : index
    %c0_59 = arith.constant 0 : index
    %265 = vector.load %arg12[%c0_57, %c0_58, %c0_59] : memref<2x32x32xbf16, #tpu.memory_space<vmem>>, vector<1x32x32xbf16>
    %266 = vector.shape_cast %265 : vector<1x32x32xbf16> to vector<32x32xbf16>
    %cst_60 = arith.constant dense<0.000000e+00> : vector<16x32xf32>
    %267 = tpu.matmul %264, %266, %cst_60 {dimension_numbers = #tpu.dot_dimension_numbers<[1], [0], [0], [1], [0, 0, 1, 1], [], []>} : vector<16x32xbf16>, vector<32x32xbf16>, vector<16x32xf32> -> vector<16x32xf32>
    %268 = arith.addf %263, %267 : vector<16x32xf32>
    %269 = vector.extract_strided_slice %7 {offsets = [5, 0], sizes = [1, 32], strides = [1, 1]} : vector<14x128xf32> to vector<1x32xf32>
    %270 = vector.shape_cast %269 : vector<1x32xf32> to vector<32xf32>
    %271 = vector.shape_cast %270 : vector<32xf32> to vector<1x32xf32>
    %272 = vector.broadcast %271 : vector<1x32xf32> to vector<16x32xf32>
    %273 = arith.addf %268, %272 : vector<16x32xf32>
    %274 = arith.addf %114, %273 : vector<16x32xf32>
    %275 = vector.extract_strided_slice %7 {offsets = [10, 0], sizes = [1, 32], strides = [1, 1]} : vector<14x128xf32> to vector<1x32xf32>
    %276 = vector.shape_cast %275 : vector<1x32xf32> to vector<32xf32>
    %277 = vector.extract_strided_slice %7 {offsets = [11, 0], sizes = [1, 32], strides = [1, 1]} : vector<14x128xf32> to vector<1x32xf32>
    %278 = vector.shape_cast %277 : vector<1x32xf32> to vector<32xf32>
    %cst_61 = arith.constant dense<0.000000e+00> : vector<16xf32>
    %279 = vector.multi_reduction <add>, %274, %cst_61 [1] : vector<16x32xf32> to vector<16xf32>
    %280 = vector.shape_cast %279 : vector<16xf32> to vector<16x1xf32>
    %cst_62 = arith.constant 3.200000e+01 : f32
    %281 = vector.broadcast %cst_62 : f32 to vector<16x1xf32>
    %282 = arith.divf %280, %281 : vector<16x1xf32>
    %283 = arith.mulf %274, %274 : vector<16x32xf32>
    %cst_63 = arith.constant dense<0.000000e+00> : vector<16xf32>
    %284 = vector.multi_reduction <add>, %283, %cst_63 [1] : vector<16x32xf32> to vector<16xf32>
    %285 = vector.shape_cast %284 : vector<16xf32> to vector<16x1xf32>
    %cst_64 = arith.constant 3.200000e+01 : f32
    %286 = vector.broadcast %cst_64 : f32 to vector<16x1xf32>
    %287 = arith.divf %285, %286 : vector<16x1xf32>
    %288 = arith.mulf %282, %282 : vector<16x1xf32>
    %289 = arith.subf %287, %288 : vector<16x1xf32>
    %290 = vector.broadcast %282 : vector<16x1xf32> to vector<16x32xf32>
    %291 = arith.subf %274, %290 : vector<16x32xf32>
    %cst_65 = arith.constant 9.99999974E-6 : f32
    %292 = vector.broadcast %cst_65 : f32 to vector<16x1xf32>
    %293 = arith.addf %289, %292 : vector<16x1xf32>
    %294 = math.rsqrt %293 : vector<16x1xf32>
    %295 = vector.broadcast %294 : vector<16x1xf32> to vector<16x32xf32>
    %296 = arith.mulf %291, %295 : vector<16x32xf32>
    %297 = vector.shape_cast %276 : vector<32xf32> to vector<1x32xf32>
    %298 = vector.broadcast %297 : vector<1x32xf32> to vector<16x32xf32>
    %299 = arith.mulf %296, %298 : vector<16x32xf32>
    %300 = vector.shape_cast %278 : vector<32xf32> to vector<1x32xf32>
    %301 = vector.broadcast %300 : vector<1x32xf32> to vector<16x32xf32>
    %302 = arith.addf %299, %301 : vector<16x32xf32>
    %303 = arith.truncf %302 : vector<16x32xf32> to vector<16x32xbf16>
    %c0_66 = arith.constant 0 : index
    %c0_67 = arith.constant 0 : index
    %c0_68 = arith.constant 0 : index
    %304 = vector.load %arg13[%c0_66, %c0_67, %c0_68] : memref<2x32x64xbf16, #tpu.memory_space<vmem>>, vector<1x32x64xbf16>
    %305 = vector.shape_cast %304 : vector<1x32x64xbf16> to vector<32x64xbf16>
    %cst_69 = arith.constant dense<0.000000e+00> : vector<16x64xf32>
    %306 = tpu.matmul %303, %305, %cst_69 {dimension_numbers = #tpu.dot_dimension_numbers<[1], [0], [0], [1], [0, 0, 1, 1], [], []>} : vector<16x32xbf16>, vector<32x64xbf16>, vector<16x64xf32> -> vector<16x64xf32>
    %307 = vector.extract_strided_slice %7 {offsets = [6, 0], sizes = [1, 64], strides = [1, 1]} : vector<14x128xf32> to vector<1x64xf32>
    %308 = vector.shape_cast %307 : vector<1x64xf32> to vector<64xf32>
    %309 = vector.shape_cast %308 : vector<64xf32> to vector<1x64xf32>
    %310 = vector.broadcast %309 : vector<1x64xf32> to vector<16x64xf32>
    %311 = arith.addf %306, %310 : vector<16x64xf32>
    %cst_70 = arith.constant 0.000000e+00 : f32
    %312 = vector.broadcast %cst_70 : f32 to vector<16x64xf32>
    %313 = arith.maximumf %311, %312 : vector<16x64xf32>
    %314 = arith.truncf %313 : vector<16x64xf32> to vector<16x64xbf16>
    %c0_71 = arith.constant 0 : index
    %c0_72 = arith.constant 0 : index
    %c0_73 = arith.constant 0 : index
    %315 = vector.load %arg14[%c0_71, %c0_72, %c0_73] : memref<2x64x32xbf16, #tpu.memory_space<vmem>>, vector<1x64x32xbf16>
    %316 = vector.shape_cast %315 : vector<1x64x32xbf16> to vector<64x32xbf16>
    %cst_74 = arith.constant dense<0.000000e+00> : vector<16x32xf32>
    %317 = tpu.matmul %314, %316, %cst_74 {dimension_numbers = #tpu.dot_dimension_numbers<[1], [0], [0], [1], [0, 0, 1, 1], [], []>} : vector<16x64xbf16>, vector<64x32xbf16>, vector<16x32xf32> -> vector<16x32xf32>
    %318 = vector.extract_strided_slice %7 {offsets = [7, 0], sizes = [1, 32], strides = [1, 1]} : vector<14x128xf32> to vector<1x32xf32>
    %319 = vector.shape_cast %318 : vector<1x32xf32> to vector<32xf32>
    %320 = vector.shape_cast %319 : vector<32xf32> to vector<1x32xf32>
    %321 = vector.broadcast %320 : vector<1x32xf32> to vector<16x32xf32>
    %322 = arith.addf %317, %321 : vector<16x32xf32>
    %323 = arith.addf %302, %322 : vector<16x32xf32>
    %324 = vector.extract_strided_slice %7 {offsets = [12, 0], sizes = [1, 32], strides = [1, 1]} : vector<14x128xf32> to vector<1x32xf32>
    %325 = vector.shape_cast %324 : vector<1x32xf32> to vector<32xf32>
    %326 = vector.extract_strided_slice %7 {offsets = [13, 0], sizes = [1, 32], strides = [1, 1]} : vector<14x128xf32> to vector<1x32xf32>
    %327 = vector.shape_cast %326 : vector<1x32xf32> to vector<32xf32>
    %cst_75 = arith.constant dense<0.000000e+00> : vector<16xf32>
    %328 = vector.multi_reduction <add>, %323, %cst_75 [1] : vector<16x32xf32> to vector<16xf32>
    %329 = vector.shape_cast %328 : vector<16xf32> to vector<16x1xf32>
    %cst_76 = arith.constant 3.200000e+01 : f32
    %330 = vector.broadcast %cst_76 : f32 to vector<16x1xf32>
    %331 = arith.divf %329, %330 : vector<16x1xf32>
    %332 = arith.mulf %323, %323 : vector<16x32xf32>
    %cst_77 = arith.constant dense<0.000000e+00> : vector<16xf32>
    %333 = vector.multi_reduction <add>, %332, %cst_77 [1] : vector<16x32xf32> to vector<16xf32>
    %334 = vector.shape_cast %333 : vector<16xf32> to vector<16x1xf32>
    %cst_78 = arith.constant 3.200000e+01 : f32
    %335 = vector.broadcast %cst_78 : f32 to vector<16x1xf32>
    %336 = arith.divf %334, %335 : vector<16x1xf32>
    %337 = arith.mulf %331, %331 : vector<16x1xf32>
    %338 = arith.subf %336, %337 : vector<16x1xf32>
    %339 = vector.broadcast %331 : vector<16x1xf32> to vector<16x32xf32>
    %340 = arith.subf %323, %339 : vector<16x32xf32>
    %cst_79 = arith.constant 9.99999974E-6 : f32
    %341 = vector.broadcast %cst_79 : f32 to vector<16x1xf32>
    %342 = arith.addf %338, %341 : vector<16x1xf32>
    %343 = math.rsqrt %342 : vector<16x1xf32>
    %344 = vector.broadcast %343 : vector<16x1xf32> to vector<16x32xf32>
    %345 = arith.mulf %340, %344 : vector<16x32xf32>
    %346 = vector.shape_cast %325 : vector<32xf32> to vector<1x32xf32>
    %347 = vector.broadcast %346 : vector<1x32xf32> to vector<16x32xf32>
    %348 = arith.mulf %345, %347 : vector<16x32xf32>
    %349 = vector.shape_cast %327 : vector<32xf32> to vector<1x32xf32>
    %350 = vector.broadcast %349 : vector<1x32xf32> to vector<16x32xf32>
    %351 = arith.addf %348, %350 : vector<16x32xf32>
    %c1 = arith.constant 1 : index
    %c0_80 = arith.constant 0 : index
    %c0_81 = arith.constant 0 : index
    %352 = vector.load %arg15[%c1, %c0_80, %c0_81] : memref<2x14x128xf32, #tpu.memory_space<vmem>>, vector<1x14x128xf32>
    %353 = vector.shape_cast %352 : vector<1x14x128xf32> to vector<14x128xf32>
    %354 = arith.truncf %351 : vector<16x32xf32> to vector<16x32xbf16>
    %c1_82 = arith.constant 1 : index
    %c0_83 = arith.constant 0 : index
    %c0_84 = arith.constant 0 : index
    %355 = vector.load %arg6[%c1_82, %c0_83, %c0_84] : memref<2x32x96xbf16, #tpu.memory_space<vmem>>, vector<1x32x96xbf16>
    %356 = vector.shape_cast %355 : vector<1x32x96xbf16> to vector<32x96xbf16>
    %cst_85 = arith.constant dense<0.000000e+00> : vector<16x96xf32>
    %357 = tpu.matmul %354, %356, %cst_85 {dimension_numbers = #tpu.dot_dimension_numbers<[1], [0], [0], [1], [0, 0, 1, 1], [], []>} : vector<16x32xbf16>, vector<32x96xbf16>, vector<16x96xf32> -> vector<16x96xf32>
    %358 = vector.extract_strided_slice %353 {offsets = [0, 0], sizes = [1, 96], strides = [1, 1]} : vector<14x128xf32> to vector<1x96xf32>
    %359 = vector.shape_cast %358 : vector<1x96xf32> to vector<96xf32>
    %360 = vector.shape_cast %359 : vector<96xf32> to vector<1x96xf32>
    %361 = vector.broadcast %360 : vector<1x96xf32> to vector<16x96xf32>
    %362 = arith.addf %357, %361 : vector<16x96xf32>
    %363 = vector.extract_strided_slice %362 {offsets = [0, 0], sizes = [16, 32], strides = [1, 1]} : vector<16x96xf32> to vector<16x32xf32>
    %364 = vector.extract_strided_slice %362 {offsets = [0, 32], sizes = [16, 32], strides = [1, 1]} : vector<16x96xf32> to vector<16x32xf32>
    %365 = vector.extract_strided_slice %362 {offsets = [0, 64], sizes = [16, 32], strides = [1, 1]} : vector<16x96xf32> to vector<16x32xf32>
    %366 = vector.extract_strided_slice %363 {offsets = [0, 0], sizes = [8, 8], strides = [1, 1]} : vector<16x32xf32> to vector<8x8xf32>
    %367 = vector.extract_strided_slice %363 {offsets = [0, 8], sizes = [8, 8], strides = [1, 1]} : vector<16x32xf32> to vector<8x8xf32>
    %368 = vector.extract_strided_slice %363 {offsets = [0, 16], sizes = [8, 8], strides = [1, 1]} : vector<16x32xf32> to vector<8x8xf32>
    %369 = vector.extract_strided_slice %363 {offsets = [0, 24], sizes = [8, 8], strides = [1, 1]} : vector<16x32xf32> to vector<8x8xf32>
    %370 = vector.extract_strided_slice %363 {offsets = [8, 0], sizes = [8, 8], strides = [1, 1]} : vector<16x32xf32> to vector<8x8xf32>
    %371 = vector.extract_strided_slice %363 {offsets = [8, 8], sizes = [8, 8], strides = [1, 1]} : vector<16x32xf32> to vector<8x8xf32>
    %372 = vector.extract_strided_slice %363 {offsets = [8, 16], sizes = [8, 8], strides = [1, 1]} : vector<16x32xf32> to vector<8x8xf32>
    %373 = vector.extract_strided_slice %363 {offsets = [8, 24], sizes = [8, 8], strides = [1, 1]} : vector<16x32xf32> to vector<8x8xf32>
    %374 = tpu.concatenate %366, %367, %368, %369, %370, %371, %372, %373 in 0 : vector<8x8xf32>, vector<8x8xf32>, vector<8x8xf32>, vector<8x8xf32>, vector<8x8xf32>, vector<8x8xf32>, vector<8x8xf32>, vector<8x8xf32> -> vector<64x8xf32>
    %375 = arith.truncf %374 : vector<64x8xf32> to vector<64x8xbf16>
    %376 = vector.extract_strided_slice %364 {offsets = [0, 0], sizes = [8, 8], strides = [1, 1]} : vector<16x32xf32> to vector<8x8xf32>
    %377 = vector.extract_strided_slice %364 {offsets = [0, 8], sizes = [8, 8], strides = [1, 1]} : vector<16x32xf32> to vector<8x8xf32>
    %378 = vector.extract_strided_slice %364 {offsets = [0, 16], sizes = [8, 8], strides = [1, 1]} : vector<16x32xf32> to vector<8x8xf32>
    %379 = vector.extract_strided_slice %364 {offsets = [0, 24], sizes = [8, 8], strides = [1, 1]} : vector<16x32xf32> to vector<8x8xf32>
    %380 = vector.extract_strided_slice %364 {offsets = [8, 0], sizes = [8, 8], strides = [1, 1]} : vector<16x32xf32> to vector<8x8xf32>
    %381 = vector.extract_strided_slice %364 {offsets = [8, 8], sizes = [8, 8], strides = [1, 1]} : vector<16x32xf32> to vector<8x8xf32>
    %382 = vector.extract_strided_slice %364 {offsets = [8, 16], sizes = [8, 8], strides = [1, 1]} : vector<16x32xf32> to vector<8x8xf32>
    %383 = vector.extract_strided_slice %364 {offsets = [8, 24], sizes = [8, 8], strides = [1, 1]} : vector<16x32xf32> to vector<8x8xf32>
    %384 = tpu.concatenate %376, %377, %378, %379, %380, %381, %382, %383 in 0 : vector<8x8xf32>, vector<8x8xf32>, vector<8x8xf32>, vector<8x8xf32>, vector<8x8xf32>, vector<8x8xf32>, vector<8x8xf32>, vector<8x8xf32> -> vector<64x8xf32>
    %385 = arith.truncf %384 : vector<64x8xf32> to vector<64x8xbf16>
    %386 = vector.extract_strided_slice %365 {offsets = [0, 0], sizes = [8, 8], strides = [1, 1]} : vector<16x32xf32> to vector<8x8xf32>
    %387 = vector.extract_strided_slice %365 {offsets = [0, 8], sizes = [8, 8], strides = [1, 1]} : vector<16x32xf32> to vector<8x8xf32>
    %388 = vector.extract_strided_slice %365 {offsets = [0, 16], sizes = [8, 8], strides = [1, 1]} : vector<16x32xf32> to vector<8x8xf32>
    %389 = vector.extract_strided_slice %365 {offsets = [0, 24], sizes = [8, 8], strides = [1, 1]} : vector<16x32xf32> to vector<8x8xf32>
    %390 = vector.extract_strided_slice %365 {offsets = [8, 0], sizes = [8, 8], strides = [1, 1]} : vector<16x32xf32> to vector<8x8xf32>
    %391 = vector.extract_strided_slice %365 {offsets = [8, 8], sizes = [8, 8], strides = [1, 1]} : vector<16x32xf32> to vector<8x8xf32>
    %392 = vector.extract_strided_slice %365 {offsets = [8, 16], sizes = [8, 8], strides = [1, 1]} : vector<16x32xf32> to vector<8x8xf32>
    %393 = vector.extract_strided_slice %365 {offsets = [8, 24], sizes = [8, 8], strides = [1, 1]} : vector<16x32xf32> to vector<8x8xf32>
    %394 = tpu.concatenate %386, %387, %388, %389, %390, %391, %392, %393 in 0 : vector<8x8xf32>, vector<8x8xf32>, vector<8x8xf32>, vector<8x8xf32>, vector<8x8xf32>, vector<8x8xf32>, vector<8x8xf32>, vector<8x8xf32> -> vector<64x8xf32>
    %395 = arith.truncf %394 : vector<64x8xf32> to vector<64x8xbf16>
    %cst_86 = arith.constant dense<0.000000e+00> : vector<64x64xf32>
    %396 = tpu.matmul %375, %385, %cst_86 {dimension_numbers = #tpu.dot_dimension_numbers<[1], [1], [0], [0], [0, 0, 1, 0], [], []>} : vector<64x8xbf16>, vector<64x8xbf16>, vector<64x64xf32> -> vector<64x64xf32>
    %cst_87 = arith.constant 0.353553385 : f32
    %397 = vector.broadcast %cst_87 : f32 to vector<64x64xf32>
    %398 = arith.mulf %396, %397 : vector<64x64xf32>
    %399 = arith.addf %398, %3 : vector<64x64xf32>
    %cst_88 = arith.constant dense<0xFF800000> : vector<64xf32>
    %400 = vector.multi_reduction <maximumf>, %399, %cst_88 [1] : vector<64x64xf32> to vector<64xf32>
    %401 = vector.shape_cast %400 : vector<64xf32> to vector<64x1xf32>
    %402 = vector.broadcast %401 : vector<64x1xf32> to vector<64x64xf32>
    %403 = arith.subf %399, %402 : vector<64x64xf32>
    %404 = math.exp %403 : vector<64x64xf32>
    %cst_89 = arith.constant dense<0.000000e+00> : vector<64xf32>
    %405 = vector.multi_reduction <add>, %404, %cst_89 [1] : vector<64x64xf32> to vector<64xf32>
    %406 = vector.shape_cast %405 : vector<64xf32> to vector<64x1xf32>
    %407 = tpu.reciprocal %406 {approx = true} : vector<64x1xf32> -> vector<64x1xf32>
    %408 = vector.broadcast %407 : vector<64x1xf32> to vector<64x64xf32>
    %409 = arith.mulf %404, %408 : vector<64x64xf32>
    %410 = arith.truncf %409 : vector<64x64xf32> to vector<64x64xbf16>
    %cst_90 = arith.constant dense<0.000000e+00> : vector<64x8xf32>
    %411 = tpu.matmul %410, %395, %cst_90 {dimension_numbers = #tpu.dot_dimension_numbers<[1], [0], [0], [1], [0, 0, 1, 1], [], []>} : vector<64x64xbf16>, vector<64x8xbf16>, vector<64x8xf32> -> vector<64x8xf32>
    %412 = vector.extract_strided_slice %411 {offsets = [0, 0], sizes = [8, 8], strides = [1, 1]} : vector<64x8xf32> to vector<8x8xf32>
    %413 = vector.extract_strided_slice %411 {offsets = [8, 0], sizes = [8, 8], strides = [1, 1]} : vector<64x8xf32> to vector<8x8xf32>
    %414 = vector.extract_strided_slice %411 {offsets = [16, 0], sizes = [8, 8], strides = [1, 1]} : vector<64x8xf32> to vector<8x8xf32>
    %415 = vector.extract_strided_slice %411 {offsets = [24, 0], sizes = [8, 8], strides = [1, 1]} : vector<64x8xf32> to vector<8x8xf32>
    %416 = tpu.concatenate %412, %413, %414, %415 in 1 : vector<8x8xf32>, vector<8x8xf32>, vector<8x8xf32>, vector<8x8xf32> -> vector<8x32xf32>
    %417 = vector.extract_strided_slice %411 {offsets = [32, 0], sizes = [8, 8], strides = [1, 1]} : vector<64x8xf32> to vector<8x8xf32>
    %418 = vector.extract_strided_slice %411 {offsets = [40, 0], sizes = [8, 8], strides = [1, 1]} : vector<64x8xf32> to vector<8x8xf32>
    %419 = vector.extract_strided_slice %411 {offsets = [48, 0], sizes = [8, 8], strides = [1, 1]} : vector<64x8xf32> to vector<8x8xf32>
    %420 = vector.extract_strided_slice %411 {offsets = [56, 0], sizes = [8, 8], strides = [1, 1]} : vector<64x8xf32> to vector<8x8xf32>
    %421 = tpu.concatenate %417, %418, %419, %420 in 1 : vector<8x8xf32>, vector<8x8xf32>, vector<8x8xf32>, vector<8x8xf32> -> vector<8x32xf32>
    %422 = tpu.concatenate %416, %421 in 0 : vector<8x32xf32>, vector<8x32xf32> -> vector<16x32xf32>
    %423 = arith.truncf %422 : vector<16x32xf32> to vector<16x32xbf16>
    %c1_91 = arith.constant 1 : index
    %c0_92 = arith.constant 0 : index
    %c0_93 = arith.constant 0 : index
    %424 = vector.load %arg10[%c1_91, %c0_92, %c0_93] : memref<2x32x32xbf16, #tpu.memory_space<vmem>>, vector<1x32x32xbf16>
    %425 = vector.shape_cast %424 : vector<1x32x32xbf16> to vector<32x32xbf16>
    %cst_94 = arith.constant dense<0.000000e+00> : vector<16x32xf32>
    %426 = tpu.matmul %423, %425, %cst_94 {dimension_numbers = #tpu.dot_dimension_numbers<[1], [0], [0], [1], [0, 0, 1, 1], [], []>} : vector<16x32xbf16>, vector<32x32xbf16>, vector<16x32xf32> -> vector<16x32xf32>
    %427 = vector.extract_strided_slice %353 {offsets = [4, 0], sizes = [1, 32], strides = [1, 1]} : vector<14x128xf32> to vector<1x32xf32>
    %428 = vector.shape_cast %427 : vector<1x32xf32> to vector<32xf32>
    %429 = vector.shape_cast %428 : vector<32xf32> to vector<1x32xf32>
    %430 = vector.broadcast %429 : vector<1x32xf32> to vector<16x32xf32>
    %431 = arith.addf %426, %430 : vector<16x32xf32>
    %432 = arith.addf %351, %431 : vector<16x32xf32>
    %433 = vector.extract_strided_slice %353 {offsets = [8, 0], sizes = [1, 32], strides = [1, 1]} : vector<14x128xf32> to vector<1x32xf32>
    %434 = vector.shape_cast %433 : vector<1x32xf32> to vector<32xf32>
    %435 = vector.extract_strided_slice %353 {offsets = [9, 0], sizes = [1, 32], strides = [1, 1]} : vector<14x128xf32> to vector<1x32xf32>
    %436 = vector.shape_cast %435 : vector<1x32xf32> to vector<32xf32>
    %cst_95 = arith.constant dense<0.000000e+00> : vector<16xf32>
    %437 = vector.multi_reduction <add>, %432, %cst_95 [1] : vector<16x32xf32> to vector<16xf32>
    %438 = vector.shape_cast %437 : vector<16xf32> to vector<16x1xf32>
    %cst_96 = arith.constant 3.200000e+01 : f32
    %439 = vector.broadcast %cst_96 : f32 to vector<16x1xf32>
    %440 = arith.divf %438, %439 : vector<16x1xf32>
    %441 = arith.mulf %432, %432 : vector<16x32xf32>
    %cst_97 = arith.constant dense<0.000000e+00> : vector<16xf32>
    %442 = vector.multi_reduction <add>, %441, %cst_97 [1] : vector<16x32xf32> to vector<16xf32>
    %443 = vector.shape_cast %442 : vector<16xf32> to vector<16x1xf32>
    %cst_98 = arith.constant 3.200000e+01 : f32
    %444 = vector.broadcast %cst_98 : f32 to vector<16x1xf32>
    %445 = arith.divf %443, %444 : vector<16x1xf32>
    %446 = arith.mulf %440, %440 : vector<16x1xf32>
    %447 = arith.subf %445, %446 : vector<16x1xf32>
    %448 = vector.broadcast %440 : vector<16x1xf32> to vector<16x32xf32>
    %449 = arith.subf %432, %448 : vector<16x32xf32>
    %cst_99 = arith.constant 9.99999974E-6 : f32
    %450 = vector.broadcast %cst_99 : f32 to vector<16x1xf32>
    %451 = arith.addf %447, %450 : vector<16x1xf32>
    %452 = math.rsqrt %451 : vector<16x1xf32>
    %453 = vector.broadcast %452 : vector<16x1xf32> to vector<16x32xf32>
    %454 = arith.mulf %449, %453 : vector<16x32xf32>
    %455 = vector.shape_cast %434 : vector<32xf32> to vector<1x32xf32>
    %456 = vector.broadcast %455 : vector<1x32xf32> to vector<16x32xf32>
    %457 = arith.mulf %454, %456 : vector<16x32xf32>
    %458 = vector.shape_cast %436 : vector<32xf32> to vector<1x32xf32>
    %459 = vector.broadcast %458 : vector<1x32xf32> to vector<16x32xf32>
    %460 = arith.addf %457, %459 : vector<16x32xf32>
    %461 = arith.truncf %460 : vector<16x32xf32> to vector<16x32xbf16>
    %c1_100 = arith.constant 1 : index
    %c0_101 = arith.constant 0 : index
    %c0_102 = arith.constant 0 : index
    %462 = vector.load %arg7[%c1_100, %c0_101, %c0_102] : memref<2x32x64xbf16, #tpu.memory_space<vmem>>, vector<1x32x64xbf16>
    %463 = vector.shape_cast %462 : vector<1x32x64xbf16> to vector<32x64xbf16>
    %cst_103 = arith.constant dense<0.000000e+00> : vector<16x64xf32>
    %464 = tpu.matmul %461, %463, %cst_103 {dimension_numbers = #tpu.dot_dimension_numbers<[1], [0], [0], [1], [0, 0, 1, 1], [], []>} : vector<16x32xbf16>, vector<32x64xbf16>, vector<16x64xf32> -> vector<16x64xf32>
    %465 = vector.extract_strided_slice %353 {offsets = [1, 0], sizes = [1, 64], strides = [1, 1]} : vector<14x128xf32> to vector<1x64xf32>
    %466 = vector.shape_cast %465 : vector<1x64xf32> to vector<64xf32>
    %467 = vector.shape_cast %466 : vector<64xf32> to vector<1x64xf32>
    %468 = vector.broadcast %467 : vector<1x64xf32> to vector<16x64xf32>
    %469 = arith.addf %464, %468 : vector<16x64xf32>
    %c1_104 = arith.constant 1 : index
    %c0_105 = arith.constant 0 : index
    %c0_106 = arith.constant 0 : index
    %470 = vector.load %arg8[%c1_104, %c0_105, %c0_106] : memref<2x32x64xbf16, #tpu.memory_space<vmem>>, vector<1x32x64xbf16>
    %471 = vector.shape_cast %470 : vector<1x32x64xbf16> to vector<32x64xbf16>
    %cst_107 = arith.constant dense<0.000000e+00> : vector<16x64xf32>
    %472 = tpu.matmul %1, %471, %cst_107 {dimension_numbers = #tpu.dot_dimension_numbers<[1], [0], [0], [1], [0, 0, 1, 1], [], []>} : vector<16x32xbf16>, vector<32x64xbf16>, vector<16x64xf32> -> vector<16x64xf32>
    %473 = vector.extract_strided_slice %353 {offsets = [2, 0], sizes = [1, 64], strides = [1, 1]} : vector<14x128xf32> to vector<1x64xf32>
    %474 = vector.shape_cast %473 : vector<1x64xf32> to vector<64xf32>
    %475 = vector.shape_cast %474 : vector<64xf32> to vector<1x64xf32>
    %476 = vector.broadcast %475 : vector<1x64xf32> to vector<16x64xf32>
    %477 = arith.addf %472, %476 : vector<16x64xf32>
    %c1_108 = arith.constant 1 : index
    %c0_109 = arith.constant 0 : index
    %c0_110 = arith.constant 0 : index
    %478 = vector.load %arg9[%c1_108, %c0_109, %c0_110] : memref<2x32x64xbf16, #tpu.memory_space<vmem>>, vector<1x32x64xbf16>
    %479 = vector.shape_cast %478 : vector<1x32x64xbf16> to vector<32x64xbf16>
    %cst_111 = arith.constant dense<0.000000e+00> : vector<16x64xf32>
    %480 = tpu.matmul %2, %479, %cst_111 {dimension_numbers = #tpu.dot_dimension_numbers<[1], [0], [0], [1], [0, 0, 1, 1], [], []>} : vector<16x32xbf16>, vector<32x64xbf16>, vector<16x64xf32> -> vector<16x64xf32>
    %481 = vector.extract_strided_slice %353 {offsets = [3, 0], sizes = [1, 64], strides = [1, 1]} : vector<14x128xf32> to vector<1x64xf32>
    %482 = vector.shape_cast %481 : vector<1x64xf32> to vector<64xf32>
    %483 = vector.shape_cast %482 : vector<64xf32> to vector<1x64xf32>
    %484 = vector.broadcast %483 : vector<1x64xf32> to vector<16x64xf32>
    %485 = arith.addf %480, %484 : vector<16x64xf32>
    %486 = vector.extract_strided_slice %469 {offsets = [0, 0], sizes = [16, 32], strides = [1, 1]} : vector<16x64xf32> to vector<16x32xf32>
    %487 = vector.extract_strided_slice %477 {offsets = [0, 0], sizes = [16, 32], strides = [1, 1]} : vector<16x64xf32> to vector<16x32xf32>
    %488 = vector.extract_strided_slice %477 {offsets = [0, 32], sizes = [16, 32], strides = [1, 1]} : vector<16x64xf32> to vector<16x32xf32>
    %489 = vector.extract_strided_slice %486 {offsets = [0, 0], sizes = [8, 8], strides = [1, 1]} : vector<16x32xf32> to vector<8x8xf32>
    %490 = vector.extract_strided_slice %486 {offsets = [0, 8], sizes = [8, 8], strides = [1, 1]} : vector<16x32xf32> to vector<8x8xf32>
    %491 = vector.extract_strided_slice %486 {offsets = [0, 16], sizes = [8, 8], strides = [1, 1]} : vector<16x32xf32> to vector<8x8xf32>
    %492 = vector.extract_strided_slice %486 {offsets = [0, 24], sizes = [8, 8], strides = [1, 1]} : vector<16x32xf32> to vector<8x8xf32>
    %493 = vector.extract_strided_slice %486 {offsets = [8, 0], sizes = [8, 8], strides = [1, 1]} : vector<16x32xf32> to vector<8x8xf32>
    %494 = vector.extract_strided_slice %486 {offsets = [8, 8], sizes = [8, 8], strides = [1, 1]} : vector<16x32xf32> to vector<8x8xf32>
    %495 = vector.extract_strided_slice %486 {offsets = [8, 16], sizes = [8, 8], strides = [1, 1]} : vector<16x32xf32> to vector<8x8xf32>
    %496 = vector.extract_strided_slice %486 {offsets = [8, 24], sizes = [8, 8], strides = [1, 1]} : vector<16x32xf32> to vector<8x8xf32>
    %497 = tpu.concatenate %489, %490, %491, %492, %493, %494, %495, %496 in 0 : vector<8x8xf32>, vector<8x8xf32>, vector<8x8xf32>, vector<8x8xf32>, vector<8x8xf32>, vector<8x8xf32>, vector<8x8xf32>, vector<8x8xf32> -> vector<64x8xf32>
    %498 = arith.truncf %497 : vector<64x8xf32> to vector<64x8xbf16>
    %499 = vector.extract_strided_slice %487 {offsets = [0, 0], sizes = [8, 8], strides = [1, 1]} : vector<16x32xf32> to vector<8x8xf32>
    %500 = vector.extract_strided_slice %487 {offsets = [0, 8], sizes = [8, 8], strides = [1, 1]} : vector<16x32xf32> to vector<8x8xf32>
    %501 = vector.extract_strided_slice %487 {offsets = [0, 16], sizes = [8, 8], strides = [1, 1]} : vector<16x32xf32> to vector<8x8xf32>
    %502 = vector.extract_strided_slice %487 {offsets = [0, 24], sizes = [8, 8], strides = [1, 1]} : vector<16x32xf32> to vector<8x8xf32>
    %503 = vector.extract_strided_slice %487 {offsets = [8, 0], sizes = [8, 8], strides = [1, 1]} : vector<16x32xf32> to vector<8x8xf32>
    %504 = vector.extract_strided_slice %487 {offsets = [8, 8], sizes = [8, 8], strides = [1, 1]} : vector<16x32xf32> to vector<8x8xf32>
    %505 = vector.extract_strided_slice %487 {offsets = [8, 16], sizes = [8, 8], strides = [1, 1]} : vector<16x32xf32> to vector<8x8xf32>
    %506 = vector.extract_strided_slice %487 {offsets = [8, 24], sizes = [8, 8], strides = [1, 1]} : vector<16x32xf32> to vector<8x8xf32>
    %507 = tpu.concatenate %499, %500, %501, %502, %503, %504, %505, %506 in 0 : vector<8x8xf32>, vector<8x8xf32>, vector<8x8xf32>, vector<8x8xf32>, vector<8x8xf32>, vector<8x8xf32>, vector<8x8xf32>, vector<8x8xf32> -> vector<64x8xf32>
    %508 = arith.truncf %507 : vector<64x8xf32> to vector<64x8xbf16>
    %509 = vector.extract_strided_slice %488 {offsets = [0, 0], sizes = [8, 8], strides = [1, 1]} : vector<16x32xf32> to vector<8x8xf32>
    %510 = vector.extract_strided_slice %488 {offsets = [0, 8], sizes = [8, 8], strides = [1, 1]} : vector<16x32xf32> to vector<8x8xf32>
    %511 = vector.extract_strided_slice %488 {offsets = [0, 16], sizes = [8, 8], strides = [1, 1]} : vector<16x32xf32> to vector<8x8xf32>
    %512 = vector.extract_strided_slice %488 {offsets = [0, 24], sizes = [8, 8], strides = [1, 1]} : vector<16x32xf32> to vector<8x8xf32>
    %513 = vector.extract_strided_slice %488 {offsets = [8, 0], sizes = [8, 8], strides = [1, 1]} : vector<16x32xf32> to vector<8x8xf32>
    %514 = vector.extract_strided_slice %488 {offsets = [8, 8], sizes = [8, 8], strides = [1, 1]} : vector<16x32xf32> to vector<8x8xf32>
    %515 = vector.extract_strided_slice %488 {offsets = [8, 16], sizes = [8, 8], strides = [1, 1]} : vector<16x32xf32> to vector<8x8xf32>
    %516 = vector.extract_strided_slice %488 {offsets = [8, 24], sizes = [8, 8], strides = [1, 1]} : vector<16x32xf32> to vector<8x8xf32>
    %517 = tpu.concatenate %509, %510, %511, %512, %513, %514, %515, %516 in 0 : vector<8x8xf32>, vector<8x8xf32>, vector<8x8xf32>, vector<8x8xf32>, vector<8x8xf32>, vector<8x8xf32>, vector<8x8xf32>, vector<8x8xf32> -> vector<64x8xf32>
    %518 = arith.truncf %517 : vector<64x8xf32> to vector<64x8xbf16>
    %cst_112 = arith.constant dense<0.000000e+00> : vector<64x64xf32>
    %519 = tpu.matmul %498, %508, %cst_112 {dimension_numbers = #tpu.dot_dimension_numbers<[1], [1], [0], [0], [0, 0, 1, 0], [], []>} : vector<64x8xbf16>, vector<64x8xbf16>, vector<64x64xf32> -> vector<64x64xf32>
    %cst_113 = arith.constant 0.353553385 : f32
    %520 = vector.broadcast %cst_113 : f32 to vector<64x64xf32>
    %521 = arith.mulf %519, %520 : vector<64x64xf32>
    %522 = arith.addf %521, %4 : vector<64x64xf32>
    %cst_114 = arith.constant dense<0xFF800000> : vector<64xf32>
    %523 = vector.multi_reduction <maximumf>, %522, %cst_114 [1] : vector<64x64xf32> to vector<64xf32>
    %524 = vector.shape_cast %523 : vector<64xf32> to vector<64x1xf32>
    %525 = vector.broadcast %524 : vector<64x1xf32> to vector<64x64xf32>
    %526 = arith.subf %522, %525 : vector<64x64xf32>
    %527 = math.exp %526 : vector<64x64xf32>
    %cst_115 = arith.constant dense<0.000000e+00> : vector<64xf32>
    %528 = vector.multi_reduction <add>, %527, %cst_115 [1] : vector<64x64xf32> to vector<64xf32>
    %529 = vector.shape_cast %528 : vector<64xf32> to vector<64x1xf32>
    %530 = tpu.reciprocal %529 {approx = true} : vector<64x1xf32> -> vector<64x1xf32>
    %531 = vector.broadcast %530 : vector<64x1xf32> to vector<64x64xf32>
    %532 = arith.mulf %527, %531 : vector<64x64xf32>
    %533 = arith.truncf %532 : vector<64x64xf32> to vector<64x64xbf16>
    %cst_116 = arith.constant dense<0.000000e+00> : vector<64x8xf32>
    %534 = tpu.matmul %533, %518, %cst_116 {dimension_numbers = #tpu.dot_dimension_numbers<[1], [0], [0], [1], [0, 0, 1, 1], [], []>} : vector<64x64xbf16>, vector<64x8xbf16>, vector<64x8xf32> -> vector<64x8xf32>
    %535 = vector.extract_strided_slice %534 {offsets = [0, 0], sizes = [8, 8], strides = [1, 1]} : vector<64x8xf32> to vector<8x8xf32>
    %536 = vector.extract_strided_slice %534 {offsets = [8, 0], sizes = [8, 8], strides = [1, 1]} : vector<64x8xf32> to vector<8x8xf32>
    %537 = vector.extract_strided_slice %534 {offsets = [16, 0], sizes = [8, 8], strides = [1, 1]} : vector<64x8xf32> to vector<8x8xf32>
    %538 = vector.extract_strided_slice %534 {offsets = [24, 0], sizes = [8, 8], strides = [1, 1]} : vector<64x8xf32> to vector<8x8xf32>
    %539 = tpu.concatenate %535, %536, %537, %538 in 1 : vector<8x8xf32>, vector<8x8xf32>, vector<8x8xf32>, vector<8x8xf32> -> vector<8x32xf32>
    %540 = vector.extract_strided_slice %534 {offsets = [32, 0], sizes = [8, 8], strides = [1, 1]} : vector<64x8xf32> to vector<8x8xf32>
    %541 = vector.extract_strided_slice %534 {offsets = [40, 0], sizes = [8, 8], strides = [1, 1]} : vector<64x8xf32> to vector<8x8xf32>
    %542 = vector.extract_strided_slice %534 {offsets = [48, 0], sizes = [8, 8], strides = [1, 1]} : vector<64x8xf32> to vector<8x8xf32>
    %543 = vector.extract_strided_slice %534 {offsets = [56, 0], sizes = [8, 8], strides = [1, 1]} : vector<64x8xf32> to vector<8x8xf32>
    %544 = tpu.concatenate %540, %541, %542, %543 in 1 : vector<8x8xf32>, vector<8x8xf32>, vector<8x8xf32>, vector<8x8xf32> -> vector<8x32xf32>
    %545 = tpu.concatenate %539, %544 in 0 : vector<8x32xf32>, vector<8x32xf32> -> vector<16x32xf32>
    %546 = vector.extract_strided_slice %469 {offsets = [0, 32], sizes = [16, 32], strides = [1, 1]} : vector<16x64xf32> to vector<16x32xf32>
    %547 = vector.extract_strided_slice %485 {offsets = [0, 0], sizes = [16, 32], strides = [1, 1]} : vector<16x64xf32> to vector<16x32xf32>
    %548 = vector.extract_strided_slice %485 {offsets = [0, 32], sizes = [16, 32], strides = [1, 1]} : vector<16x64xf32> to vector<16x32xf32>
    %549 = vector.extract_strided_slice %546 {offsets = [0, 0], sizes = [8, 8], strides = [1, 1]} : vector<16x32xf32> to vector<8x8xf32>
    %550 = vector.extract_strided_slice %546 {offsets = [0, 8], sizes = [8, 8], strides = [1, 1]} : vector<16x32xf32> to vector<8x8xf32>
    %551 = vector.extract_strided_slice %546 {offsets = [0, 16], sizes = [8, 8], strides = [1, 1]} : vector<16x32xf32> to vector<8x8xf32>
    %552 = vector.extract_strided_slice %546 {offsets = [0, 24], sizes = [8, 8], strides = [1, 1]} : vector<16x32xf32> to vector<8x8xf32>
    %553 = vector.extract_strided_slice %546 {offsets = [8, 0], sizes = [8, 8], strides = [1, 1]} : vector<16x32xf32> to vector<8x8xf32>
    %554 = vector.extract_strided_slice %546 {offsets = [8, 8], sizes = [8, 8], strides = [1, 1]} : vector<16x32xf32> to vector<8x8xf32>
    %555 = vector.extract_strided_slice %546 {offsets = [8, 16], sizes = [8, 8], strides = [1, 1]} : vector<16x32xf32> to vector<8x8xf32>
    %556 = vector.extract_strided_slice %546 {offsets = [8, 24], sizes = [8, 8], strides = [1, 1]} : vector<16x32xf32> to vector<8x8xf32>
    %557 = tpu.concatenate %549, %550, %551, %552, %553, %554, %555, %556 in 0 : vector<8x8xf32>, vector<8x8xf32>, vector<8x8xf32>, vector<8x8xf32>, vector<8x8xf32>, vector<8x8xf32>, vector<8x8xf32>, vector<8x8xf32> -> vector<64x8xf32>
    %558 = arith.truncf %557 : vector<64x8xf32> to vector<64x8xbf16>
    %559 = vector.extract_strided_slice %547 {offsets = [0, 0], sizes = [8, 8], strides = [1, 1]} : vector<16x32xf32> to vector<8x8xf32>
    %560 = vector.extract_strided_slice %547 {offsets = [0, 8], sizes = [8, 8], strides = [1, 1]} : vector<16x32xf32> to vector<8x8xf32>
    %561 = vector.extract_strided_slice %547 {offsets = [0, 16], sizes = [8, 8], strides = [1, 1]} : vector<16x32xf32> to vector<8x8xf32>
    %562 = vector.extract_strided_slice %547 {offsets = [0, 24], sizes = [8, 8], strides = [1, 1]} : vector<16x32xf32> to vector<8x8xf32>
    %563 = vector.extract_strided_slice %547 {offsets = [8, 0], sizes = [8, 8], strides = [1, 1]} : vector<16x32xf32> to vector<8x8xf32>
    %564 = vector.extract_strided_slice %547 {offsets = [8, 8], sizes = [8, 8], strides = [1, 1]} : vector<16x32xf32> to vector<8x8xf32>
    %565 = vector.extract_strided_slice %547 {offsets = [8, 16], sizes = [8, 8], strides = [1, 1]} : vector<16x32xf32> to vector<8x8xf32>
    %566 = vector.extract_strided_slice %547 {offsets = [8, 24], sizes = [8, 8], strides = [1, 1]} : vector<16x32xf32> to vector<8x8xf32>
    %567 = tpu.concatenate %559, %560, %561, %562, %563, %564, %565, %566 in 0 : vector<8x8xf32>, vector<8x8xf32>, vector<8x8xf32>, vector<8x8xf32>, vector<8x8xf32>, vector<8x8xf32>, vector<8x8xf32>, vector<8x8xf32> -> vector<64x8xf32>
    %568 = arith.truncf %567 : vector<64x8xf32> to vector<64x8xbf16>
    %569 = vector.extract_strided_slice %548 {offsets = [0, 0], sizes = [8, 8], strides = [1, 1]} : vector<16x32xf32> to vector<8x8xf32>
    %570 = vector.extract_strided_slice %548 {offsets = [0, 8], sizes = [8, 8], strides = [1, 1]} : vector<16x32xf32> to vector<8x8xf32>
    %571 = vector.extract_strided_slice %548 {offsets = [0, 16], sizes = [8, 8], strides = [1, 1]} : vector<16x32xf32> to vector<8x8xf32>
    %572 = vector.extract_strided_slice %548 {offsets = [0, 24], sizes = [8, 8], strides = [1, 1]} : vector<16x32xf32> to vector<8x8xf32>
    %573 = vector.extract_strided_slice %548 {offsets = [8, 0], sizes = [8, 8], strides = [1, 1]} : vector<16x32xf32> to vector<8x8xf32>
    %574 = vector.extract_strided_slice %548 {offsets = [8, 8], sizes = [8, 8], strides = [1, 1]} : vector<16x32xf32> to vector<8x8xf32>
    %575 = vector.extract_strided_slice %548 {offsets = [8, 16], sizes = [8, 8], strides = [1, 1]} : vector<16x32xf32> to vector<8x8xf32>
    %576 = vector.extract_strided_slice %548 {offsets = [8, 24], sizes = [8, 8], strides = [1, 1]} : vector<16x32xf32> to vector<8x8xf32>
    %577 = tpu.concatenate %569, %570, %571, %572, %573, %574, %575, %576 in 0 : vector<8x8xf32>, vector<8x8xf32>, vector<8x8xf32>, vector<8x8xf32>, vector<8x8xf32>, vector<8x8xf32>, vector<8x8xf32>, vector<8x8xf32> -> vector<64x8xf32>
    %578 = arith.truncf %577 : vector<64x8xf32> to vector<64x8xbf16>
    %cst_117 = arith.constant dense<0.000000e+00> : vector<64x64xf32>
    %579 = tpu.matmul %558, %568, %cst_117 {dimension_numbers = #tpu.dot_dimension_numbers<[1], [1], [0], [0], [0, 0, 1, 0], [], []>} : vector<64x8xbf16>, vector<64x8xbf16>, vector<64x64xf32> -> vector<64x64xf32>
    %cst_118 = arith.constant 0.353553385 : f32
    %580 = vector.broadcast %cst_118 : f32 to vector<64x64xf32>
    %581 = arith.mulf %579, %580 : vector<64x64xf32>
    %582 = arith.addf %581, %5 : vector<64x64xf32>
    %cst_119 = arith.constant dense<0xFF800000> : vector<64xf32>
    %583 = vector.multi_reduction <maximumf>, %582, %cst_119 [1] : vector<64x64xf32> to vector<64xf32>
    %584 = vector.shape_cast %583 : vector<64xf32> to vector<64x1xf32>
    %585 = vector.broadcast %584 : vector<64x1xf32> to vector<64x64xf32>
    %586 = arith.subf %582, %585 : vector<64x64xf32>
    %587 = math.exp %586 : vector<64x64xf32>
    %cst_120 = arith.constant dense<0.000000e+00> : vector<64xf32>
    %588 = vector.multi_reduction <add>, %587, %cst_120 [1] : vector<64x64xf32> to vector<64xf32>
    %589 = vector.shape_cast %588 : vector<64xf32> to vector<64x1xf32>
    %590 = tpu.reciprocal %589 {approx = true} : vector<64x1xf32> -> vector<64x1xf32>
    %591 = vector.broadcast %590 : vector<64x1xf32> to vector<64x64xf32>
    %592 = arith.mulf %587, %591 : vector<64x64xf32>
    %593 = arith.truncf %592 : vector<64x64xf32> to vector<64x64xbf16>
    %cst_121 = arith.constant dense<0.000000e+00> : vector<64x8xf32>
    %594 = tpu.matmul %593, %578, %cst_121 {dimension_numbers = #tpu.dot_dimension_numbers<[1], [0], [0], [1], [0, 0, 1, 1], [], []>} : vector<64x64xbf16>, vector<64x8xbf16>, vector<64x8xf32> -> vector<64x8xf32>
    %595 = vector.extract_strided_slice %594 {offsets = [0, 0], sizes = [8, 8], strides = [1, 1]} : vector<64x8xf32> to vector<8x8xf32>
    %596 = vector.extract_strided_slice %594 {offsets = [8, 0], sizes = [8, 8], strides = [1, 1]} : vector<64x8xf32> to vector<8x8xf32>
    %597 = vector.extract_strided_slice %594 {offsets = [16, 0], sizes = [8, 8], strides = [1, 1]} : vector<64x8xf32> to vector<8x8xf32>
    %598 = vector.extract_strided_slice %594 {offsets = [24, 0], sizes = [8, 8], strides = [1, 1]} : vector<64x8xf32> to vector<8x8xf32>
    %599 = tpu.concatenate %595, %596, %597, %598 in 1 : vector<8x8xf32>, vector<8x8xf32>, vector<8x8xf32>, vector<8x8xf32> -> vector<8x32xf32>
    %600 = vector.extract_strided_slice %594 {offsets = [32, 0], sizes = [8, 8], strides = [1, 1]} : vector<64x8xf32> to vector<8x8xf32>
    %601 = vector.extract_strided_slice %594 {offsets = [40, 0], sizes = [8, 8], strides = [1, 1]} : vector<64x8xf32> to vector<8x8xf32>
    %602 = vector.extract_strided_slice %594 {offsets = [48, 0], sizes = [8, 8], strides = [1, 1]} : vector<64x8xf32> to vector<8x8xf32>
    %603 = vector.extract_strided_slice %594 {offsets = [56, 0], sizes = [8, 8], strides = [1, 1]} : vector<64x8xf32> to vector<8x8xf32>
    %604 = tpu.concatenate %600, %601, %602, %603 in 1 : vector<8x8xf32>, vector<8x8xf32>, vector<8x8xf32>, vector<8x8xf32> -> vector<8x32xf32>
    %605 = tpu.concatenate %599, %604 in 0 : vector<8x32xf32>, vector<8x32xf32> -> vector<16x32xf32>
    %606 = arith.truncf %545 : vector<16x32xf32> to vector<16x32xbf16>
    %c1_122 = arith.constant 1 : index
    %c0_123 = arith.constant 0 : index
    %c0_124 = arith.constant 0 : index
    %607 = vector.load %arg11[%c1_122, %c0_123, %c0_124] : memref<2x32x32xbf16, #tpu.memory_space<vmem>>, vector<1x32x32xbf16>
    %608 = vector.shape_cast %607 : vector<1x32x32xbf16> to vector<32x32xbf16>
    %cst_125 = arith.constant dense<0.000000e+00> : vector<16x32xf32>
    %609 = tpu.matmul %606, %608, %cst_125 {dimension_numbers = #tpu.dot_dimension_numbers<[1], [0], [0], [1], [0, 0, 1, 1], [], []>} : vector<16x32xbf16>, vector<32x32xbf16>, vector<16x32xf32> -> vector<16x32xf32>
    %610 = arith.truncf %605 : vector<16x32xf32> to vector<16x32xbf16>
    %c1_126 = arith.constant 1 : index
    %c0_127 = arith.constant 0 : index
    %c0_128 = arith.constant 0 : index
    %611 = vector.load %arg12[%c1_126, %c0_127, %c0_128] : memref<2x32x32xbf16, #tpu.memory_space<vmem>>, vector<1x32x32xbf16>
    %612 = vector.shape_cast %611 : vector<1x32x32xbf16> to vector<32x32xbf16>
    %cst_129 = arith.constant dense<0.000000e+00> : vector<16x32xf32>
    %613 = tpu.matmul %610, %612, %cst_129 {dimension_numbers = #tpu.dot_dimension_numbers<[1], [0], [0], [1], [0, 0, 1, 1], [], []>} : vector<16x32xbf16>, vector<32x32xbf16>, vector<16x32xf32> -> vector<16x32xf32>
    %614 = arith.addf %609, %613 : vector<16x32xf32>
    %615 = vector.extract_strided_slice %353 {offsets = [5, 0], sizes = [1, 32], strides = [1, 1]} : vector<14x128xf32> to vector<1x32xf32>
    %616 = vector.shape_cast %615 : vector<1x32xf32> to vector<32xf32>
    %617 = vector.shape_cast %616 : vector<32xf32> to vector<1x32xf32>
    %618 = vector.broadcast %617 : vector<1x32xf32> to vector<16x32xf32>
    %619 = arith.addf %614, %618 : vector<16x32xf32>
    %620 = arith.addf %460, %619 : vector<16x32xf32>
    %621 = vector.extract_strided_slice %353 {offsets = [10, 0], sizes = [1, 32], strides = [1, 1]} : vector<14x128xf32> to vector<1x32xf32>
    %622 = vector.shape_cast %621 : vector<1x32xf32> to vector<32xf32>
    %623 = vector.extract_strided_slice %353 {offsets = [11, 0], sizes = [1, 32], strides = [1, 1]} : vector<14x128xf32> to vector<1x32xf32>
    %624 = vector.shape_cast %623 : vector<1x32xf32> to vector<32xf32>
    %cst_130 = arith.constant dense<0.000000e+00> : vector<16xf32>
    %625 = vector.multi_reduction <add>, %620, %cst_130 [1] : vector<16x32xf32> to vector<16xf32>
    %626 = vector.shape_cast %625 : vector<16xf32> to vector<16x1xf32>
    %cst_131 = arith.constant 3.200000e+01 : f32
    %627 = vector.broadcast %cst_131 : f32 to vector<16x1xf32>
    %628 = arith.divf %626, %627 : vector<16x1xf32>
    %629 = arith.mulf %620, %620 : vector<16x32xf32>
    %cst_132 = arith.constant dense<0.000000e+00> : vector<16xf32>
    %630 = vector.multi_reduction <add>, %629, %cst_132 [1] : vector<16x32xf32> to vector<16xf32>
    %631 = vector.shape_cast %630 : vector<16xf32> to vector<16x1xf32>
    %cst_133 = arith.constant 3.200000e+01 : f32
    %632 = vector.broadcast %cst_133 : f32 to vector<16x1xf32>
    %633 = arith.divf %631, %632 : vector<16x1xf32>
    %634 = arith.mulf %628, %628 : vector<16x1xf32>
    %635 = arith.subf %633, %634 : vector<16x1xf32>
    %636 = vector.broadcast %628 : vector<16x1xf32> to vector<16x32xf32>
    %637 = arith.subf %620, %636 : vector<16x32xf32>
    %cst_134 = arith.constant 9.99999974E-6 : f32
    %638 = vector.broadcast %cst_134 : f32 to vector<16x1xf32>
    %639 = arith.addf %635, %638 : vector<16x1xf32>
    %640 = math.rsqrt %639 : vector<16x1xf32>
    %641 = vector.broadcast %640 : vector<16x1xf32> to vector<16x32xf32>
    %642 = arith.mulf %637, %641 : vector<16x32xf32>
    %643 = vector.shape_cast %622 : vector<32xf32> to vector<1x32xf32>
    %644 = vector.broadcast %643 : vector<1x32xf32> to vector<16x32xf32>
    %645 = arith.mulf %642, %644 : vector<16x32xf32>
    %646 = vector.shape_cast %624 : vector<32xf32> to vector<1x32xf32>
    %647 = vector.broadcast %646 : vector<1x32xf32> to vector<16x32xf32>
    %648 = arith.addf %645, %647 : vector<16x32xf32>
    %649 = arith.truncf %648 : vector<16x32xf32> to vector<16x32xbf16>
    %c1_135 = arith.constant 1 : index
    %c0_136 = arith.constant 0 : index
    %c0_137 = arith.constant 0 : index
    %650 = vector.load %arg13[%c1_135, %c0_136, %c0_137] : memref<2x32x64xbf16, #tpu.memory_space<vmem>>, vector<1x32x64xbf16>
    %651 = vector.shape_cast %650 : vector<1x32x64xbf16> to vector<32x64xbf16>
    %cst_138 = arith.constant dense<0.000000e+00> : vector<16x64xf32>
    %652 = tpu.matmul %649, %651, %cst_138 {dimension_numbers = #tpu.dot_dimension_numbers<[1], [0], [0], [1], [0, 0, 1, 1], [], []>} : vector<16x32xbf16>, vector<32x64xbf16>, vector<16x64xf32> -> vector<16x64xf32>
    %653 = vector.extract_strided_slice %353 {offsets = [6, 0], sizes = [1, 64], strides = [1, 1]} : vector<14x128xf32> to vector<1x64xf32>
    %654 = vector.shape_cast %653 : vector<1x64xf32> to vector<64xf32>
    %655 = vector.shape_cast %654 : vector<64xf32> to vector<1x64xf32>
    %656 = vector.broadcast %655 : vector<1x64xf32> to vector<16x64xf32>
    %657 = arith.addf %652, %656 : vector<16x64xf32>
    %cst_139 = arith.constant 0.000000e+00 : f32
    %658 = vector.broadcast %cst_139 : f32 to vector<16x64xf32>
    %659 = arith.maximumf %657, %658 : vector<16x64xf32>
    %660 = arith.truncf %659 : vector<16x64xf32> to vector<16x64xbf16>
    %c1_140 = arith.constant 1 : index
    %c0_141 = arith.constant 0 : index
    %c0_142 = arith.constant 0 : index
    %661 = vector.load %arg14[%c1_140, %c0_141, %c0_142] : memref<2x64x32xbf16, #tpu.memory_space<vmem>>, vector<1x64x32xbf16>
    %662 = vector.shape_cast %661 : vector<1x64x32xbf16> to vector<64x32xbf16>
    %cst_143 = arith.constant dense<0.000000e+00> : vector<16x32xf32>
    %663 = tpu.matmul %660, %662, %cst_143 {dimension_numbers = #tpu.dot_dimension_numbers<[1], [0], [0], [1], [0, 0, 1, 1], [], []>} : vector<16x64xbf16>, vector<64x32xbf16>, vector<16x32xf32> -> vector<16x32xf32>
    %664 = vector.extract_strided_slice %353 {offsets = [7, 0], sizes = [1, 32], strides = [1, 1]} : vector<14x128xf32> to vector<1x32xf32>
    %665 = vector.shape_cast %664 : vector<1x32xf32> to vector<32xf32>
    %666 = vector.shape_cast %665 : vector<32xf32> to vector<1x32xf32>
    %667 = vector.broadcast %666 : vector<1x32xf32> to vector<16x32xf32>
    %668 = arith.addf %663, %667 : vector<16x32xf32>
    %669 = arith.addf %648, %668 : vector<16x32xf32>
    %670 = vector.extract_strided_slice %353 {offsets = [12, 0], sizes = [1, 32], strides = [1, 1]} : vector<14x128xf32> to vector<1x32xf32>
    %671 = vector.shape_cast %670 : vector<1x32xf32> to vector<32xf32>
    %672 = vector.extract_strided_slice %353 {offsets = [13, 0], sizes = [1, 32], strides = [1, 1]} : vector<14x128xf32> to vector<1x32xf32>
    %673 = vector.shape_cast %672 : vector<1x32xf32> to vector<32xf32>
    %cst_144 = arith.constant dense<0.000000e+00> : vector<16xf32>
    %674 = vector.multi_reduction <add>, %669, %cst_144 [1] : vector<16x32xf32> to vector<16xf32>
    %675 = vector.shape_cast %674 : vector<16xf32> to vector<16x1xf32>
    %cst_145 = arith.constant 3.200000e+01 : f32
    %676 = vector.broadcast %cst_145 : f32 to vector<16x1xf32>
    %677 = arith.divf %675, %676 : vector<16x1xf32>
    %678 = arith.mulf %669, %669 : vector<16x32xf32>
    %cst_146 = arith.constant dense<0.000000e+00> : vector<16xf32>
    %679 = vector.multi_reduction <add>, %678, %cst_146 [1] : vector<16x32xf32> to vector<16xf32>
    %680 = vector.shape_cast %679 : vector<16xf32> to vector<16x1xf32>
    %cst_147 = arith.constant 3.200000e+01 : f32
    %681 = vector.broadcast %cst_147 : f32 to vector<16x1xf32>
    %682 = arith.divf %680, %681 : vector<16x1xf32>
    %683 = arith.mulf %677, %677 : vector<16x1xf32>
    %684 = arith.subf %682, %683 : vector<16x1xf32>
    %685 = vector.broadcast %677 : vector<16x1xf32> to vector<16x32xf32>
    %686 = arith.subf %669, %685 : vector<16x32xf32>
    %cst_148 = arith.constant 9.99999974E-6 : f32
    %687 = vector.broadcast %cst_148 : f32 to vector<16x1xf32>
    %688 = arith.addf %684, %687 : vector<16x1xf32>
    %689 = math.rsqrt %688 : vector<16x1xf32>
    %690 = vector.broadcast %689 : vector<16x1xf32> to vector<16x32xf32>
    %691 = arith.mulf %686, %690 : vector<16x32xf32>
    %692 = vector.shape_cast %671 : vector<32xf32> to vector<1x32xf32>
    %693 = vector.broadcast %692 : vector<1x32xf32> to vector<16x32xf32>
    %694 = arith.mulf %691, %693 : vector<16x32xf32>
    %695 = vector.shape_cast %673 : vector<32xf32> to vector<1x32xf32>
    %696 = vector.broadcast %695 : vector<1x32xf32> to vector<16x32xf32>
    %697 = arith.addf %694, %696 : vector<16x32xf32>
    %c0_149 = arith.constant 0 : index
    %c0_150 = arith.constant 0 : index
    %698 = vector.load %arg16[%c0_149, %c0_150] : memref<16x32xf32, #tpu.memory_space<vmem>>, vector<16x32xf32>
    tpu.vector_store %arg16[%c0_149, %c0_150], %697 {strides = array<i32>} : memref<16x32xf32, #tpu.memory_space<vmem>>, vector<16x32xf32>,
    return
  }
}

</mosaic_0001>

<llo_original>
// kernel: tpu_custom_call.1
$region0: #{tpu_custom_call.1}
  #allocation0 [shape = 'u32[]', space=smem, size = 0x4, offset = 0x4, fixed_abs, tag = 'smem constant byte address 0x4 - core index']
  #allocation1 [shape = 'u32[144,128]{1,0:T(1,128)}', space=vmem, size = 0x12000, scoped, tag = 'internal scratch']
  %s0 = inlined_call_operand.hbm [shape: f32[16,32], index: 0, kind: input, shape index: {}]
  %s1 = inlined_call_operand.hbm [shape: bf16[16,32], index: 1, kind: input, shape index: {}]
  %s2 = inlined_call_operand.hbm [shape: bf16[16,32], index: 2, kind: input, shape index: {}]
  %s3 = inlined_call_operand.vmem [shape: f32[64,64], index: 3, kind: input, shape index: {}]
  %s4 = inlined_call_operand.vmem [shape: f32[64,64], index: 4, kind: input, shape index: {}]
  %s5 = inlined_call_operand.hbm [shape: f32[64,64], index: 5, kind: input, shape index: {}]
  %s6 = inlined_call_operand.hbm [shape: bf16[2,32,96], index: 6, kind: input, shape index: {}]
  %s7 = inlined_call_operand.hbm [shape: bf16[2,32,64], index: 7, kind: input, shape index: {}]
  %s8 = inlined_call_operand.hbm [shape: bf16[2,32,64], index: 8, kind: input, shape index: {}]
  %s9 = inlined_call_operand.hbm [shape: bf16[2,32,64], index: 9, kind: input, shape index: {}]
  %s10 = inlined_call_operand.vmem [shape: bf16[2,32,32], index: 10, kind: input, shape index: {}]
  %s11 = inlined_call_operand.hbm [shape: bf16[2,32,32], index: 11, kind: input, shape index: {}]
  %s12 = inlined_call_operand.hbm [shape: bf16[2,32,32], index: 12, kind: input, shape index: {}]
  %s13 = inlined_call_operand.hbm [shape: bf16[2,32,64], index: 13, kind: input, shape index: {}]
  %s14 = inlined_call_operand.vmem [shape: bf16[2,64,32], index: 14, kind: input, shape index: {}]
  %s15 = inlined_call_operand.vmem [shape: f32[2,14,128], index: 15, kind: input, shape index: {}]
  %s16 = inlined_call_operand.hbm [shape: f32[16,32], index: 16, kind: output, shape index: {}]
  %s17 = sld [smem:[#allocation0]]
  $region118: #{tpu_custom_call.1} parent=0
    _
  %s19 = ssub.s32 1, %s17
  %s20 = scalar_select 0, %s19, %s17
  $region1: #{tpu_custom_call.1} parent=0
    #allocation2 [shape = 'u8[8192]{0}', space=vmem, size = 0x2000, scoped, tag = 'input window, operand 0, single buffered']
    #allocation3 [shape = 's32[1]{0}', space=sflag, size = 0x4, scoped, tag = 'scoped memory for tpu_custom_call.1']
    #allocation4 [shape = 's32[1]{0}', space=sflag, size = 0x4, scoped, tag = 'scoped memory for tpu_custom_call.1']
    #allocation5 [shape = 'u8[4096]{0}', space=vmem, size = 0x1000, scoped, tag = 'input window, operand 1, single buffered']
    #allocation6 [shape = 's32[1]{0}', space=sflag, size = 0x4, scoped, tag = 'scoped memory for tpu_custom_call.1']
    #allocation7 [shape = 'u8[4096]{0}', space=vmem, size = 0x1000, scoped, tag = 'input window, operand 2, single buffered']
    #allocation8 [shape = 'u8[32768]{0}', space=vmem, size = 0x8000, scoped, tag = 'input window, operand 5, single buffered']
    #allocation9 [shape = 's32[1]{0}', space=sflag, size = 0x4, scoped, tag = 'scoped memory for tpu_custom_call.1']
    #allocation10 [shape = 'u8[16384]{0}', space=vmem, size = 0x4000, scoped, tag = 'input window, operand 6, single buffered']
    #allocation11 [shape = 'u8[16384]{0}', space=vmem, size = 0x4000, scoped, tag = 'input window, operand 7, single buffered']
    #allocation12 [shape = 's32[1]{0}', space=sflag, size = 0x4, scoped, tag = 'scoped memory for tpu_custom_call.1']
    #allocation13 [shape = 'u8[16384]{0}', space=vmem, size = 0x4000, scoped, tag = 'input window, operand 8, single buffered']
    #allocation14 [shape = 'u8[16384]{0}', space=vmem, size = 0x4000, scoped, tag = 'input window, operand 9, single buffered']
    #allocation15 [shape = 's32[1]{0}', space=sflag, size = 0x4, scoped, tag = 'scoped memory for tpu_custom_call.1']
    #allocation16 [shape = 'u8[16384]{0}', space=vmem, size = 0x4000, scoped, tag = 'input window, operand 11, single buffered']
    #allocation17 [shape = 'u8[16384]{0}', space=vmem, size = 0x4000, scoped, tag = 'input window, operand 12, single buffered']
    #allocation18 [shape = 's32[1]{0}', space=sflag, size = 0x4, scoped, tag = 'scoped memory for tpu_custom_call.1']
    #allocation19 [shape = 'u8[16384]{0}', space=vmem, size = 0x4000, scoped, tag = 'input window, operand 13, single buffered']
    #allocation20 [shape = 'u8[8192]{0}', space=vmem, size = 0x2000, scoped, tag = 'output window, operand 0, single buffered']
    %21 = vsyncpa [#allocation3], 0
    %22 = vsyncpa [#allocation6], 0
    %23 = vsyncpa [#allocation9], 0
    %24 = vsyncpa [#allocation12], 0
    %25 = vsyncpa [#allocation15], 0
    %26 = vsyncpa [#allocation18], 0
    %27 = vsyncpa [#allocation4], 0
    // Predicated region
    $region2: #{tpu_custom_call.1} parent=1 // pred_check
      _
    $region3: #{tpu_custom_call.1} parent=1 // pred_check_branch
      %29 = sbr.rel (0) target = $region5
    $region4: #{tpu_custom_call.1} parent=1 // pred_region
      %s31 = ssub.s32 256, 256
      %32 = vsyncadd [#allocation3], %s31
      %s33 = sshll.u32 [#allocation2], 4
      %s34 = int_to_ptr.vmem [resolvable:$true] %s33
      %39 = dma.hbm_to_vmem [thread:$0]  %s0, 256, %s34, [#allocation3], 128, 128, 8
    $region5: #{tpu_custom_call.1} parent=1 // pred_fallthru
      _
    // Predicated region
    $region6: #{tpu_custom_call.1} parent=1 // pred_check
      _
    $region7: #{tpu_custom_call.1} parent=1 // pred_check_branch
      %41 = sbr.rel (0) target = $region9
    $region8: #{tpu_custom_call.1} parent=1 // pred_region
      %s43 = ssub.s32 128, 128
      %44 = vsyncadd [#allocation6], %s43
      %s45 = sshll.u32 [#allocation5], 4
      %s46 = int_to_ptr.vmem [resolvable:$true] %s45
      %51 = dma.hbm_to_vmem [thread:$0]  %s1, 128, %s46, [#allocation6], 64, 64, 4
    $region9: #{tpu_custom_call.1} parent=1 // pred_fallthru
      _
    // Predicated region
    $region10: #{tpu_custom_call.1} parent=1 // pred_check
      _
    $region11: #{tpu_custom_call.1} parent=1 // pred_check_branch
      %53 = sbr.rel (0) target = $region13
    $region12: #{tpu_custom_call.1} parent=1 // pred_region
      %s55 = ssub.s32 128, 128
      %56 = vsyncadd [#allocation6], %s55
      %s57 = sshll.u32 [#allocation7], 4
      %s58 = int_to_ptr.vmem [resolvable:$true] %s57
      %63 = dma.hbm_to_vmem [thread:$0]  %s2, 128, %s58, [#allocation6], 64, 64, 4
    $region13: #{tpu_custom_call.1} parent=1 // pred_fallthru
      _
    // Predicated region
    $region14: #{tpu_custom_call.1} parent=1 // pred_check
      _
    $region15: #{tpu_custom_call.1} parent=1 // pred_check_branch
      %65 = sbr.rel (0) target = $region17
    $region16: #{tpu_custom_call.1} parent=1 // pred_region
      _
    $region17: #{tpu_custom_call.1} parent=1 // pred_fallthru
      _
    // Predicated region
    $region18: #{tpu_custom_call.1} parent=1 // pred_check
      _
    $region19: #{tpu_custom_call.1} parent=1 // pred_check_branch
      %67 = sbr.rel (0) target = $region21
    $region20: #{tpu_custom_call.1} parent=1 // pred_region
      _
    $region21: #{tpu_custom_call.1} parent=1 // pred_fallthru
      _
    // Predicated region
    $region22: #{tpu_custom_call.1} parent=1 // pred_check
      _
    $region23: #{tpu_custom_call.1} parent=1 // pred_check_branch
      %69 = sbr.rel (0) target = $region25
    $region24: #{tpu_custom_call.1} parent=1 // pred_region
      %s71 = ssub.s32 1024, 1024
      %72 = vsyncadd [#allocation9], %s71
      %s73 = sshll.u32 [#allocation8], 4
      %s74 = int_to_ptr.vmem [resolvable:$true] %s73
      %79 = dma.hbm_to_vmem [thread:$0]  %s5, 1024, %s74, [#allocation9], 128, 128, 8
    $region25: #{tpu_custom_call.1} parent=1 // pred_fallthru
      _
    // Predicated region
    $region26: #{tpu_custom_call.1} parent=1 // pred_check
      _
    $region27: #{tpu_custom_call.1} parent=1 // pred_check_branch
      %81 = sbr.rel (0) target = $region29
    $region28: #{tpu_custom_call.1} parent=1 // pred_region
      %s83 = ssub.s32 512, 512
      %84 = vsyncadd [#allocation9], %s83
      %s85 = sshll.u32 [#allocation10], 4
      %s86 = int_to_ptr.vmem [resolvable:$true] %s85
      %91 = dma.hbm_to_vmem [thread:$0]  %s6, 512, %s86, [#allocation9], 64, 64, 4
    $region29: #{tpu_custom_call.1} parent=1 // pred_fallthru
      _
    // Predicated region
    $region30: #{tpu_custom_call.1} parent=1 // pred_check
      _
    $region31: #{tpu_custom_call.1} parent=1 // pred_check_branch
      %93 = sbr.rel (0) target = $region33
    $region32: #{tpu_custom_call.1} parent=1 // pred_region
      %s95 = ssub.s32 512, 512
      %96 = vsyncadd [#allocation12], %s95
      %s97 = sshll.u32 [#allocation11], 4
      %s98 = int_to_ptr.vmem [resolvable:$true] %s97
      %103 = dma.hbm_to_vmem [thread:$0]  %s7, 512, %s98, [#allocation12], 64, 64, 4
    $region33: #{tpu_custom_call.1} parent=1 // pred_fallthru
      _
    // Predicated region
    $region34: #{tpu_custom_call.1} parent=1 // pred_check
      _
    $region35: #{tpu_custom_call.1} parent=1 // pred_check_branch
      %105 = sbr.rel (0) target = $region37
    $region36: #{tpu_custom_call.1} parent=1 // pred_region
      %s107 = ssub.s32 512, 512
      %108 = vsyncadd [#allocation12], %s107
      %s109 = sshll.u32 [#allocation13], 4
      %s110 = int_to_ptr.vmem [resolvable:$true] %s109
      %115 = dma.hbm_to_vmem [thread:$0]  %s8, 512, %s110, [#allocation12], 64, 64, 4
    $region37: #{tpu_custom_call.1} parent=1 // pred_fallthru
      _
    // Predicated region
    $region38: #{tpu_custom_call.1} parent=1 // pred_check
      _
    $region39: #{tpu_custom_call.1} parent=1 // pred_check_branch
      %117 = sbr.rel (0) target = $region41
    $region40: #{tpu_custom_call.1} parent=1 // pred_region
      %s119 = ssub.s32 512, 512
      %120 = vsyncadd [#allocation15], %s119
      %s121 = sshll.u32 [#allocation14], 4
      %s122 = int_to_ptr.vmem [resolvable:$true] %s121
      %127 = dma.hbm_to_vmem [thread:$0]  %s9, 512, %s122, [#allocation15], 64, 64, 4
    $region41: #{tpu_custom_call.1} parent=1 // pred_fallthru
      _
    // Predicated region
    $region42: #{tpu_custom_call.1} parent=1 // pred_check
      _
    $region43: #{tpu_custom_call.1} parent=1 // pred_check_branch
      %129 = sbr.rel (0) target = $region45
    $region44: #{tpu_custom_call.1} parent=1 // pred_region
      _
    $region45: #{tpu_custom_call.1} parent=1 // pred_fallthru
      _
    // Predicated region
    $region46: #{tpu_custom_call.1} parent=1 // pred_check
      _
    $region47: #{tpu_custom_call.1} parent=1 // pred_check_branch
      %131 = sbr.rel (0) target = $region49
    $region48: #{tpu_custom_call.1} parent=1 // pred_region
      %s133 = ssub.s32 512, 512
      %134 = vsyncadd [#allocation15], %s133
      %s135 = sshll.u32 [#allocation16], 4
      %s136 = int_to_ptr.vmem [resolvable:$true] %s135
      %141 = dma.hbm_to_vmem [thread:$0]  %s11, 512, %s136, [#allocation15], 64, 64, 4
    $region49: #{tpu_custom_call.1} parent=1 // pred_fallthru
      _
    // Predicated region
    $region50: #{tpu_custom_call.1} parent=1 // pred_check
      _
    $region51: #{tpu_custom_call.1} parent=1 // pred_check_branch
      %143 = sbr.rel (0) target = $region53
    $region52: #{tpu_custom_call.1} parent=1 // pred_region
      %s145 = ssub.s32 512, 512
      %146 = vsyncadd [#allocation18], %s145
      %s147 = sshll.u32 [#allocation17], 4
      %s148 = int_to_ptr.vmem [resolvable:$true] %s147
      %153 = dma.hbm_to_vmem [thread:$0]  %s12, 512, %s148, [#allocation18], 64, 64, 4
    $region53: #{tpu_custom_call.1} parent=1 // pred_fallthru
      _
    // Predicated region
    $region54: #{tpu_custom_call.1} parent=1 // pred_check
      _
    $region55: #{tpu_custom_call.1} parent=1 // pred_check_branch
      %155 = sbr.rel (0) target = $region57
    $region56: #{tpu_custom_call.1} parent=1 // pred_region
      %s157 = ssub.s32 512, 512
      %158 = vsyncadd [#allocation18], %s157
      %s159 = sshll.u32 [#allocation19], 4
      %s160 = int_to_ptr.vmem [resolvable:$true] %s159
      %165 = dma.hbm_to_vmem [thread:$0]  %s13, 512, %s160, [#allocation18], 64, 64, 4
    $region57: #{tpu_custom_call.1} parent=1 // pred_fallthru
      _
    // Predicated region
    $region58: #{tpu_custom_call.1} parent=1 // pred_check
      _
    $region59: #{tpu_custom_call.1} parent=1 // pred_check_branch
      %167 = sbr.rel (0) target = $region61
    $region60: #{tpu_custom_call.1} parent=1 // pred_region
      _
    $region61: #{tpu_custom_call.1} parent=1 // pred_fallthru
      _
    // Predicated region
    $region62: #{tpu_custom_call.1} parent=1 // pred_check
      _
    $region63: #{tpu_custom_call.1} parent=1 // pred_check_branch
      %169 = sbr.rel (0) target = $region65
    $region64: #{tpu_custom_call.1} parent=1 // pred_region
      _
    $region65: #{tpu_custom_call.1} parent=1 // pred_fallthru
      _
    // Predicated region
    $region66: #{tpu_custom_call.1} parent=1 // pred_check
      _
    $region67: #{tpu_custom_call.1} parent=1 // pred_check_branch
      %171 = sbr.rel (0) target = $region69
    $region68: #{tpu_custom_call.1} parent=1 // pred_region
      %172 = dma.done [#allocation3], 256
    $region69: #{tpu_custom_call.1} parent=1 // pred_fallthru
      _
    // Predicated region
    $region70: #{tpu_custom_call.1} parent=1 // pred_check
      _
    $region71: #{tpu_custom_call.1} parent=1 // pred_check_branch
      %174 = sbr.rel (0) target = $region73
    $region72: #{tpu_custom_call.1} parent=1 // pred_region
      %175 = dma.done [#allocation6], 128
    $region73: #{tpu_custom_call.1} parent=1 // pred_fallthru
      _
    // Predicated region
    $region74: #{tpu_custom_call.1} parent=1 // pred_check
      _
    $region75: #{tpu_custom_call.1} parent=1 // pred_check_branch
      %177 = sbr.rel (0) target = $region77
    $region76: #{tpu_custom_call.1} parent=1 // pred_region
      %178 = dma.done [#allocation6], 128
    $region77: #{tpu_custom_call.1} parent=1 // pred_fallthru
      _
    // Predicated region
    $region78: #{tpu_custom_call.1} parent=1 // pred_check
      _
    $region79: #{tpu_custom_call.1} parent=1 // pred_check_branch
      %180 = sbr.rel (0) target = $region81
    $region80: #{tpu_custom_call.1} parent=1 // pred_region
      %181 = dma.done [#allocation9], 1024
    $region81: #{tpu_custom_call.1} parent=1 // pred_fallthru
      _
    // Predicated region
    $region82: #{tpu_custom_call.1} parent=1 // pred_check
      _
    $region83: #{tpu_custom_call.1} parent=1 // pred_check_branch
      %183 = sbr.rel (0) target = $region85
    $region84: #{tpu_custom_call.1} parent=1 // pred_region
      %184 = dma.done [#allocation9], 512
    $region85: #{tpu_custom_call.1} parent=1 // pred_fallthru
      _
    // Predicated region
    $region86: #{tpu_custom_call.1} parent=1 // pred_check
      _
    $region87: #{tpu_custom_call.1} parent=1 // pred_check_branch
      %186 = sbr.rel (0) target = $region89
    $region88: #{tpu_custom_call.1} parent=1 // pred_region
      %187 = dma.done [#allocation12], 512
    $region89: #{tpu_custom_call.1} parent=1 // pred_fallthru
      _
    // Predicated region
    $region90: #{tpu_custom_call.1} parent=1 // pred_check
      _
    $region91: #{tpu_custom_call.1} parent=1 // pred_check_branch
      %189 = sbr.rel (0) target = $region93
    $region92: #{tpu_custom_call.1} parent=1 // pred_region
      %190 = dma.done [#allocation12], 512
    $region93: #{tpu_custom_call.1} parent=1 // pred_fallthru
      _
    // Predicated region
    $region94: #{tpu_custom_call.1} parent=1 // pred_check
      _
    $region95: #{tpu_custom_call.1} parent=1 // pred_check_branch
      %192 = sbr.rel (0) target = $region97
    $region96: #{tpu_custom_call.1} parent=1 // pred_region
      %193 = dma.done [#allocation15], 512
    $region97: #{tpu_custom_call.1} parent=1 // pred_fallthru
      _
    // Predicated region
    $region98: #{tpu_custom_call.1} parent=1 // pred_check
      _
    $region99: #{tpu_custom_call.1} parent=1 // pred_check_branch
      %195 = sbr.rel (0) target = $region101
    $region100: #{tpu_custom_call.1} parent=1 // pred_region
      %196 = dma.done [#allocation15], 512
    $region101: #{tpu_custom_call.1} parent=1 // pred_fallthru
      _
    // Predicated region
    $region102: #{tpu_custom_call.1} parent=1 // pred_check
      _
    $region103: #{tpu_custom_call.1} parent=1 // pred_check_branch
      %198 = sbr.rel (0) target = $region105
    $region104: #{tpu_custom_call.1} parent=1 // pred_region
      %199 = dma.done [#allocation18], 512
    $region105: #{tpu_custom_call.1} parent=1 // pred_fallthru
      _
    // Predicated region
    $region106: #{tpu_custom_call.1} parent=1 // pred_check
      _
    $region107: #{tpu_custom_call.1} parent=1 // pred_check_branch
      %201 = sbr.rel (0) target = $region109
    $region108: #{tpu_custom_call.1} parent=1 // pred_region
      %202 = dma.done [#allocation18], 512
    $region109: #{tpu_custom_call.1} parent=1 // pred_fallthru
      _
    %v204 = vld [vmem:[#allocation2] sm:$0xff]
    %v205 = vld [vmem:[#allocation2 + $0x8] sm:$0xff]
    %v206 = vld [vmem:[#allocation5] sm:$0xf]
    %v207 = vld [vmem:[#allocation5 + $0x4] sm:$0xf]
    %v208 = vld [vmem:[#allocation7] sm:$0xf]
    %v209 = vld [vmem:[#allocation7 + $0x4] sm:$0xf]
    %v210 = vld [vmem:[%s3] sm:$0xff]
    %v211 = vld [vmem:[%s3 + $0x8] sm:$0xff]
    %v212 = vld [vmem:[%s3 + $0x10] sm:$0xff]
    %v213 = vld [vmem:[%s3 + $0x18] sm:$0xff]
    %v214 = vld [vmem:[%s3 + $0x20] sm:$0xff]
    %v215 = vld [vmem:[%s3 + $0x28] sm:$0xff]
    %v216 = vld [vmem:[%s3 + $0x30] sm:$0xff]
    %v217 = vld [vmem:[%s3 + $0x38] sm:$0xff]
    %v218 = vld [vmem:[%s4] sm:$0xff]
    %v219 = vld [vmem:[%s4 + $0x8] sm:$0xff]
    %v220 = vld [vmem:[%s4 + $0x10] sm:$0xff]
    %v221 = vld [vmem:[%s4 + $0x18] sm:$0xff]
    %v222 = vld [vmem:[%s4 + $0x20] sm:$0xff]
    %v223 = vld [vmem:[%s4 + $0x28] sm:$0xff]
    %v224 = vld [vmem:[%s4 + $0x30] sm:$0xff]
    %v225 = vld [vmem:[%s4 + $0x38] sm:$0xff]
    %v226 = vld [vmem:[#allocation8] sm:$0xff]
    %v227 = vld [vmem:[#allocation8 + $0x8] sm:$0xff]
    %v228 = vld [vmem:[#allocation8 + $0x10] sm:$0xff]
    %v229 = vld [vmem:[#allocation8 + $0x18] sm:$0xff]
    %v230 = vld [vmem:[#allocation8 + $0x20] sm:$0xff]
    %v231 = vld [vmem:[#allocation8 + $0x28] sm:$0xff]
    %v232 = vld [vmem:[#allocation8 + $0x30] sm:$0xff]
    %v233 = vld [vmem:[#allocation8 + $0x38] sm:$0xff]
    %v234 = vld [vmem:[%s15] sm:$0xff]
    %v235 = vld [vmem:[%s15 + $0x8] sm:$0x3f]
    %v236 = vpack.c.bf16 %v205, %v204
    %v237 = vld [vmem:[#allocation10] sm:$0xf]
    %v238 = vld [vmem:[#allocation10 + $0x4] sm:$0xf]
    %v239 = vld [vmem:[#allocation10 + $0x8] sm:$0xf]
    %v240 = vld [vmem:[#allocation10 + $0xc] sm:$0xf]
    %v241 = vlaneseq
    %v242 = vshrl.u32 %v241, 7
    %v243 = vsub.s32 0, %v242
    %v244 = vrot.slane %v234, %v243
    %v249 = vunpack.c.l.b16 %v237
    %v250 = vunpack.c.l.b16 %v238
    %v251 = vunpack.c.l.b16 %v239
    %v252 = vunpack.c.l.b16 %v240
    %v253 = vpack.c.b16 %v250, %v249
    %v254 = vpack.c.b16 %v252, %v251
    %vm257 = vcmask 261120
    %v259 = vsel %vm257, %v236, 0
    %261 = vmatprep.subr.bf16.mxu0 0
    %262 = vmatpush1.bf16.msra.mxu0 %v253
    %263 = vmatprep.subr.bf16.mxu0 0
    %264 = vmatpush1.bf16.msra.mxu0 %v254
    %265 = vmatprep.subr.bf16.mxu0 0
    %266 = vmatpush1.bf16.msra.mxu0 0
    %267 = vmatprep.subr.bf16.mxu0 0
    %268 = vmatpush1.bf16.msra.mxu0 0
    %269 = vmatprep.subr.bf16.mxu0 0
    %270 = vmatpush1.bf16.msra.mxu0 0
    %271 = vmatprep.subr.bf16.mxu0 0
    %272 = vmatpush1.bf16.msra.mxu0 0
    %273 = vmatprep.subr.bf16.mxu0 0
    %274 = vmatpush1.bf16.msra.mxu0 0
    %275 = vmatprep.subr.bf16.mxu0 0
    %276 = vmatpush1.bf16.msra.mxu0 0
    %277 = vmatprep.subr.bf16.mxu0 0
    %278 = vmatpush1.bf16.msra.mxu0 0
    %279 = vmatprep.subr.bf16.mxu0 0
    %280 = vmatpush1.bf16.msra.mxu0 0
    %281 = vmatprep.subr.bf16.mxu0 0
    %282 = vmatpush1.bf16.msra.mxu0 0
    %283 = vmatprep.subr.bf16.mxu0 0
    %284 = vmatpush1.bf16.msra.mxu0 0
    %285 = vmatprep.subr.bf16.mxu0 0
    %286 = vmatpush1.bf16.msra.mxu0 0
    %287 = vmatprep.subr.bf16.mxu0 0
    %288 = vmatpush1.bf16.msra.mxu0 0
    %289 = vmatprep.subr.bf16.mxu0 0
    %290 = vmatpush1.bf16.msra.mxu0 0
    %291 = vmatprep.subr.bf16.mxu0 0
    %292 = vmatpush1.bf16.msra.mxu0 0
    %293 = vmatprep.mubr.bf16.mxu0 0
    %294 = vmatmul.mubr.bf16.gmra.mrb[0].mxu0 %v259
    %v295 = vpop.f32.mrb[0].mxu0
    %v296 = vadd.f32 %v244, %v295
    %v297 = vpop.f32.mrb[0].mxu0
    %v298 = vpop.f32.mrb[0].mxu0
    %v299 = vadd.f32 %v244, %v298
    %v300 = vpop.f32.mrb[0].mxu0
    %301 = vdwg.mxu0
    %303 = vrot.lane.b32.xlu0 %v296, 120
    %v304 = vpop.permute.xlu0 %303
    %306 = vrot.lane.b32.xlu0 %v296, 112
    %v307 = vpop.permute.xlu0 %306
    %309 = vrot.lane.b32.xlu0 %v296, 104
    %v310 = vpop.permute.xlu0 %309
    %313 = vrot.lane.b32.xlu0 %v299, 120
    %v314 = vpop.permute.xlu0 %313
    %316 = vrot.lane.b32.xlu0 %v299, 112
    %v317 = vpop.permute.xlu0 %316
    %319 = vrot.lane.b32.xlu0 %v299, 104
    %v320 = vpop.permute.xlu0 %319
    %v322 = vpack.c.bf16 %v304, %v296
    %v323 = vpack.c.bf16 %v310, %v307
    %v324 = vpack.c.bf16 %v314, %v299
    %v325 = vpack.c.bf16 %v320, %v317
    %330 = vrot.lane.b32.xlu0 %v322, 96
    %v331 = vpop.permute.xlu0 %330
    %332 = vrot.lane.b32.xlu0 %v323, 96
    %v333 = vpop.permute.xlu0 %332
    %334 = vrot.lane.b32.xlu0 %v324, 96
    %v335 = vpop.permute.xlu0 %334
    %336 = vrot.lane.b32.xlu0 %v325, 96
    %v337 = vpop.permute.xlu0 %336
    %vm338 = vcmask 64512
    %v340 = vsel %vm338, %v322, 0
    %v343 = vsel %vm338, %v323, 0
    %v346 = vsel %vm338, %v324, 0
    %v349 = vsel %vm338, %v325, 0
    %v352 = vsel %vm338, %v331, 0
    %v355 = vsel %vm338, %v333, 0
    %v358 = vsel %vm338, %v335, 0
    %v361 = vsel %vm338, %v337, 0
    %363 = vmatprep.subr.bf16.mxu0 0
    %364 = vmatpush1.bf16.xpose.msra.mxu0 %v352
    %365 = vmatprep.subr.bf16.mxu0 0
    %366 = vmatpush1.bf16.xpose.msra.mxu0 %v355
    %367 = vmatprep.subr.bf16.mxu0 0
    %368 = vmatpush1.bf16.xpose.msra.mxu0 %v358
    %369 = vmatprep.subr.bf16.mxu0 0
    %370 = vmatpush1.bf16.xpose.msra.mxu0 %v361
    %371 = vmatprep.subr.bf16.mxu0 0
    %372 = vmatpush1.bf16.xpose.msra.mxu0 0
    %373 = vmatprep.subr.bf16.mxu0 0
    %374 = vmatpush1.bf16.xpose.msra.mxu0 0
    %375 = vmatprep.subr.bf16.mxu0 0
    %376 = vmatpush1.bf16.xpose.msra.mxu0 0
    %377 = vmatprep.subr.bf16.mxu0 0
    %378 = vmatpush1.bf16.xpose.msra.mxu0 0
    %379 = vmatprep.subr.bf16.mxu0 0
    %380 = vmatpush1.bf16.xpose.msra.mxu0 0
    %381 = vmatprep.subr.bf16.mxu0 0
    %382 = vmatpush1.bf16.xpose.msra.mxu0 0
    %383 = vmatprep.subr.bf16.mxu0 0
    %384 = vmatpush1.bf16.xpose.msra.mxu0 0
    %385 = vmatprep.subr.bf16.mxu0 0
    %386 = vmatpush1.bf16.xpose.msra.mxu0 0
    %387 = vmatprep.subr.bf16.mxu0 0
    %388 = vmatpush1.bf16.xpose.msra.mxu0 0
    %389 = vmatprep.subr.bf16.mxu0 0
    %390 = vmatpush1.bf16.xpose.msra.mxu0 0
    %391 = vmatprep.subr.bf16.mxu0 0
    %392 = vmatpush1.bf16.xpose.msra.mxu0 0
    %393 = vmatprep.subr.bf16.mxu0 0
    %394 = vmatpush1.bf16.xpose.msra.mxu0 0
    %395 = vmatprep.mubr.bf16.mxu0 0
    %396 = vmatmul.mubr.bf16.gmra.mrb[0].mxu0 %v340
    %v397 = vpop.f32.mrb[0].mxu0
    %v398 = vadd.f32 0.0, %v397
    %v399 = vpop.f32.mrb[0].mxu0
    %v400 = vpop.f32.mrb[0].mxu0
    %v401 = vadd.f32 0.0, %v400
    %v402 = vpop.f32.mrb[0].mxu0
    %403 = vmatprep.mubr.bf16.mxu0 0
    %404 = vmatmul.mubr.bf16.gmra.mrb[0].mxu0 %v343
    %v405 = vpop.f32.mrb[0].mxu0
    %v406 = vadd.f32 0.0, %v405
    %v407 = vpop.f32.mrb[0].mxu0
    %v408 = vpop.f32.mrb[0].mxu0
    %v409 = vadd.f32 0.0, %v408
    %v410 = vpop.f32.mrb[0].mxu0
    %411 = vmatprep.mubr.bf16.mxu0 0
    %412 = vmatmul.mubr.bf16.gmra.mrb[0].mxu0 %v346
    %v413 = vpop.f32.mrb[0].mxu0
    %v414 = vadd.f32 0.0, %v413
    %v415 = vpop.f32.mrb[0].mxu0
    %v416 = vpop.f32.mrb[0].mxu0
    %v417 = vadd.f32 0.0, %v416
    %v418 = vpop.f32.mrb[0].mxu0
    %419 = vmatprep.mubr.bf16.mxu0 0
    %420 = vmatmul.mubr.bf16.gmra.mrb[0].mxu0 %v349
    %v421 = vpop.f32.mrb[0].mxu0
    %v422 = vadd.f32 0.0, %v421
    %v423 = vpop.f32.mrb[0].mxu0
    %v424 = vpop.f32.mrb[0].mxu0
    %v425 = vadd.f32 0.0, %v424
    %v426 = vpop.f32.mrb[0].mxu0
    %427 = vdwg.mxu0
    %v428 = vmul.f32 %v398, 0.35355338
    %v429 = vmul.f32 %v401, 0.35355338
    %v430 = vmul.f32 %v406, 0.35355338
    %v431 = vmul.f32 %v409, 0.35355338
    %v432 = vmul.f32 %v414, 0.35355338
    %v433 = vmul.f32 %v417, 0.35355338
    %v434 = vmul.f32 %v422, 0.35355338
    %v435 = vmul.f32 %v425, 0.35355338
    %v436 = vadd.f32 %v428, %v210
    %v437 = vadd.f32 %v429, %v211
    %v438 = vadd.f32 %v430, %v212
    %v439 = vadd.f32 %v431, %v213
    %v440 = vadd.f32 %v432, %v214
    %v441 = vadd.f32 %v433, %v215
    %v442 = vadd.f32 %v434, %v216
    %v443 = vadd.f32 %v435, %v217
    %vm444 = vcmask 523264
    %v445 = vsel %vm444, %v436, -inf
    %446 = vmax.xlane.f32.xlu0 %v445
    %v447 = vpop.xlane.xlu0 %446
    %v448 = vsel %vm444, %v437, -inf
    %449 = vmax.xlane.f32.xlu0 %v448
    %v450 = vpop.xlane.xlu0 %449
    %v451 = vsel %vm444, %v438, -inf
    %452 = vmax.xlane.f32.xlu0 %v451
    %v453 = vpop.xlane.xlu0 %452
    %v454 = vsel %vm444, %v439, -inf
    %455 = vmax.xlane.f32.xlu0 %v454
    %v456 = vpop.xlane.xlu0 %455
    %v457 = vsel %vm444, %v440, -inf
    %458 = vmax.xlane.f32.xlu0 %v457
    %v459 = vpop.xlane.xlu0 %458
    %v460 = vsel %vm444, %v441, -inf
    %461 = vmax.xlane.f32.xlu0 %v460
    %v462 = vpop.xlane.xlu0 %461
    %v463 = vsel %vm444, %v442, -inf
    %464 = vmax.xlane.f32.xlu0 %v463
    %v465 = vpop.xlane.xlu0 %464
    %v466 = vsel %vm444, %v443, -inf
    %467 = vmax.xlane.f32.xlu0 %v466
    %v468 = vpop.xlane.xlu0 %467
    %v469 = vsub.f32 %v436, %v447
    %v470 = vsub.f32 %v437, %v450
    %v471 = vsub.f32 %v438, %v453
    %v472 = vsub.f32 %v439, %v456
    %v473 = vsub.f32 %v440, %v459
    %v474 = vsub.f32 %v441, %v462
    %v475 = vsub.f32 %v442, %v465
    %v476 = vsub.f32 %v443, %v468
    %v477 = vmul.f32 %v469, 1.442695
    %v478 = vpow.pop %v477
    %v479 = vmul.f32 %v470, 1.442695
    %v480 = vpow.pop %v479
    %v481 = vmul.f32 %v471, 1.442695
    %v482 = vpow.pop %v481
    %v483 = vmul.f32 %v472, 1.442695
    %v484 = vpow.pop %v483
    %v485 = vmul.f32 %v473, 1.442695
    %v486 = vpow.pop %v485
    %v487 = vmul.f32 %v474, 1.442695
    %v488 = vpow.pop %v487
    %v489 = vmul.f32 %v475, 1.442695
    %v490 = vpow.pop %v489
    %v491 = vmul.f32 %v476, 1.442695
    %v492 = vpow.pop %v491
    %v493 = vsel %vm444, %v478, 0.0
    %494 = vadd.xlane.f32.xlu0 %v493
    %v495 = vpop.xlane.xlu0 %494
    %v496 = vsel %vm444, %v480, 0.0
    %497 = vadd.xlane.f32.xlu0 %v496
    %v498 = vpop.xlane.xlu0 %497
    %v499 = vsel %vm444, %v482, 0.0
    %500 = vadd.xlane.f32.xlu0 %v499
    %v501 = vpop.xlane.xlu0 %500
    %v502 = vsel %vm444, %v484, 0.0
    %503 = vadd.xlane.f32.xlu0 %v502
    %v504 = vpop.xlane.xlu0 %503
    %v505 = vsel %vm444, %v486, 0.0
    %506 = vadd.xlane.f32.xlu0 %v505
    %v507 = vpop.xlane.xlu0 %506
    %v508 = vsel %vm444, %v488, 0.0
    %509 = vadd.xlane.f32.xlu0 %v508
    %v510 = vpop.xlane.xlu0 %509
    %v511 = vsel %vm444, %v490, 0.0
    %512 = vadd.xlane.f32.xlu0 %v511
    %v513 = vpop.xlane.xlu0 %512
    %v514 = vsel %vm444, %v492, 0.0
    %515 = vadd.xlane.f32.xlu0 %v514
    %v516 = vpop.xlane.xlu0 %515
    %v517 = vrcp.pop %v495
    %v518 = vrcp.pop %v498
    %v519 = vrcp.pop %v501
    %v520 = vrcp.pop %v504
    %v521 = vrcp.pop %v507
    %v522 = vrcp.pop %v510
    %v523 = vrcp.pop %v513
    %v524 = vrcp.pop %v516
    %v525 = vmul.f32 %v478, %v517
    %v526 = vmul.f32 %v480, %v518
    %v527 = vmul.f32 %v482, %v519
    %v528 = vmul.f32 %v484, %v520
    %v529 = vmul.f32 %v486, %v521
    %v530 = vmul.f32 %v488, %v522
    %v531 = vmul.f32 %v490, %v523
    %v532 = vmul.f32 %v492, %v524
    %v533 = vpack.c.bf16 %v526, %v525
    %v534 = vpack.c.bf16 %v528, %v527
    %v535 = vpack.c.bf16 %v530, %v529
    %v536 = vpack.c.bf16 %v532, %v531
    %537 = vrot.lane.b32.xlu0 %v322, 64
    %v538 = vpop.permute.xlu0 %537
    %539 = vrot.lane.b32.xlu0 %v323, 64
    %v540 = vpop.permute.xlu0 %539
    %541 = vrot.lane.b32.xlu0 %v324, 64
    %v542 = vpop.permute.xlu0 %541
    %543 = vrot.lane.b32.xlu0 %v325, 64
    %v544 = vpop.permute.xlu0 %543
    %v550 = vsel %vm444, %v533, 0
    %v553 = vsel %vm444, %v534, 0
    %v556 = vsel %vm444, %v535, 0
    %v559 = vsel %vm444, %v536, 0
    %561 = vmatprep.subr.bf16.mxu0 0
    %562 = vmatpush1.bf16.msra.mxu0 %v538
    %563 = vmatprep.subr.bf16.mxu0 0
    %564 = vmatpush1.bf16.msra.mxu0 %v540
    %565 = vmatprep.subr.bf16.mxu0 0
    %566 = vmatpush1.bf16.msra.mxu0 %v542
    %567 = vmatprep.subr.bf16.mxu0 0
    %568 = vmatpush1.bf16.msra.mxu0 %v544
    %569 = vmatprep.subr.bf16.mxu0 0
    %570 = vmatpush1.bf16.msra.mxu0 0
    %571 = vmatprep.subr.bf16.mxu0 0
    %572 = vmatpush1.bf16.msra.mxu0 0
    %573 = vmatprep.subr.bf16.mxu0 0
    %574 = vmatpush1.bf16.msra.mxu0 0
    %575 = vmatprep.subr.bf16.mxu0 0
    %576 = vmatpush1.bf16.msra.mxu0 0
    %577 = vmatprep.subr.bf16.mxu0 0
    %578 = vmatpush1.bf16.msra.mxu0 0
    %579 = vmatprep.subr.bf16.mxu0 0
    %580 = vmatpush1.bf16.msra.mxu0 0
    %581 = vmatprep.subr.bf16.mxu0 0
    %582 = vmatpush1.bf16.msra.mxu0 0
    %583 = vmatprep.subr.bf16.mxu0 0
    %584 = vmatpush1.bf16.msra.mxu0 0
    %585 = vmatprep.subr.bf16.mxu0 0
    %586 = vmatpush1.bf16.msra.mxu0 0
    %587 = vmatprep.subr.bf16.mxu0 0
    %588 = vmatpush1.bf16.msra.mxu0 0
    %589 = vmatprep.subr.bf16.mxu0 0
    %590 = vmatpush1.bf16.msra.mxu0 0
    %591 = vmatprep.subr.bf16.mxu0 0
    %592 = vmatpush1.bf16.msra.mxu0 0
    %593 = vmatprep.mubr.bf16.mxu0 0
    %594 = vmatmul.mubr.bf16.gmra.mrb[0].mxu0 %v550
    %v595 = vpop.f32.mrb[0].mxu0
    %v596 = vadd.f32 0.0, %v595
    %v597 = vpop.f32.mrb[0].mxu0
    %v598 = vpop.f32.mrb[0].mxu0
    %v599 = vadd.f32 0.0, %v598
    %v600 = vpop.f32.mrb[0].mxu0
    %601 = vmatprep.mubr.bf16.mxu0 0
    %602 = vmatmul.mubr.bf16.gmra.mrb[0].mxu0 %v553
    %v603 = vpop.f32.mrb[0].mxu0
    %v604 = vadd.f32 0.0, %v603
    %v605 = vpop.f32.mrb[0].mxu0
    %v606 = vpop.f32.mrb[0].mxu0
    %v607 = vadd.f32 0.0, %v606
    %v608 = vpop.f32.mrb[0].mxu0
    %609 = vmatprep.mubr.bf16.mxu0 0
    %610 = vmatmul.mubr.bf16.gmra.mrb[0].mxu0 %v556
    %v611 = vpop.f32.mrb[0].mxu0
    %v612 = vadd.f32 0.0, %v611
    %v613 = vpop.f32.mrb[0].mxu0
    %v614 = vpop.f32.mrb[0].mxu0
    %v615 = vadd.f32 0.0, %v614
    %v616 = vpop.f32.mrb[0].mxu0
    %617 = vmatprep.mubr.bf16.mxu0 0
    %618 = vmatmul.mubr.bf16.gmra.mrb[0].mxu0 %v559
    %v619 = vpop.f32.mrb[0].mxu0
    %v620 = vadd.f32 0.0, %v619
    %v621 = vpop.f32.mrb[0].mxu0
    %v622 = vpop.f32.mrb[0].mxu0
    %v623 = vadd.f32 0.0, %v622
    %v624 = vpop.f32.mrb[0].mxu0
    %625 = vdwg.mxu0
    %627 = vrot.lane.b32.xlu0 %v599, 8
    %v628 = vpop.permute.xlu0 %627
    %631 = vrot.lane.b32.xlu0 %v604, 16
    %v632 = vpop.permute.xlu0 %631
    %635 = vrot.lane.b32.xlu0 %v607, 24
    %v636 = vpop.permute.xlu0 %635
    %v638 = vsel %vm338, %v596, %v628
    %vm639 = vcmask 130048
    %v640 = vsel %vm639, %v638, %v632
    %vm641 = vcmask 195584
    %v642 = vsel %vm641, %v640, %v636
    %644 = vrot.lane.b32.xlu0 %v615, 8
    %v645 = vpop.permute.xlu0 %644
    %648 = vrot.lane.b32.xlu0 %v620, 16
    %v649 = vpop.permute.xlu0 %648
    %652 = vrot.lane.b32.xlu0 %v623, 24
    %v653 = vpop.permute.xlu0 %652
    %v655 = vsel %vm338, %v612, %v645
    %v656 = vsel %vm639, %v655, %v649
    %v657 = vsel %vm641, %v656, %v653
    %v658 = vpack.c.bf16 %v657, %v642
    %v659 = vld [vmem:[%s10] sm:$0xf]
    %v660 = vld [vmem:[%s10 + $0x4] sm:$0xf]
    %v661 = vld [vmem:[%s10 + $0x8] sm:$0xf]
    %v662 = vld [vmem:[%s10 + $0xc] sm:$0xf]
    %v663 = vlaneseq
    %v664 = vshrl.u32 %v663, 7
    %v665 = vsub.s32 4, %v664
    %v666 = vrot.slane %v234, %v665
    %v671 = vunpack.c.l.b16 %v659
    %v672 = vunpack.c.l.b16 %v660
    %v673 = vunpack.c.l.b16 %v661
    %v674 = vunpack.c.l.b16 %v662
    %v675 = vpack.c.b16 %v672, %v671
    %v676 = vpack.c.b16 %v674, %v673
    %v680 = vsel %vm257, %v658, 0
    %682 = vmatprep.subr.bf16.mxu0 0
    %683 = vmatpush1.bf16.msra.mxu0 %v675
    %684 = vmatprep.subr.bf16.mxu0 0
    %685 = vmatpush1.bf16.msra.mxu0 %v676
    %686 = vmatprep.subr.bf16.mxu0 0
    %687 = vmatpush1.bf16.msra.mxu0 0
    %688 = vmatprep.subr.bf16.mxu0 0
    %689 = vmatpush1.bf16.msra.mxu0 0
    %690 = vmatprep.subr.bf16.mxu0 0
    %691 = vmatpush1.bf16.msra.mxu0 0
    %692 = vmatprep.subr.bf16.mxu0 0
    %693 = vmatpush1.bf16.msra.mxu0 0
    %694 = vmatprep.subr.bf16.mxu0 0
    %695 = vmatpush1.bf16.msra.mxu0 0
    %696 = vmatprep.subr.bf16.mxu0 0
    %697 = vmatpush1.bf16.msra.mxu0 0
    %698 = vmatprep.subr.bf16.mxu0 0
    %699 = vmatpush1.bf16.msra.mxu0 0
    %700 = vmatprep.subr.bf16.mxu0 0
    %701 = vmatpush1.bf16.msra.mxu0 0
    %702 = vmatprep.subr.bf16.mxu0 0
    %703 = vmatpush1.bf16.msra.mxu0 0
    %704 = vmatprep.subr.bf16.mxu0 0
    %705 = vmatpush1.bf16.msra.mxu0 0
    %706 = vmatprep.subr.bf16.mxu0 0
    %707 = vmatpush1.bf16.msra.mxu0 0
    %708 = vmatprep.subr.bf16.mxu0 0
    %709 = vmatpush1.bf16.msra.mxu0 0
    %710 = vmatprep.subr.bf16.mxu0 0
    %711 = vmatpush1.bf16.msra.mxu0 0
    %712 = vmatprep.subr.bf16.mxu0 0
    %713 = vmatpush1.bf16.msra.mxu0 0
    %714 = vmatprep.mubr.bf16.mxu0 0
    %715 = vmatmul.mubr.bf16.gmra.mrb[0].mxu0 %v680
    %v716 = vpop.f32.mrb[0].mxu0
    %v717 = vadd.f32 %v666, %v716
    %v718 = vpop.f32.mrb[0].mxu0
    %v719 = vpop.f32.mrb[0].mxu0
    %v720 = vadd.f32 %v666, %v719
    %v721 = vpop.f32.mrb[0].mxu0
    %722 = vdwg.mxu0
    %v723 = vadd.f32 %v204, %v717
    %v724 = vadd.f32 %v205, %v720
    %v725 = vsel %vm257, %v723, 0.0
    %726 = vadd.xlane.f32.xlu0 %v725
    %v727 = vpop.xlane.xlu0 %726
    %v728 = vsel %vm257, %v724, 0.0
    %729 = vadd.xlane.f32.xlu0 %v728
    %v730 = vpop.xlane.xlu0 %729
    %v731 = vrcp.pop 32.0
    %v732 = vmul.f32 %v727, %v731
    %v733 = vmul.f32 %v730, %v731
    %v734 = vmul.f32 %v723, %v723
    %v735 = vmul.f32 %v724, %v724
    %v736 = vsel %vm257, %v734, 0.0
    %737 = vadd.xlane.f32.xlu0 %v736
    %v738 = vpop.xlane.xlu0 %737
    %v739 = vsel %vm257, %v735, 0.0
    %740 = vadd.xlane.f32.xlu0 %v739
    %v741 = vpop.xlane.xlu0 %740
    %v742 = vmul.f32 %v738, %v731
    %v743 = vmul.f32 %v741, %v731
    %v744 = vmul.f32 %v732, %v732
    %v745 = vmul.f32 %v733, %v733
    %v746 = vsub.f32 %v742, %v744
    %v747 = vsub.f32 %v743, %v745
    %v748 = vsub.f32 %v723, %v732
    %v749 = vsub.f32 %v724, %v733
    %v750 = vadd.f32 %v746, 1e-05
    %v751 = vadd.f32 %v747, 1e-05
    %v752 = vrsqrt.pop %v750
    %v753 = vrsqrt.pop %v751
    %v754 = vmul.f32 %v748, %v752
    %v755 = vmul.f32 %v749, %v753
    %v756 = vlaneseq
    %v757 = vshrl.u32 %v756, 7
    %v758 = vsub.s32 0, %v757
    %v759 = vrot.slane %v235, %v758
    %v760 = vmul.f32 %v754, %v759
    %v761 = vmul.f32 %v755, %v759
    %v762 = vlaneseq
    %v763 = vshrl.u32 %v762, 7
    %v764 = vsub.s32 1, %v763
    %v765 = vrot.slane %v235, %v764
    %v766 = vadd.f32 %v760, %v765
    %v767 = vadd.f32 %v761, %v765
    %v768 = vpack.c.bf16 %v767, %v766
    %v769 = vld [vmem:[#allocation11] sm:$0xf]
    %v770 = vld [vmem:[#allocation11 + $0x4] sm:$0xf]
    %v771 = vld [vmem:[#allocation11 + $0x8] sm:$0xf]
    %v772 = vld [vmem:[#allocation11 + $0xc] sm:$0xf]
    %v773 = vlaneseq
    %v774 = vshrl.u32 %v773, 7
    %v775 = vsub.s32 1, %v774
    %v776 = vrot.slane %v234, %v775
    %v781 = vunpack.c.l.b16 %v769
    %v782 = vunpack.c.l.b16 %v770
    %v783 = vunpack.c.l.b16 %v771
    %v784 = vunpack.c.l.b16 %v772
    %v785 = vpack.c.b16 %v782, %v781
    %v786 = vpack.c.b16 %v784, %v783
    %v790 = vsel %vm257, %v768, 0
    %792 = vmatprep.subr.bf16.mxu0 0
    %793 = vmatpush1.bf16.msra.mxu0 %v785
    %794 = vmatprep.subr.bf16.mxu0 0
    %795 = vmatpush1.bf16.msra.mxu0 %v786
    %796 = vmatprep.subr.bf16.mxu0 0
    %797 = vmatpush1.bf16.msra.mxu0 0
    %798 = vmatprep.subr.bf16.mxu0 0
    %799 = vmatpush1.bf16.msra.mxu0 0
    %800 = vmatprep.subr.bf16.mxu0 0
    %801 = vmatpush1.bf16.msra.mxu0 0
    %802 = vmatprep.subr.bf16.mxu0 0
    %803 = vmatpush1.bf16.msra.mxu0 0
    %804 = vmatprep.subr.bf16.mxu0 0
    %805 = vmatpush1.bf16.msra.mxu0 0
    %806 = vmatprep.subr.bf16.mxu0 0
    %807 = vmatpush1.bf16.msra.mxu0 0
    %808 = vmatprep.subr.bf16.mxu0 0
    %809 = vmatpush1.bf16.msra.mxu0 0
    %810 = vmatprep.subr.bf16.mxu0 0
    %811 = vmatpush1.bf16.msra.mxu0 0
    %812 = vmatprep.subr.bf16.mxu0 0
    %813 = vmatpush1.bf16.msra.mxu0 0
    %814 = vmatprep.subr.bf16.mxu0 0
    %815 = vmatpush1.bf16.msra.mxu0 0
    %816 = vmatprep.subr.bf16.mxu0 0
    %817 = vmatpush1.bf16.msra.mxu0 0
    %818 = vmatprep.subr.bf16.mxu0 0
    %819 = vmatpush1.bf16.msra.mxu0 0
    %820 = vmatprep.subr.bf16.mxu0 0
    %821 = vmatpush1.bf16.msra.mxu0 0
    %822 = vmatprep.subr.bf16.mxu0 0
    %823 = vmatpush1.bf16.msra.mxu0 0
    %824 = vmatprep.mubr.bf16.mxu0 0
    %825 = vmatmul.mubr.bf16.gmra.mrb[0].mxu0 %v790
    %v826 = vpop.f32.mrb[0].mxu0
    %v827 = vadd.f32 %v776, %v826
    %v828 = vpop.f32.mrb[0].mxu0
    %v829 = vpop.f32.mrb[0].mxu0
    %v830 = vadd.f32 %v776, %v829
    %v831 = vpop.f32.mrb[0].mxu0
    %832 = vdwg.mxu0
    %v833 = vld [vmem:[#allocation13] sm:$0xf]
    %v834 = vld [vmem:[#allocation13 + $0x4] sm:$0xf]
    %v835 = vld [vmem:[#allocation13 + $0x8] sm:$0xf]
    %v836 = vld [vmem:[#allocation13 + $0xc] sm:$0xf]
    %v837 = vlaneseq
    %v838 = vshrl.u32 %v837, 7
    %v839 = vsub.s32 2, %v838
    %v840 = vrot.slane %v234, %v839
    %v843 = vunpack.c.l.b16 %v206
    %v844 = vunpack.c.l.b16 %v207
    %v845 = vpack.c.b16 %v844, %v843
    %v850 = vunpack.c.l.b16 %v833
    %v851 = vunpack.c.l.b16 %v834
    %v852 = vunpack.c.l.b16 %v835
    %v853 = vunpack.c.l.b16 %v836
    %v854 = vpack.c.b16 %v851, %v850
    %v855 = vpack.c.b16 %v853, %v852
    %v859 = vsel %vm257, %v845, 0
    %861 = vmatprep.subr.bf16.mxu0 0
    %862 = vmatpush1.bf16.msra.mxu0 %v854
    %863 = vmatprep.subr.bf16.mxu0 0
    %864 = vmatpush1.bf16.msra.mxu0 %v855
    %865 = vmatprep.subr.bf16.mxu0 0
    %866 = vmatpush1.bf16.msra.mxu0 0
    %867 = vmatprep.subr.bf16.mxu0 0
    %868 = vmatpush1.bf16.msra.mxu0 0
    %869 = vmatprep.subr.bf16.mxu0 0
    %870 = vmatpush1.bf16.msra.mxu0 0
    %871 = vmatprep.subr.bf16.mxu0 0
    %872 = vmatpush1.bf16.msra.mxu0 0
    %873 = vmatprep.subr.bf16.mxu0 0
    %874 = vmatpush1.bf16.msra.mxu0 0
    %875 = vmatprep.subr.bf16.mxu0 0
    %876 = vmatpush1.bf16.msra.mxu0 0
    %877 = vmatprep.subr.bf16.mxu0 0
    %878 = vmatpush1.bf16.msra.mxu0 0
    %879 = vmatprep.subr.bf16.mxu0 0
    %880 = vmatpush1.bf16.msra.mxu0 0
    %881 = vmatprep.subr.bf16.mxu0 0
    %882 = vmatpush1.bf16.msra.mxu0 0
    %883 = vmatprep.subr.bf16.mxu0 0
    %884 = vmatpush1.bf16.msra.mxu0 0
    %885 = vmatprep.subr.bf16.mxu0 0
    %886 = vmatpush1.bf16.msra.mxu0 0
    %887 = vmatprep.subr.bf16.mxu0 0
    %888 = vmatpush1.bf16.msra.mxu0 0
    %889 = vmatprep.subr.bf16.mxu0 0
    %890 = vmatpush1.bf16.msra.mxu0 0
    %891 = vmatprep.subr.bf16.mxu0 0
    %892 = vmatpush1.bf16.msra.mxu0 0
    %893 = vmatprep.mubr.bf16.mxu0 0
    %894 = vmatmul.mubr.bf16.gmra.mrb[0].mxu0 %v859
    %v895 = vpop.f32.mrb[0].mxu0
    %v896 = vadd.f32 %v840, %v895
    %v897 = vpop.f32.mrb[0].mxu0
    %v898 = vpop.f32.mrb[0].mxu0
    %v899 = vadd.f32 %v840, %v898
    %v900 = vpop.f32.mrb[0].mxu0
    %901 = vdwg.mxu0
    %v902 = vld [vmem:[#allocation14] sm:$0xf]
    %v903 = vld [vmem:[#allocation14 + $0x4] sm:$0xf]
    %v904 = vld [vmem:[#allocation14 + $0x8] sm:$0xf]
    %v905 = vld [vmem:[#allocation14 + $0xc] sm:$0xf]
    %v906 = vlaneseq
    %v907 = vshrl.u32 %v906, 7
    %v908 = vsub.s32 3, %v907
    %v909 = vrot.slane %v234, %v908
    %v912 = vunpack.c.l.b16 %v208
    %v913 = vunpack.c.l.b16 %v209
    %v914 = vpack.c.b16 %v913, %v912
    %v919 = vunpack.c.l.b16 %v902
    %v920 = vunpack.c.l.b16 %v903
    %v921 = vunpack.c.l.b16 %v904
    %v922 = vunpack.c.l.b16 %v905
    %v923 = vpack.c.b16 %v920, %v919
    %v924 = vpack.c.b16 %v922, %v921
    %v928 = vsel %vm257, %v914, 0
    %930 = vmatprep.subr.bf16.mxu0 0
    %931 = vmatpush1.bf16.msra.mxu0 %v923
    %932 = vmatprep.subr.bf16.mxu0 0
    %933 = vmatpush1.bf16.msra.mxu0 %v924
    %934 = vmatprep.subr.bf16.mxu0 0
    %935 = vmatpush1.bf16.msra.mxu0 0
    %936 = vmatprep.subr.bf16.mxu0 0
    %937 = vmatpush1.bf16.msra.mxu0 0
    %938 = vmatprep.subr.bf16.mxu0 0
    %939 = vmatpush1.bf16.msra.mxu0 0
    %940 = vmatprep.subr.bf16.mxu0 0
    %941 = vmatpush1.bf16.msra.mxu0 0
    %942 = vmatprep.subr.bf16.mxu0 0
    %943 = vmatpush1.bf16.msra.mxu0 0
    %944 = vmatprep.subr.bf16.mxu0 0
    %945 = vmatpush1.bf16.msra.mxu0 0
    %946 = vmatprep.subr.bf16.mxu0 0
    %947 = vmatpush1.bf16.msra.mxu0 0
    %948 = vmatprep.subr.bf16.mxu0 0
    %949 = vmatpush1.bf16.msra.mxu0 0
    %950 = vmatprep.subr.bf16.mxu0 0
    %951 = vmatpush1.bf16.msra.mxu0 0
    %952 = vmatprep.subr.bf16.mxu0 0
    %953 = vmatpush1.bf16.msra.mxu0 0
    %954 = vmatprep.subr.bf16.mxu0 0
    %955 = vmatpush1.bf16.msra.mxu0 0
    %956 = vmatprep.subr.bf16.mxu0 0
    %957 = vmatpush1.bf16.msra.mxu0 0
    %958 = vmatprep.subr.bf16.mxu0 0
    %959 = vmatpush1.bf16.msra.mxu0 0
    %960 = vmatprep.subr.bf16.mxu0 0
    %961 = vmatpush1.bf16.msra.mxu0 0
    %962 = vmatprep.mubr.bf16.mxu0 0
    %963 = vmatmul.mubr.bf16.gmra.mrb[0].mxu0 %v928
    %v964 = vpop.f32.mrb[0].mxu0
    %v965 = vadd.f32 %v909, %v964
    %v966 = vpop.f32.mrb[0].mxu0
    %v967 = vpop.f32.mrb[0].mxu0
    %v968 = vadd.f32 %v909, %v967
    %v969 = vpop.f32.mrb[0].mxu0
    %970 = vdwg.mxu0
    %972 = vrot.lane.b32.xlu0 %v827, 120
    %v973 = vpop.permute.xlu0 %972
    %975 = vrot.lane.b32.xlu0 %v827, 112
    %v976 = vpop.permute.xlu0 %975
    %978 = vrot.lane.b32.xlu0 %v827, 104
    %v979 = vpop.permute.xlu0 %978
    %982 = vrot.lane.b32.xlu0 %v830, 120
    %v983 = vpop.permute.xlu0 %982
    %985 = vrot.lane.b32.xlu0 %v830, 112
    %v986 = vpop.permute.xlu0 %985
    %988 = vrot.lane.b32.xlu0 %v830, 104
    %v989 = vpop.permute.xlu0 %988
    %v991 = vpack.c.bf16 %v973, %v827
    %v992 = vpack.c.bf16 %v979, %v976
    %v993 = vpack.c.bf16 %v983, %v830
    %v994 = vpack.c.bf16 %v989, %v986
    %996 = vrot.lane.b32.xlu0 %v896, 120
    %v997 = vpop.permute.xlu0 %996
    %999 = vrot.lane.b32.xlu0 %v896, 112
    %v1000 = vpop.permute.xlu0 %999
    %1002 = vrot.lane.b32.xlu0 %v896, 104
    %v1003 = vpop.permute.xlu0 %1002
    %1006 = vrot.lane.b32.xlu0 %v899, 120
    %v1007 = vpop.permute.xlu0 %1006
    %1009 = vrot.lane.b32.xlu0 %v899, 112
    %v1010 = vpop.permute.xlu0 %1009
    %1012 = vrot.lane.b32.xlu0 %v899, 104
    %v1013 = vpop.permute.xlu0 %1012
    %v1015 = vpack.c.bf16 %v997, %v896
    %v1016 = vpack.c.bf16 %v1003, %v1000
    %v1017 = vpack.c.bf16 %v1007, %v899
    %v1018 = vpack.c.bf16 %v1013, %v1010
    %v1020 = vsel %vm338, %v991, 0
    %v1023 = vsel %vm338, %v992, 0
    %v1026 = vsel %vm338, %v993, 0
    %v1029 = vsel %vm338, %v994, 0
    %v1032 = vsel %vm338, %v1015, 0
    %v1035 = vsel %vm338, %v1016, 0
    %v1038 = vsel %vm338, %v1017, 0
    %v1041 = vsel %vm338, %v1018, 0
    %1043 = vmatprep.subr.bf16.mxu0 0
    %1044 = vmatpush1.bf16.xpose.msra.mxu0 %v1032
    %1045 = vmatprep.subr.bf16.mxu0 0
    %1046 = vmatpush1.bf16.xpose.msra.mxu0 %v1035
    %1047 = vmatprep.subr.bf16.mxu0 0
    %1048 = vmatpush1.bf16.xpose.msra.mxu0 %v1038
    %1049 = vmatprep.subr.bf16.mxu0 0
    %1050 = vmatpush1.bf16.xpose.msra.mxu0 %v1041
    %1051 = vmatprep.subr.bf16.mxu0 0
    %1052 = vmatpush1.bf16.xpose.msra.mxu0 0
    %1053 = vmatprep.subr.bf16.mxu0 0
    %1054 = vmatpush1.bf16.xpose.msra.mxu0 0
    %1055 = vmatprep.subr.bf16.mxu0 0
    %1056 = vmatpush1.bf16.xpose.msra.mxu0 0
    %1057 = vmatprep.subr.bf16.mxu0 0
    %1058 = vmatpush1.bf16.xpose.msra.mxu0 0
    %1059 = vmatprep.subr.bf16.mxu0 0
    %1060 = vmatpush1.bf16.xpose.msra.mxu0 0
    %1061 = vmatprep.subr.bf16.mxu0 0
    %1062 = vmatpush1.bf16.xpose.msra.mxu0 0
    %1063 = vmatprep.subr.bf16.mxu0 0
    %1064 = vmatpush1.bf16.xpose.msra.mxu0 0
    %1065 = vmatprep.subr.bf16.mxu0 0
    %1066 = vmatpush1.bf16.xpose.msra.mxu0 0
    %1067 = vmatprep.subr.bf16.mxu0 0
    %1068 = vmatpush1.bf16.xpose.msra.mxu0 0
    %1069 = vmatprep.subr.bf16.mxu0 0
    %1070 = vmatpush1.bf16.xpose.msra.mxu0 0
    %1071 = vmatprep.subr.bf16.mxu0 0
    %1072 = vmatpush1.bf16.xpose.msra.mxu0 0
    %1073 = vmatprep.subr.bf16.mxu0 0
    %1074 = vmatpush1.bf16.xpose.msra.mxu0 0
    %1075 = vmatprep.mubr.bf16.mxu0 0
    %1076 = vmatmul.mubr.bf16.gmra.mrb[0].mxu0 %v1020
    %v1077 = vpop.f32.mrb[0].mxu0
    %v1078 = vadd.f32 0.0, %v1077
    %v1079 = vpop.f32.mrb[0].mxu0
    %v1080 = vpop.f32.mrb[0].mxu0
    %v1081 = vadd.f32 0.0, %v1080
    %v1082 = vpop.f32.mrb[0].mxu0
    %1083 = vmatprep.mubr.bf16.mxu0 0
    %1084 = vmatmul.mubr.bf16.gmra.mrb[0].mxu0 %v1023
    %v1085 = vpop.f32.mrb[0].mxu0
    %v1086 = vadd.f32 0.0, %v1085
    %v1087 = vpop.f32.mrb[0].mxu0
    %v1088 = vpop.f32.mrb[0].mxu0
    %v1089 = vadd.f32 0.0, %v1088
    %v1090 = vpop.f32.mrb[0].mxu0
    %1091 = vmatprep.mubr.bf16.mxu0 0
    %1092 = vmatmul.mubr.bf16.gmra.mrb[0].mxu0 %v1026
    %v1093 = vpop.f32.mrb[0].mxu0
    %v1094 = vadd.f32 0.0, %v1093
    %v1095 = vpop.f32.mrb[0].mxu0
    %v1096 = vpop.f32.mrb[0].mxu0
    %v1097 = vadd.f32 0.0, %v1096
    %v1098 = vpop.f32.mrb[0].mxu0
    %1099 = vmatprep.mubr.bf16.mxu0 0
    %1100 = vmatmul.mubr.bf16.gmra.mrb[0].mxu0 %v1029
    %v1101 = vpop.f32.mrb[0].mxu0
    %v1102 = vadd.f32 0.0, %v1101
    %v1103 = vpop.f32.mrb[0].mxu0
    %v1104 = vpop.f32.mrb[0].mxu0
    %v1105 = vadd.f32 0.0, %v1104
    %v1106 = vpop.f32.mrb[0].mxu0
    %1107 = vdwg.mxu0
    %v1108 = vmul.f32 %v1078, 0.35355338
    %v1109 = vmul.f32 %v1081, 0.35355338
    %v1110 = vmul.f32 %v1086, 0.35355338
    %v1111 = vmul.f32 %v1089, 0.35355338
    %v1112 = vmul.f32 %v1094, 0.35355338
    %v1113 = vmul.f32 %v1097, 0.35355338
    %v1114 = vmul.f32 %v1102, 0.35355338
    %v1115 = vmul.f32 %v1105, 0.35355338
    %v1116 = vadd.f32 %v1108, %v218
    %v1117 = vadd.f32 %v1109, %v219
    %v1118 = vadd.f32 %v1110, %v220
    %v1119 = vadd.f32 %v1111, %v221
    %v1120 = vadd.f32 %v1112, %v222
    %v1121 = vadd.f32 %v1113, %v223
    %v1122 = vadd.f32 %v1114, %v224
    %v1123 = vadd.f32 %v1115, %v225
    %v1124 = vsel %vm444, %v1116, -inf
    %1125 = vmax.xlane.f32.xlu0 %v1124
    %v1126 = vpop.xlane.xlu0 %1125
    %v1127 = vsel %vm444, %v1117, -inf
    %1128 = vmax.xlane.f32.xlu0 %v1127
    %v1129 = vpop.xlane.xlu0 %1128
    %v1130 = vsel %vm444, %v1118, -inf
    %1131 = vmax.xlane.f32.xlu0 %v1130
    %v1132 = vpop.xlane.xlu0 %1131
    %v1133 = vsel %vm444, %v1119, -inf
    %1134 = vmax.xlane.f32.xlu0 %v1133
    %v1135 = vpop.xlane.xlu0 %1134
    %v1136 = vsel %vm444, %v1120, -inf
    %1137 = vmax.xlane.f32.xlu0 %v1136
    %v1138 = vpop.xlane.xlu0 %1137
    %v1139 = vsel %vm444, %v1121, -inf
    %1140 = vmax.xlane.f32.xlu0 %v1139
    %v1141 = vpop.xlane.xlu0 %1140
    %v1142 = vsel %vm444, %v1122, -inf
    %1143 = vmax.xlane.f32.xlu0 %v1142
    %v1144 = vpop.xlane.xlu0 %1143
    %v1145 = vsel %vm444, %v1123, -inf
    %1146 = vmax.xlane.f32.xlu0 %v1145
    %v1147 = vpop.xlane.xlu0 %1146
    %v1148 = vsub.f32 %v1116, %v1126
    %v1149 = vsub.f32 %v1117, %v1129
    %v1150 = vsub.f32 %v1118, %v1132
    %v1151 = vsub.f32 %v1119, %v1135
    %v1152 = vsub.f32 %v1120, %v1138
    %v1153 = vsub.f32 %v1121, %v1141
    %v1154 = vsub.f32 %v1122, %v1144
    %v1155 = vsub.f32 %v1123, %v1147
    %v1156 = vmul.f32 %v1148, 1.442695
    %v1157 = vpow.pop %v1156
    %v1158 = vmul.f32 %v1149, 1.442695
    %v1159 = vpow.pop %v1158
    %v1160 = vmul.f32 %v1150, 1.442695
    %v1161 = vpow.pop %v1160
    %v1162 = vmul.f32 %v1151, 1.442695
    %v1163 = vpow.pop %v1162
    %v1164 = vmul.f32 %v1152, 1.442695
    %v1165 = vpow.pop %v1164
    %v1166 = vmul.f32 %v1153, 1.442695
    %v1167 = vpow.pop %v1166
    %v1168 = vmul.f32 %v1154, 1.442695
    %v1169 = vpow.pop %v1168
    %v1170 = vmul.f32 %v1155, 1.442695
    %v1171 = vpow.pop %v1170
    %v1172 = vsel %vm444, %v1157, 0.0
    %1173 = vadd.xlane.f32.xlu0 %v1172
    %v1174 = vpop.xlane.xlu0 %1173
    %v1175 = vsel %vm444, %v1159, 0.0
    %1176 = vadd.xlane.f32.xlu0 %v1175
    %v1177 = vpop.xlane.xlu0 %1176
    %v1178 = vsel %vm444, %v1161, 0.0
    %1179 = vadd.xlane.f32.xlu0 %v1178
    %v1180 = vpop.xlane.xlu0 %1179
    %v1181 = vsel %vm444, %v1163, 0.0
    %1182 = vadd.xlane.f32.xlu0 %v1181
    %v1183 = vpop.xlane.xlu0 %1182
    %v1184 = vsel %vm444, %v1165, 0.0
    %1185 = vadd.xlane.f32.xlu0 %v1184
    %v1186 = vpop.xlane.xlu0 %1185
    %v1187 = vsel %vm444, %v1167, 0.0
    %1188 = vadd.xlane.f32.xlu0 %v1187
    %v1189 = vpop.xlane.xlu0 %1188
    %v1190 = vsel %vm444, %v1169, 0.0
    %1191 = vadd.xlane.f32.xlu0 %v1190
    %v1192 = vpop.xlane.xlu0 %1191
    %v1193 = vsel %vm444, %v1171, 0.0
    %1194 = vadd.xlane.f32.xlu0 %v1193
    %v1195 = vpop.xlane.xlu0 %1194
    %v1196 = vrcp.pop %v1174
    %v1197 = vrcp.pop %v1177
    %v1198 = vrcp.pop %v1180
    %v1199 = vrcp.pop %v1183
    %v1200 = vrcp.pop %v1186
    %v1201 = vrcp.pop %v1189
    %v1202 = vrcp.pop %v1192
    %v1203 = vrcp.pop %v1195
    %v1204 = vmul.f32 %v1157, %v1196
    %v1205 = vmul.f32 %v1159, %v1197
    %v1206 = vmul.f32 %v1161, %v1198
    %v1207 = vmul.f32 %v1163, %v1199
    %v1208 = vmul.f32 %v1165, %v1200
    %v1209 = vmul.f32 %v1167, %v1201
    %v1210 = vmul.f32 %v1169, %v1202
    %v1211 = vmul.f32 %v1171, %v1203
    %v1212 = vpack.c.bf16 %v1205, %v1204
    %v1213 = vpack.c.bf16 %v1207, %v1206
    %v1214 = vpack.c.bf16 %v1209, %v1208
    %v1215 = vpack.c.bf16 %v1211, %v1210
    %1220 = vrot.lane.b32.xlu0 %v1015, 96
    %v1221 = vpop.permute.xlu0 %1220
    %1222 = vrot.lane.b32.xlu0 %v1016, 96
    %v1223 = vpop.permute.xlu0 %1222
    %1224 = vrot.lane.b32.xlu0 %v1017, 96
    %v1225 = vpop.permute.xlu0 %1224
    %1226 = vrot.lane.b32.xlu0 %v1018, 96
    %v1227 = vpop.permute.xlu0 %1226
    %v1233 = vsel %vm444, %v1212, 0
    %v1236 = vsel %vm444, %v1213, 0
    %v1239 = vsel %vm444, %v1214, 0
    %v1242 = vsel %vm444, %v1215, 0
    %1244 = vmatprep.subr.bf16.mxu0 0
    %1245 = vmatpush1.bf16.msra.mxu0 %v1221
    %1246 = vmatprep.subr.bf16.mxu0 0
    %1247 = vmatpush1.bf16.msra.mxu0 %v1223
    %1248 = vmatprep.subr.bf16.mxu0 0
    %1249 = vmatpush1.bf16.msra.mxu0 %v1225
    %1250 = vmatprep.subr.bf16.mxu0 0
    %1251 = vmatpush1.bf16.msra.mxu0 %v1227
    %1252 = vmatprep.subr.bf16.mxu0 0
    %1253 = vmatpush1.bf16.msra.mxu0 0
    %1254 = vmatprep.subr.bf16.mxu0 0
    %1255 = vmatpush1.bf16.msra.mxu0 0
    %1256 = vmatprep.subr.bf16.mxu0 0
    %1257 = vmatpush1.bf16.msra.mxu0 0
    %1258 = vmatprep.subr.bf16.mxu0 0
    %1259 = vmatpush1.bf16.msra.mxu0 0
    %1260 = vmatprep.subr.bf16.mxu0 0
    %1261 = vmatpush1.bf16.msra.mxu0 0
    %1262 = vmatprep.subr.bf16.mxu0 0
    %1263 = vmatpush1.bf16.msra.mxu0 0
    %1264 = vmatprep.subr.bf16.mxu0 0
    %1265 = vmatpush1.bf16.msra.mxu0 0
    %1266 = vmatprep.subr.bf16.mxu0 0
    %1267 = vmatpush1.bf16.msra.mxu0 0
    %1268 = vmatprep.subr.bf16.mxu0 0
    %1269 = vmatpush1.bf16.msra.mxu0 0
    %1270 = vmatprep.subr.bf16.mxu0 0
    %1271 = vmatpush1.bf16.msra.mxu0 0
    %1272 = vmatprep.subr.bf16.mxu0 0
    %1273 = vmatpush1.bf16.msra.mxu0 0
    %1274 = vmatprep.subr.bf16.mxu0 0
    %1275 = vmatpush1.bf16.msra.mxu0 0
    %1276 = vmatprep.mubr.bf16.mxu0 0
    %1277 = vmatmul.mubr.bf16.gmra.mrb[0].mxu0 %v1233
    %v1278 = vpop.f32.mrb[0].mxu0
    %v1279 = vadd.f32 0.0, %v1278
    %v1280 = vpop.f32.mrb[0].mxu0
    %v1281 = vpop.f32.mrb[0].mxu0
    %v1282 = vadd.f32 0.0, %v1281
    %v1283 = vpop.f32.mrb[0].mxu0
    %1284 = vmatprep.mubr.bf16.mxu0 0
    %1285 = vmatmul.mubr.bf16.gmra.mrb[0].mxu0 %v1236
    %v1286 = vpop.f32.mrb[0].mxu0
    %v1287 = vadd.f32 0.0, %v1286
    %v1288 = vpop.f32.mrb[0].mxu0
    %v1289 = vpop.f32.mrb[0].mxu0
    %v1290 = vadd.f32 0.0, %v1289
    %v1291 = vpop.f32.mrb[0].mxu0
    %1292 = vmatprep.mubr.bf16.mxu0 0
    %1293 = vmatmul.mubr.bf16.gmra.mrb[0].mxu0 %v1239
    %v1294 = vpop.f32.mrb[0].mxu0
    %v1295 = vadd.f32 0.0, %v1294
    %v1296 = vpop.f32.mrb[0].mxu0
    %v1297 = vpop.f32.mrb[0].mxu0
    %v1298 = vadd.f32 0.0, %v1297
    %v1299 = vpop.f32.mrb[0].mxu0
    %1300 = vmatprep.mubr.bf16.mxu0 0
    %1301 = vmatmul.mubr.bf16.gmra.mrb[0].mxu0 %v1242
    %v1302 = vpop.f32.mrb[0].mxu0
    %v1303 = vadd.f32 0.0, %v1302
    %v1304 = vpop.f32.mrb[0].mxu0
    %v1305 = vpop.f32.mrb[0].mxu0
    %v1306 = vadd.f32 0.0, %v1305
    %v1307 = vpop.f32.mrb[0].mxu0
    %1308 = vdwg.mxu0
    %1310 = vrot.lane.b32.xlu0 %v1282, 8
    %v1311 = vpop.permute.xlu0 %1310
    %1314 = vrot.lane.b32.xlu0 %v1287, 16
    %v1315 = vpop.permute.xlu0 %1314
    %1318 = vrot.lane.b32.xlu0 %v1290, 24
    %v1319 = vpop.permute.xlu0 %1318
    %v1321 = vsel %vm338, %v1279, %v1311
    %v1322 = vsel %vm639, %v1321, %v1315
    %v1323 = vsel %vm641, %v1322, %v1319
    %1325 = vrot.lane.b32.xlu0 %v1298, 8
    %v1326 = vpop.permute.xlu0 %1325
    %1329 = vrot.lane.b32.xlu0 %v1303, 16
    %v1330 = vpop.permute.xlu0 %1329
    %1333 = vrot.lane.b32.xlu0 %v1306, 24
    %v1334 = vpop.permute.xlu0 %1333
    %v1336 = vsel %vm338, %v1295, %v1326
    %v1337 = vsel %vm639, %v1336, %v1330
    %v1338 = vsel %vm641, %v1337, %v1334
    %1340 = vrot.lane.b32.xlu0 %v965, 120
    %v1341 = vpop.permute.xlu0 %1340
    %1343 = vrot.lane.b32.xlu0 %v965, 112
    %v1344 = vpop.permute.xlu0 %1343
    %1346 = vrot.lane.b32.xlu0 %v965, 104
    %v1347 = vpop.permute.xlu0 %1346
    %1350 = vrot.lane.b32.xlu0 %v968, 120
    %v1351 = vpop.permute.xlu0 %1350
    %1353 = vrot.lane.b32.xlu0 %v968, 112
    %v1354 = vpop.permute.xlu0 %1353
    %1356 = vrot.lane.b32.xlu0 %v968, 104
    %v1357 = vpop.permute.xlu0 %1356
    %v1359 = vpack.c.bf16 %v1341, %v965
    %v1360 = vpack.c.bf16 %v1347, %v1344
    %v1361 = vpack.c.bf16 %v1351, %v968
    %v1362 = vpack.c.bf16 %v1357, %v1354
    %1367 = vrot.lane.b32.xlu0 %v991, 96
    %v1368 = vpop.permute.xlu0 %1367
    %1369 = vrot.lane.b32.xlu0 %v992, 96
    %v1370 = vpop.permute.xlu0 %1369
    %1371 = vrot.lane.b32.xlu0 %v993, 96
    %v1372 = vpop.permute.xlu0 %1371
    %1373 = vrot.lane.b32.xlu0 %v994, 96
    %v1374 = vpop.permute.xlu0 %1373
    %v1376 = vsel %vm338, %v1368, 0
    %v1379 = vsel %vm338, %v1370, 0
    %v1382 = vsel %vm338, %v1372, 0
    %v1385 = vsel %vm338, %v1374, 0
    %v1388 = vsel %vm338, %v1359, 0
    %v1391 = vsel %vm338, %v1360, 0
    %v1394 = vsel %vm338, %v1361, 0
    %v1397 = vsel %vm338, %v1362, 0
    %1399 = vmatprep.subr.bf16.mxu0 0
    %1400 = vmatpush1.bf16.xpose.msra.mxu0 %v1388
    %1401 = vmatprep.subr.bf16.mxu0 0
    %1402 = vmatpush1.bf16.xpose.msra.mxu0 %v1391
    %1403 = vmatprep.subr.bf16.mxu0 0
    %1404 = vmatpush1.bf16.xpose.msra.mxu0 %v1394
    %1405 = vmatprep.subr.bf16.mxu0 0
    %1406 = vmatpush1.bf16.xpose.msra.mxu0 %v1397
    %1407 = vmatprep.subr.bf16.mxu0 0
    %1408 = vmatpush1.bf16.xpose.msra.mxu0 0
    %1409 = vmatprep.subr.bf16.mxu0 0
    %1410 = vmatpush1.bf16.xpose.msra.mxu0 0
    %1411 = vmatprep.subr.bf16.mxu0 0
    %1412 = vmatpush1.bf16.xpose.msra.mxu0 0
    %1413 = vmatprep.subr.bf16.mxu0 0
    %1414 = vmatpush1.bf16.xpose.msra.mxu0 0
    %1415 = vmatprep.subr.bf16.mxu0 0
    %1416 = vmatpush1.bf16.xpose.msra.mxu0 0
    %1417 = vmatprep.subr.bf16.mxu0 0
    %1418 = vmatpush1.bf16.xpose.msra.mxu0 0
    %1419 = vmatprep.subr.bf16.mxu0 0
    %1420 = vmatpush1.bf16.xpose.msra.mxu0 0
    %1421 = vmatprep.subr.bf16.mxu0 0
    %1422 = vmatpush1.bf16.xpose.msra.mxu0 0
    %1423 = vmatprep.subr.bf16.mxu0 0
    %1424 = vmatpush1.bf16.xpose.msra.mxu0 0
    %1425 = vmatprep.subr.bf16.mxu0 0
    %1426 = vmatpush1.bf16.xpose.msra.mxu0 0
    %1427 = vmatprep.subr.bf16.mxu0 0
    %1428 = vmatpush1.bf16.xpose.msra.mxu0 0
    %1429 = vmatprep.subr.bf16.mxu0 0
    %1430 = vmatpush1.bf16.xpose.msra.mxu0 0
    %1431 = vmatprep.mubr.bf16.mxu0 0
    %1432 = vmatmul.mubr.bf16.gmra.mrb[0].mxu0 %v1376
    %v1433 = vpop.f32.mrb[0].mxu0
    %v1434 = vadd.f32 0.0, %v1433
    %v1435 = vpop.f32.mrb[0].mxu0
    %v1436 = vpop.f32.mrb[0].mxu0
    %v1437 = vadd.f32 0.0, %v1436
    %v1438 = vpop.f32.mrb[0].mxu0
    %1439 = vmatprep.mubr.bf16.mxu0 0
    %1440 = vmatmul.mubr.bf16.gmra.mrb[0].mxu0 %v1379
    %v1441 = vpop.f32.mrb[0].mxu0
    %v1442 = vadd.f32 0.0, %v1441
    %v1443 = vpop.f32.mrb[0].mxu0
    %v1444 = vpop.f32.mrb[0].mxu0
    %v1445 = vadd.f32 0.0, %v1444
    %v1446 = vpop.f32.mrb[0].mxu0
    %1447 = vmatprep.mubr.bf16.mxu0 0
    %1448 = vmatmul.mubr.bf16.gmra.mrb[0].mxu0 %v1382
    %v1449 = vpop.f32.mrb[0].mxu0
    %v1450 = vadd.f32 0.0, %v1449
    %v1451 = vpop.f32.mrb[0].mxu0
    %v1452 = vpop.f32.mrb[0].mxu0
    %v1453 = vadd.f32 0.0, %v1452
    %v1454 = vpop.f32.mrb[0].mxu0
    %1455 = vmatprep.mubr.bf16.mxu0 0
    %1456 = vmatmul.mubr.bf16.gmra.mrb[0].mxu0 %v1385
    %v1457 = vpop.f32.mrb[0].mxu0
    %v1458 = vadd.f32 0.0, %v1457
    %v1459 = vpop.f32.mrb[0].mxu0
    %v1460 = vpop.f32.mrb[0].mxu0
    %v1461 = vadd.f32 0.0, %v1460
    %v1462 = vpop.f32.mrb[0].mxu0
    %1463 = vdwg.mxu0
    %v1464 = vmul.f32 %v1434, 0.35355338
    %v1465 = vmul.f32 %v1437, 0.35355338
    %v1466 = vmul.f32 %v1442, 0.35355338
    %v1467 = vmul.f32 %v1445, 0.35355338
    %v1468 = vmul.f32 %v1450, 0.35355338
    %v1469 = vmul.f32 %v1453, 0.35355338
    %v1470 = vmul.f32 %v1458, 0.35355338
    %v1471 = vmul.f32 %v1461, 0.35355338
    %v1472 = vadd.f32 %v1464, %v226
    %v1473 = vadd.f32 %v1465, %v227
    %v1474 = vadd.f32 %v1466, %v228
    %v1475 = vadd.f32 %v1467, %v229
    %v1476 = vadd.f32 %v1468, %v230
    %v1477 = vadd.f32 %v1469, %v231
    %v1478 = vadd.f32 %v1470, %v232
    %v1479 = vadd.f32 %v1471, %v233
    %v1480 = vsel %vm444, %v1472, -inf
    %1481 = vmax.xlane.f32.xlu0 %v1480
    %v1482 = vpop.xlane.xlu0 %1481
    %v1483 = vsel %vm444, %v1473, -inf
    %1484 = vmax.xlane.f32.xlu0 %v1483
    %v1485 = vpop.xlane.xlu0 %1484
    %v1486 = vsel %vm444, %v1474, -inf
    %1487 = vmax.xlane.f32.xlu0 %v1486
    %v1488 = vpop.xlane.xlu0 %1487
    %v1489 = vsel %vm444, %v1475, -inf
    %1490 = vmax.xlane.f32.xlu0 %v1489
    %v1491 = vpop.xlane.xlu0 %1490
    %v1492 = vsel %vm444, %v1476, -inf
    %1493 = vmax.xlane.f32.xlu0 %v1492
    %v1494 = vpop.xlane.xlu0 %1493
    %v1495 = vsel %vm444, %v1477, -inf
    %1496 = vmax.xlane.f32.xlu0 %v1495
    %v1497 = vpop.xlane.xlu0 %1496
    %v1498 = vsel %vm444, %v1478, -inf
    %1499 = vmax.xlane.f32.xlu0 %v1498
    %v1500 = vpop.xlane.xlu0 %1499
    %v1501 = vsel %vm444, %v1479, -inf
    %1502 = vmax.xlane.f32.xlu0 %v1501
    %v1503 = vpop.xlane.xlu0 %1502
    %v1504 = vsub.f32 %v1472, %v1482
    %v1505 = vsub.f32 %v1473, %v1485
    %v1506 = vsub.f32 %v1474, %v1488
    %v1507 = vsub.f32 %v1475, %v1491
    %v1508 = vsub.f32 %v1476, %v1494
    %v1509 = vsub.f32 %v1477, %v1497
    %v1510 = vsub.f32 %v1478, %v1500
    %v1511 = vsub.f32 %v1479, %v1503
    %v1512 = vmul.f32 %v1504, 1.442695
    %v1513 = vpow.pop %v1512
    %v1514 = vmul.f32 %v1505, 1.442695
    %v1515 = vpow.pop %v1514
    %v1516 = vmul.f32 %v1506, 1.442695
    %v1517 = vpow.pop %v1516
    %v1518 = vmul.f32 %v1507, 1.442695
    %v1519 = vpow.pop %v1518
    %v1520 = vmul.f32 %v1508, 1.442695
    %v1521 = vpow.pop %v1520
    %v1522 = vmul.f32 %v1509, 1.442695
    %v1523 = vpow.pop %v1522
    %v1524 = vmul.f32 %v1510, 1.442695
    %v1525 = vpow.pop %v1524
    %v1526 = vmul.f32 %v1511, 1.442695
    %v1527 = vpow.pop %v1526
    %v1528 = vsel %vm444, %v1513, 0.0
    %1529 = vadd.xlane.f32.xlu0 %v1528
    %v1530 = vpop.xlane.xlu0 %1529
    %v1531 = vsel %vm444, %v1515, 0.0
    %1532 = vadd.xlane.f32.xlu0 %v1531
    %v1533 = vpop.xlane.xlu0 %1532
    %v1534 = vsel %vm444, %v1517, 0.0
    %1535 = vadd.xlane.f32.xlu0 %v1534
    %v1536 = vpop.xlane.xlu0 %1535
    %v1537 = vsel %vm444, %v1519, 0.0
    %1538 = vadd.xlane.f32.xlu0 %v1537
    %v1539 = vpop.xlane.xlu0 %1538
    %v1540 = vsel %vm444, %v1521, 0.0
    %1541 = vadd.xlane.f32.xlu0 %v1540
    %v1542 = vpop.xlane.xlu0 %1541
    %v1543 = vsel %vm444, %v1523, 0.0
    %1544 = vadd.xlane.f32.xlu0 %v1543
    %v1545 = vpop.xlane.xlu0 %1544
    %v1546 = vsel %vm444, %v1525, 0.0
    %1547 = vadd.xlane.f32.xlu0 %v1546
    %v1548 = vpop.xlane.xlu0 %1547
    %v1549 = vsel %vm444, %v1527, 0.0
    %1550 = vadd.xlane.f32.xlu0 %v1549
    %v1551 = vpop.xlane.xlu0 %1550
    %v1552 = vrcp.pop %v1530
    %v1553 = vrcp.pop %v1533
    %v1554 = vrcp.pop %v1536
    %v1555 = vrcp.pop %v1539
    %v1556 = vrcp.pop %v1542
    %v1557 = vrcp.pop %v1545
    %v1558 = vrcp.pop %v1548
    %v1559 = vrcp.pop %v1551
    %v1560 = vmul.f32 %v1513, %v1552
    %v1561 = vmul.f32 %v1515, %v1553
    %v1562 = vmul.f32 %v1517, %v1554
    %v1563 = vmul.f32 %v1519, %v1555
    %v1564 = vmul.f32 %v1521, %v1556
    %v1565 = vmul.f32 %v1523, %v1557
    %v1566 = vmul.f32 %v1525, %v1558
    %v1567 = vmul.f32 %v1527, %v1559
    %v1568 = vpack.c.bf16 %v1561, %v1560
    %v1569 = vpack.c.bf16 %v1563, %v1562
    %v1570 = vpack.c.bf16 %v1565, %v1564
    %v1571 = vpack.c.bf16 %v1567, %v1566
    %1576 = vrot.lane.b32.xlu0 %v1359, 96
    %v1577 = vpop.permute.xlu0 %1576
    %1578 = vrot.lane.b32.xlu0 %v1360, 96
    %v1579 = vpop.permute.xlu0 %1578
    %1580 = vrot.lane.b32.xlu0 %v1361, 96
    %v1581 = vpop.permute.xlu0 %1580
    %1582 = vrot.lane.b32.xlu0 %v1362, 96
    %v1583 = vpop.permute.xlu0 %1582
    %v1589 = vsel %vm444, %v1568, 0
    %v1592 = vsel %vm444, %v1569, 0
    %v1595 = vsel %vm444, %v1570, 0
    %v1598 = vsel %vm444, %v1571, 0
    %1600 = vmatprep.subr.bf16.mxu0 0
    %1601 = vmatpush1.bf16.msra.mxu0 %v1577
    %1602 = vmatprep.subr.bf16.mxu0 0
    %1603 = vmatpush1.bf16.msra.mxu0 %v1579
    %1604 = vmatprep.subr.bf16.mxu0 0
    %1605 = vmatpush1.bf16.msra.mxu0 %v1581
    %1606 = vmatprep.subr.bf16.mxu0 0
    %1607 = vmatpush1.bf16.msra.mxu0 %v1583
    %1608 = vmatprep.subr.bf16.mxu0 0
    %1609 = vmatpush1.bf16.msra.mxu0 0
    %1610 = vmatprep.subr.bf16.mxu0 0
    %1611 = vmatpush1.bf16.msra.mxu0 0
    %1612 = vmatprep.subr.bf16.mxu0 0
    %1613 = vmatpush1.bf16.msra.mxu0 0
    %1614 = vmatprep.subr.bf16.mxu0 0
    %1615 = vmatpush1.bf16.msra.mxu0 0
    %1616 = vmatprep.subr.bf16.mxu0 0
    %1617 = vmatpush1.bf16.msra.mxu0 0
    %1618 = vmatprep.subr.bf16.mxu0 0
    %1619 = vmatpush1.bf16.msra.mxu0 0
    %1620 = vmatprep.subr.bf16.mxu0 0
    %1621 = vmatpush1.bf16.msra.mxu0 0
    %1622 = vmatprep.subr.bf16.mxu0 0
    %1623 = vmatpush1.bf16.msra.mxu0 0
    %1624 = vmatprep.subr.bf16.mxu0 0
    %1625 = vmatpush1.bf16.msra.mxu0 0
    %1626 = vmatprep.subr.bf16.mxu0 0
    %1627 = vmatpush1.bf16.msra.mxu0 0
    %1628 = vmatprep.subr.bf16.mxu0 0
    %1629 = vmatpush1.bf16.msra.mxu0 0
    %1630 = vmatprep.subr.bf16.mxu0 0
    %1631 = vmatpush1.bf16.msra.mxu0 0
    %1632 = vmatprep.mubr.bf16.mxu0 0
    %1633 = vmatmul.mubr.bf16.gmra.mrb[0].mxu0 %v1589
    %v1634 = vpop.f32.mrb[0].mxu0
    %v1635 = vadd.f32 0.0, %v1634
    %v1636 = vpop.f32.mrb[0].mxu0
    %v1637 = vpop.f32.mrb[0].mxu0
    %v1638 = vadd.f32 0.0, %v1637
    %v1639 = vpop.f32.mrb[0].mxu0
    %1640 = vmatprep.mubr.bf16.mxu0 0
    %1641 = vmatmul.mubr.bf16.gmra.mrb[0].mxu0 %v1592
    %v1642 = vpop.f32.mrb[0].mxu0
    %v1643 = vadd.f32 0.0, %v1642
    %v1644 = vpop.f32.mrb[0].mxu0
    %v1645 = vpop.f32.mrb[0].mxu0
    %v1646 = vadd.f32 0.0, %v1645
    %v1647 = vpop.f32.mrb[0].mxu0
    %1648 = vmatprep.mubr.bf16.mxu0 0
    %1649 = vmatmul.mubr.bf16.gmra.mrb[0].mxu0 %v1595
    %v1650 = vpop.f32.mrb[0].mxu0
    %v1651 = vadd.f32 0.0, %v1650
    %v1652 = vpop.f32.mrb[0].mxu0
    %v1653 = vpop.f32.mrb[0].mxu0
    %v1654 = vadd.f32 0.0, %v1653
    %v1655 = vpop.f32.mrb[0].mxu0
    %1656 = vmatprep.mubr.bf16.mxu0 0
    %1657 = vmatmul.mubr.bf16.gmra.mrb[0].mxu0 %v1598
    %v1658 = vpop.f32.mrb[0].mxu0
    %v1659 = vadd.f32 0.0, %v1658
    %v1660 = vpop.f32.mrb[0].mxu0
    %v1661 = vpop.f32.mrb[0].mxu0
    %v1662 = vadd.f32 0.0, %v1661
    %v1663 = vpop.f32.mrb[0].mxu0
    %1664 = vdwg.mxu0
    %1666 = vrot.lane.b32.xlu0 %v1638, 8
    %v1667 = vpop.permute.xlu0 %1666
    %1670 = vrot.lane.b32.xlu0 %v1643, 16
    %v1671 = vpop.permute.xlu0 %1670
    %1674 = vrot.lane.b32.xlu0 %v1646, 24
    %v1675 = vpop.permute.xlu0 %1674
    %v1677 = vsel %vm338, %v1635, %v1667
    %v1678 = vsel %vm639, %v1677, %v1671
    %v1679 = vsel %vm641, %v1678, %v1675
    %1681 = vrot.lane.b32.xlu0 %v1654, 8
    %v1682 = vpop.permute.xlu0 %1681
    %1685 = vrot.lane.b32.xlu0 %v1659, 16
    %v1686 = vpop.permute.xlu0 %1685
    %1689 = vrot.lane.b32.xlu0 %v1662, 24
    %v1690 = vpop.permute.xlu0 %1689
    %v1692 = vsel %vm338, %v1651, %v1682
    %v1693 = vsel %vm639, %v1692, %v1686
    %v1694 = vsel %vm641, %v1693, %v1690
    %v1695 = vpack.c.bf16 %v1338, %v1323
    %v1696 = vld [vmem:[#allocation16] sm:$0xf]
    %v1697 = vld [vmem:[#allocation16 + $0x4] sm:$0xf]
    %v1698 = vld [vmem:[#allocation16 + $0x8] sm:$0xf]
    %v1699 = vld [vmem:[#allocation16 + $0xc] sm:$0xf]
    %v1700 = vpack.c.bf16 %v1694, %v1679
    %v1701 = vld [vmem:[#allocation17] sm:$0xf]
    %v1702 = vld [vmem:[#allocation17 + $0x4] sm:$0xf]
    %v1703 = vld [vmem:[#allocation17 + $0x8] sm:$0xf]
    %v1704 = vld [vmem:[#allocation17 + $0xc] sm:$0xf]
    %v1709 = vunpack.c.l.b16 %v1701
    %v1710 = vunpack.c.l.b16 %v1702
    %v1711 = vunpack.c.l.b16 %v1703
    %v1712 = vunpack.c.l.b16 %v1704
    %v1713 = vpack.c.b16 %v1710, %v1709
    %v1714 = vpack.c.b16 %v1712, %v1711
    %v1718 = vsel %vm257, %v1700, 0
    %1720 = vmatprep.subr.bf16.mxu0 0
    %1721 = vmatpush1.bf16.msra.mxu0 %v1713
    %1722 = vmatprep.subr.bf16.mxu0 0
    %1723 = vmatpush1.bf16.msra.mxu0 %v1714
    %1724 = vmatprep.subr.bf16.mxu0 0
    %1725 = vmatpush1.bf16.msra.mxu0 0
    %1726 = vmatprep.subr.bf16.mxu0 0
    %1727 = vmatpush1.bf16.msra.mxu0 0
    %1728 = vmatprep.subr.bf16.mxu0 0
    %1729 = vmatpush1.bf16.msra.mxu0 0
    %1730 = vmatprep.subr.bf16.mxu0 0
    %1731 = vmatpush1.bf16.msra.mxu0 0
    %1732 = vmatprep.subr.bf16.mxu0 0
    %1733 = vmatpush1.bf16.msra.mxu0 0
    %1734 = vmatprep.subr.bf16.mxu0 0
    %1735 = vmatpush1.bf16.msra.mxu0 0
    %1736 = vmatprep.subr.bf16.mxu0 0
    %1737 = vmatpush1.bf16.msra.mxu0 0
    %1738 = vmatprep.subr.bf16.mxu0 0
    %1739 = vmatpush1.bf16.msra.mxu0 0
    %1740 = vmatprep.subr.bf16.mxu0 0
    %1741 = vmatpush1.bf16.msra.mxu0 0
    %1742 = vmatprep.subr.bf16.mxu0 0
    %1743 = vmatpush1.bf16.msra.mxu0 0
    %1744 = vmatprep.subr.bf16.mxu0 0
    %1745 = vmatpush1.bf16.msra.mxu0 0
    %1746 = vmatprep.subr.bf16.mxu0 0
    %1747 = vmatpush1.bf16.msra.mxu0 0
    %1748 = vmatprep.subr.bf16.mxu0 0
    %1749 = vmatpush1.bf16.msra.mxu0 0
    %1750 = vmatprep.subr.bf16.mxu0 0
    %1751 = vmatpush1.bf16.msra.mxu0 0
    %1752 = vmatprep.mubr.bf16.mxu0 0
    %1753 = vmatmul.mubr.bf16.gmra.mrb[0].mxu0 %v1718
    %v1754 = vpop.f32.mrb[0].mxu0
    %v1755 = vadd.f32 0.0, %v1754
    %v1756 = vpop.f32.mrb[0].mxu0
    %v1757 = vpop.f32.mrb[0].mxu0
    %v1758 = vadd.f32 0.0, %v1757
    %v1759 = vpop.f32.mrb[0].mxu0
    %1760 = vdwg.mxu0
    %v1765 = vunpack.c.l.b16 %v1696
    %v1766 = vunpack.c.l.b16 %v1697
    %v1767 = vunpack.c.l.b16 %v1698
    %v1768 = vunpack.c.l.b16 %v1699
    %v1769 = vpack.c.b16 %v1766, %v1765
    %v1770 = vpack.c.b16 %v1768, %v1767
    %v1774 = vsel %vm257, %v1695, 0
    %1776 = vmatprep.subr.bf16.mxu0 0
    %1777 = vmatpush1.bf16.msra.mxu0 %v1769
    %1778 = vmatprep.subr.bf16.mxu0 0
    %1779 = vmatpush1.bf16.msra.mxu0 %v1770
    %1780 = vmatprep.subr.bf16.mxu0 0
    %1781 = vmatpush1.bf16.msra.mxu0 0
    %1782 = vmatprep.subr.bf16.mxu0 0
    %1783 = vmatpush1.bf16.msra.mxu0 0
    %1784 = vmatprep.subr.bf16.mxu0 0
    %1785 = vmatpush1.bf16.msra.mxu0 0
    %1786 = vmatprep.subr.bf16.mxu0 0
    %1787 = vmatpush1.bf16.msra.mxu0 0
    %1788 = vmatprep.subr.bf16.mxu0 0
    %1789 = vmatpush1.bf16.msra.mxu0 0
    %1790 = vmatprep.subr.bf16.mxu0 0
    %1791 = vmatpush1.bf16.msra.mxu0 0
    %1792 = vmatprep.subr.bf16.mxu0 0
    %1793 = vmatpush1.bf16.msra.mxu0 0
    %1794 = vmatprep.subr.bf16.mxu0 0
    %1795 = vmatpush1.bf16.msra.mxu0 0
    %1796 = vmatprep.subr.bf16.mxu0 0
    %1797 = vmatpush1.bf16.msra.mxu0 0
    %1798 = vmatprep.subr.bf16.mxu0 0
    %1799 = vmatpush1.bf16.msra.mxu0 0
    %1800 = vmatprep.subr.bf16.mxu0 0
    %1801 = vmatpush1.bf16.msra.mxu0 0
    %1802 = vmatprep.subr.bf16.mxu0 0
    %1803 = vmatpush1.bf16.msra.mxu0 0
    %1804 = vmatprep.subr.bf16.mxu0 0
    %1805 = vmatpush1.bf16.msra.mxu0 0
    %1806 = vmatprep.subr.bf16.mxu0 0
    %1807 = vmatpush1.bf16.msra.mxu0 0
    %1808 = vmatprep.mubr.bf16.mxu0 0
    %1809 = vmatmul.mubr.bf16.gmra.mrb[0].mxu0 %v1774
    %v1810 = vpop.f32.mrb[0].mxu0
    %v1811 = vadd.f32 %v1755, %v1810
    %v1812 = vpop.f32.mrb[0].mxu0
    %v1813 = vpop.f32.mrb[0].mxu0
    %v1814 = vadd.f32 %v1758, %v1813
    %v1815 = vpop.f32.mrb[0].mxu0
    %1816 = vdwg.mxu0
    %v1817 = vlaneseq
    %v1818 = vshrl.u32 %v1817, 7
    %v1819 = vsub.s32 5, %v1818
    %v1820 = vrot.slane %v234, %v1819
    %v1821 = vadd.f32 %v1811, %v1820
    %v1822 = vadd.f32 %v1814, %v1820
    %v1823 = vadd.f32 %v766, %v1821
    %v1824 = vadd.f32 %v767, %v1822
    %v1825 = vsel %vm257, %v1823, 0.0
    %1826 = vadd.xlane.f32.xlu0 %v1825
    %v1827 = vpop.xlane.xlu0 %1826
    %v1828 = vsel %vm257, %v1824, 0.0
    %1829 = vadd.xlane.f32.xlu0 %v1828
    %v1830 = vpop.xlane.xlu0 %1829
    %v1831 = vmul.f32 %v1827, %v731
    %v1832 = vmul.f32 %v1830, %v731
    %v1833 = vmul.f32 %v1823, %v1823
    %v1834 = vmul.f32 %v1824, %v1824
    %v1835 = vsel %vm257, %v1833, 0.0
    %1836 = vadd.xlane.f32.xlu0 %v1835
    %v1837 = vpop.xlane.xlu0 %1836
    %v1838 = vsel %vm257, %v1834, 0.0
    %1839 = vadd.xlane.f32.xlu0 %v1838
    %v1840 = vpop.xlane.xlu0 %1839
    %v1841 = vmul.f32 %v1837, %v731
    %v1842 = vmul.f32 %v1840, %v731
    %v1843 = vmul.f32 %v1831, %v1831
    %v1844 = vmul.f32 %v1832, %v1832
    %v1845 = vsub.f32 %v1841, %v1843
    %v1846 = vsub.f32 %v1842, %v1844
    %v1847 = vsub.f32 %v1823, %v1831
    %v1848 = vsub.f32 %v1824, %v1832
    %v1849 = vadd.f32 %v1845, 1e-05
    %v1850 = vadd.f32 %v1846, 1e-05
    %v1851 = vrsqrt.pop %v1849
    %v1852 = vrsqrt.pop %v1850
    %v1853 = vmul.f32 %v1847, %v1851
    %v1854 = vmul.f32 %v1848, %v1852
    %v1855 = vlaneseq
    %v1856 = vshrl.u32 %v1855, 7
    %v1857 = vsub.s32 2, %v1856
    %v1858 = vrot.slane %v235, %v1857
    %v1859 = vmul.f32 %v1853, %v1858
    %v1860 = vmul.f32 %v1854, %v1858
    %v1861 = vlaneseq
    %v1862 = vshrl.u32 %v1861, 7
    %v1863 = vsub.s32 3, %v1862
    %v1864 = vrot.slane %v235, %v1863
    %v1865 = vadd.f32 %v1859, %v1864
    %v1866 = vadd.f32 %v1860, %v1864
    %v1867 = vpack.c.bf16 %v1866, %v1865
    %v1868 = vld [vmem:[#allocation19] sm:$0xf]
    %v1869 = vld [vmem:[#allocation19 + $0x4] sm:$0xf]
    %v1870 = vld [vmem:[#allocation19 + $0x8] sm:$0xf]
    %v1871 = vld [vmem:[#allocation19 + $0xc] sm:$0xf]
    %v1872 = vlaneseq
    %v1873 = vshrl.u32 %v1872, 7
    %v1874 = vsub.s32 6, %v1873
    %v1875 = vrot.slane %v234, %v1874
    %v1880 = vunpack.c.l.b16 %v1868
    %v1881 = vunpack.c.l.b16 %v1869
    %v1882 = vunpack.c.l.b16 %v1870
    %v1883 = vunpack.c.l.b16 %v1871
    %v1884 = vpack.c.b16 %v1881, %v1880
    %v1885 = vpack.c.b16 %v1883, %v1882
    %v1889 = vsel %vm257, %v1867, 0
    %1891 = vmatprep.subr.bf16.mxu0 0
    %1892 = vmatpush1.bf16.msra.mxu0 %v1884
    %1893 = vmatprep.subr.bf16.mxu0 0
    %1894 = vmatpush1.bf16.msra.mxu0 %v1885
    %1895 = vmatprep.subr.bf16.mxu0 0
    %1896 = vmatpush1.bf16.msra.mxu0 0
    %1897 = vmatprep.subr.bf16.mxu0 0
    %1898 = vmatpush1.bf16.msra.mxu0 0
    %1899 = vmatprep.subr.bf16.mxu0 0
    %1900 = vmatpush1.bf16.msra.mxu0 0
    %1901 = vmatprep.subr.bf16.mxu0 0
    %1902 = vmatpush1.bf16.msra.mxu0 0
    %1903 = vmatprep.subr.bf16.mxu0 0
    %1904 = vmatpush1.bf16.msra.mxu0 0
    %1905 = vmatprep.subr.bf16.mxu0 0
    %1906 = vmatpush1.bf16.msra.mxu0 0
    %1907 = vmatprep.subr.bf16.mxu0 0
    %1908 = vmatpush1.bf16.msra.mxu0 0
    %1909 = vmatprep.subr.bf16.mxu0 0
    %1910 = vmatpush1.bf16.msra.mxu0 0
    %1911 = vmatprep.subr.bf16.mxu0 0
    %1912 = vmatpush1.bf16.msra.mxu0 0
    %1913 = vmatprep.subr.bf16.mxu0 0
    %1914 = vmatpush1.bf16.msra.mxu0 0
    %1915 = vmatprep.subr.bf16.mxu0 0
    %1916 = vmatpush1.bf16.msra.mxu0 0
    %1917 = vmatprep.subr.bf16.mxu0 0
    %1918 = vmatpush1.bf16.msra.mxu0 0
    %1919 = vmatprep.subr.bf16.mxu0 0
    %1920 = vmatpush1.bf16.msra.mxu0 0
    %1921 = vmatprep.subr.bf16.mxu0 0
    %1922 = vmatpush1.bf16.msra.mxu0 0
    %1923 = vmatprep.mubr.bf16.mxu0 0
    %1924 = vmatmul.mubr.bf16.gmra.mrb[0].mxu0 %v1889
    %v1925 = vpop.f32.mrb[0].mxu0
    %v1926 = vadd.f32 %v1875, %v1925
    %v1927 = vpop.f32.mrb[0].mxu0
    %v1928 = vpop.f32.mrb[0].mxu0
    %v1929 = vadd.f32 %v1875, %v1928
    %v1930 = vpop.f32.mrb[0].mxu0
    %1931 = vdwg.mxu0
    %v1932 = vmax.f32 %v1926, 0.0
    %v1933 = vmax.f32 %v1929, 0.0
    %v1934 = vpack.c.bf16 %v1933, %v1932
    %v1935 = vld [vmem:[%s14] sm:$0xf]
    %v1936 = vld [vmem:[%s14 + $0x4] sm:$0xf]
    %v1937 = vld [vmem:[%s14 + $0x8] sm:$0xf]
    %v1938 = vld [vmem:[%s14 + $0xc] sm:$0xf]
    %v1939 = vld [vmem:[%s14 + $0x10] sm:$0xf]
    %v1940 = vld [vmem:[%s14 + $0x14] sm:$0xf]
    %v1941 = vld [vmem:[%s14 + $0x18] sm:$0xf]
    %v1942 = vld [vmem:[%s14 + $0x1c] sm:$0xf]
    %v1943 = vlaneseq
    %v1944 = vshrl.u32 %v1943, 7
    %v1945 = vsub.s32 7, %v1944
    %v1946 = vrot.slane %v234, %v1945
    %v1955 = vunpack.c.l.b16 %v1935
    %v1956 = vunpack.c.l.b16 %v1936
    %v1957 = vunpack.c.l.b16 %v1937
    %v1958 = vunpack.c.l.b16 %v1938
    %v1959 = vunpack.c.l.b16 %v1939
    %v1960 = vunpack.c.l.b16 %v1940
    %v1961 = vunpack.c.l.b16 %v1941
    %v1962 = vunpack.c.l.b16 %v1942
    %v1963 = vpack.c.b16 %v1956, %v1955
    %v1964 = vpack.c.b16 %v1958, %v1957
    %v1965 = vpack.c.b16 %v1960, %v1959
    %v1966 = vpack.c.b16 %v1962, %v1961
    %v1972 = vsel %vm444, %v1934, 0
    %1974 = vmatprep.subr.bf16.mxu0 0
    %1975 = vmatpush1.bf16.msra.mxu0 %v1963
    %1976 = vmatprep.subr.bf16.mxu0 0
    %1977 = vmatpush1.bf16.msra.mxu0 %v1964
    %1978 = vmatprep.subr.bf16.mxu0 0
    %1979 = vmatpush1.bf16.msra.mxu0 %v1965
    %1980 = vmatprep.subr.bf16.mxu0 0
    %1981 = vmatpush1.bf16.msra.mxu0 %v1966
    %1982 = vmatprep.subr.bf16.mxu0 0
    %1983 = vmatpush1.bf16.msra.mxu0 0
    %1984 = vmatprep.subr.bf16.mxu0 0
    %1985 = vmatpush1.bf16.msra.mxu0 0
    %1986 = vmatprep.subr.bf16.mxu0 0
    %1987 = vmatpush1.bf16.msra.mxu0 0
    %1988 = vmatprep.subr.bf16.mxu0 0
    %1989 = vmatpush1.bf16.msra.mxu0 0
    %1990 = vmatprep.subr.bf16.mxu0 0
    %1991 = vmatpush1.bf16.msra.mxu0 0
    %1992 = vmatprep.subr.bf16.mxu0 0
    %1993 = vmatpush1.bf16.msra.mxu0 0
    %1994 = vmatprep.subr.bf16.mxu0 0
    %1995 = vmatpush1.bf16.msra.mxu0 0
    %1996 = vmatprep.subr.bf16.mxu0 0
    %1997 = vmatpush1.bf16.msra.mxu0 0
    %1998 = vmatprep.subr.bf16.mxu0 0
    %1999 = vmatpush1.bf16.msra.mxu0 0
    %2000 = vmatprep.subr.bf16.mxu0 0
    %2001 = vmatpush1.bf16.msra.mxu0 0
    %2002 = vmatprep.subr.bf16.mxu0 0
    %2003 = vmatpush1.bf16.msra.mxu0 0
    %2004 = vmatprep.subr.bf16.mxu0 0
    %2005 = vmatpush1.bf16.msra.mxu0 0
    %2006 = vmatprep.mubr.bf16.mxu0 0
    %2007 = vmatmul.mubr.bf16.gmra.mrb[0].mxu0 %v1972
    %v2008 = vpop.f32.mrb[0].mxu0
    %v2009 = vadd.f32 %v1946, %v2008
    %v2010 = vpop.f32.mrb[0].mxu0
    %v2011 = vpop.f32.mrb[0].mxu0
    %v2012 = vadd.f32 %v1946, %v2011
    %v2013 = vpop.f32.mrb[0].mxu0
    %2014 = vdwg.mxu0
    %v2015 = vadd.f32 %v1865, %v2009
    %v2016 = vadd.f32 %v1866, %v2012
    %v2017 = vsel %vm257, %v2015, 0.0
    %2018 = vadd.xlane.f32.xlu0 %v2017
    %v2019 = vpop.xlane.xlu0 %2018
    %v2020 = vsel %vm257, %v2016, 0.0
    %2021 = vadd.xlane.f32.xlu0 %v2020
    %v2022 = vpop.xlane.xlu0 %2021
    %v2023 = vmul.f32 %v2019, %v731
    %v2024 = vmul.f32 %v2022, %v731
    %v2025 = vmul.f32 %v2015, %v2015
    %v2026 = vmul.f32 %v2016, %v2016
    %v2027 = vsel %vm257, %v2025, 0.0
    %2028 = vadd.xlane.f32.xlu0 %v2027
    %v2029 = vpop.xlane.xlu0 %2028
    %v2030 = vsel %vm257, %v2026, 0.0
    %2031 = vadd.xlane.f32.xlu0 %v2030
    %v2032 = vpop.xlane.xlu0 %2031
    %v2033 = vmul.f32 %v2029, %v731
    %v2034 = vmul.f32 %v2032, %v731
    %v2035 = vmul.f32 %v2023, %v2023
    %v2036 = vmul.f32 %v2024, %v2024
    %v2037 = vsub.f32 %v2033, %v2035
    %v2038 = vsub.f32 %v2034, %v2036
    %v2039 = vsub.f32 %v2015, %v2023
    %v2040 = vsub.f32 %v2016, %v2024
    %v2041 = vadd.f32 %v2037, 1e-05
    %v2042 = vadd.f32 %v2038, 1e-05
    %v2043 = vrsqrt.pop %v2041
    %v2044 = vrsqrt.pop %v2042
    %v2045 = vmul.f32 %v2039, %v2043
    %v2046 = vmul.f32 %v2040, %v2044
    %v2047 = vlaneseq
    %v2048 = vshrl.u32 %v2047, 7
    %v2049 = vsub.s32 4, %v2048
    %v2050 = vrot.slane %v235, %v2049
    %v2051 = vmul.f32 %v2045, %v2050
    %v2052 = vmul.f32 %v2046, %v2050
    %v2053 = vlaneseq
    %v2054 = vshrl.u32 %v2053, 7
    %v2055 = vsub.s32 5, %v2054
    %v2056 = vrot.slane %v235, %v2055
    %v2057 = vadd.f32 %v2051, %v2056
    %v2058 = vadd.f32 %v2052, %v2056
    %s2059 = scalar_lea.vmem %s15, 16
    %v2060 = vld [vmem:[%s2059] sm:$0xff]
    %v2061 = vld [vmem:[%s2059 + $0x8] sm:$0x3f]
    %v2062 = vpack.c.bf16 %v2058, %v2057
    %s2063 = scalar_lea.vmem [#allocation10], 16
    %v2064 = vld [vmem:[%s2063] sm:$0xf]
    %v2065 = vld [vmem:[%s2063 + $0x4] sm:$0xf]
    %v2066 = vld [vmem:[%s2063 + $0x8] sm:$0xf]
    %v2067 = vld [vmem:[%s2063 + $0xc] sm:$0xf]
    %v2068 = vlaneseq
    %v2069 = vshrl.u32 %v2068, 7
    %v2070 = vsub.s32 0, %v2069
    %v2071 = vrot.slane %v2060, %v2070
    %v2076 = vunpack.c.l.b16 %v2064
    %v2077 = vunpack.c.l.b16 %v2065
    %v2078 = vunpack.c.l.b16 %v2066
    %v2079 = vunpack.c.l.b16 %v2067
    %v2080 = vpack.c.b16 %v2077, %v2076
    %v2081 = vpack.c.b16 %v2079, %v2078
    %v2085 = vsel %vm257, %v2062, 0
    %2087 = vmatprep.subr.bf16.mxu0 0
    %2088 = vmatpush1.bf16.msra.mxu0 %v2080
    %2089 = vmatprep.subr.bf16.mxu0 0
    %2090 = vmatpush1.bf16.msra.mxu0 %v2081
    %2091 = vmatprep.subr.bf16.mxu0 0
    %2092 = vmatpush1.bf16.msra.mxu0 0
    %2093 = vmatprep.subr.bf16.mxu0 0
    %2094 = vmatpush1.bf16.msra.mxu0 0
    %2095 = vmatprep.subr.bf16.mxu0 0
    %2096 = vmatpush1.bf16.msra.mxu0 0
    %2097 = vmatprep.subr.bf16.mxu0 0
    %2098 = vmatpush1.bf16.msra.mxu0 0
    %2099 = vmatprep.subr.bf16.mxu0 0
    %2100 = vmatpush1.bf16.msra.mxu0 0
    %2101 = vmatprep.subr.bf16.mxu0 0
    %2102 = vmatpush1.bf16.msra.mxu0 0
    %2103 = vmatprep.subr.bf16.mxu0 0
    %2104 = vmatpush1.bf16.msra.mxu0 0
    %2105 = vmatprep.subr.bf16.mxu0 0
    %2106 = vmatpush1.bf16.msra.mxu0 0
    %2107 = vmatprep.subr.bf16.mxu0 0
    %2108 = vmatpush1.bf16.msra.mxu0 0
    %2109 = vmatprep.subr.bf16.mxu0 0
    %2110 = vmatpush1.bf16.msra.mxu0 0
    %2111 = vmatprep.subr.bf16.mxu0 0
    %2112 = vmatpush1.bf16.msra.mxu0 0
    %2113 = vmatprep.subr.bf16.mxu0 0
    %2114 = vmatpush1.bf16.msra.mxu0 0
    %2115 = vmatprep.subr.bf16.mxu0 0
    %2116 = vmatpush1.bf16.msra.mxu0 0
    %2117 = vmatprep.subr.bf16.mxu0 0
    %2118 = vmatpush1.bf16.msra.mxu0 0
    %2119 = vmatprep.mubr.bf16.mxu0 0
    %2120 = vmatmul.mubr.bf16.gmra.mrb[0].mxu0 %v2085
    %v2121 = vpop.f32.mrb[0].mxu0
    %v2122 = vadd.f32 %v2071, %v2121
    %v2123 = vpop.f32.mrb[0].mxu0
    %v2124 = vpop.f32.mrb[0].mxu0
    %v2125 = vadd.f32 %v2071, %v2124
    %v2126 = vpop.f32.mrb[0].mxu0
    %2127 = vdwg.mxu0
    %2129 = vrot.lane.b32.xlu0 %v2122, 120
    %v2130 = vpop.permute.xlu0 %2129
    %2132 = vrot.lane.b32.xlu0 %v2122, 112
    %v2133 = vpop.permute.xlu0 %2132
    %2135 = vrot.lane.b32.xlu0 %v2122, 104
    %v2136 = vpop.permute.xlu0 %2135
    %2139 = vrot.lane.b32.xlu0 %v2125, 120
    %v2140 = vpop.permute.xlu0 %2139
    %2142 = vrot.lane.b32.xlu0 %v2125, 112
    %v2143 = vpop.permute.xlu0 %2142
    %2145 = vrot.lane.b32.xlu0 %v2125, 104
    %v2146 = vpop.permute.xlu0 %2145
    %v2148 = vpack.c.bf16 %v2130, %v2122
    %v2149 = vpack.c.bf16 %v2136, %v2133
    %v2150 = vpack.c.bf16 %v2140, %v2125
    %v2151 = vpack.c.bf16 %v2146, %v2143
    %2156 = vrot.lane.b32.xlu0 %v2148, 96
    %v2157 = vpop.permute.xlu0 %2156
    %2158 = vrot.lane.b32.xlu0 %v2149, 96
    %v2159 = vpop.permute.xlu0 %2158
    %2160 = vrot.lane.b32.xlu0 %v2150, 96
    %v2161 = vpop.permute.xlu0 %2160
    %2162 = vrot.lane.b32.xlu0 %v2151, 96
    %v2163 = vpop.permute.xlu0 %2162
    %v2165 = vsel %vm338, %v2148, 0
    %v2168 = vsel %vm338, %v2149, 0
    %v2171 = vsel %vm338, %v2150, 0
    %v2174 = vsel %vm338, %v2151, 0
    %v2177 = vsel %vm338, %v2157, 0
    %v2180 = vsel %vm338, %v2159, 0
    %v2183 = vsel %vm338, %v2161, 0
    %v2186 = vsel %vm338, %v2163, 0
    %2188 = vmatprep.subr.bf16.mxu0 0
    %2189 = vmatpush1.bf16.xpose.msra.mxu0 %v2177
    %2190 = vmatprep.subr.bf16.mxu0 0
    %2191 = vmatpush1.bf16.xpose.msra.mxu0 %v2180
    %2192 = vmatprep.subr.bf16.mxu0 0
    %2193 = vmatpush1.bf16.xpose.msra.mxu0 %v2183
    %2194 = vmatprep.subr.bf16.mxu0 0
    %2195 = vmatpush1.bf16.xpose.msra.mxu0 %v2186
    %2196 = vmatprep.subr.bf16.mxu0 0
    %2197 = vmatpush1.bf16.xpose.msra.mxu0 0
    %2198 = vmatprep.subr.bf16.mxu0 0
    %2199 = vmatpush1.bf16.xpose.msra.mxu0 0
    %2200 = vmatprep.subr.bf16.mxu0 0
    %2201 = vmatpush1.bf16.xpose.msra.mxu0 0
    %2202 = vmatprep.subr.bf16.mxu0 0
    %2203 = vmatpush1.bf16.xpose.msra.mxu0 0
    %2204 = vmatprep.subr.bf16.mxu0 0
    %2205 = vmatpush1.bf16.xpose.msra.mxu0 0
    %2206 = vmatprep.subr.bf16.mxu0 0
    %2207 = vmatpush1.bf16.xpose.msra.mxu0 0
    %2208 = vmatprep.subr.bf16.mxu0 0
    %2209 = vmatpush1.bf16.xpose.msra.mxu0 0
    %2210 = vmatprep.subr.bf16.mxu0 0
    %2211 = vmatpush1.bf16.xpose.msra.mxu0 0
    %2212 = vmatprep.subr.bf16.mxu0 0
    %2213 = vmatpush1.bf16.xpose.msra.mxu0 0
    %2214 = vmatprep.subr.bf16.mxu0 0
    %2215 = vmatpush1.bf16.xpose.msra.mxu0 0
    %2216 = vmatprep.subr.bf16.mxu0 0
    %2217 = vmatpush1.bf16.xpose.msra.mxu0 0
    %2218 = vmatprep.subr.bf16.mxu0 0
    %2219 = vmatpush1.bf16.xpose.msra.mxu0 0
    %2220 = vmatprep.mubr.bf16.mxu0 0
    %2221 = vmatmul.mubr.bf16.gmra.mrb[0].mxu0 %v2165
    %v2222 = vpop.f32.mrb[0].mxu0
    %v2223 = vadd.f32 0.0, %v2222
    %v2224 = vpop.f32.mrb[0].mxu0
    %v2225 = vpop.f32.mrb[0].mxu0
    %v2226 = vadd.f32 0.0, %v2225
    %v2227 = vpop.f32.mrb[0].mxu0
    %2228 = vmatprep.mubr.bf16.mxu0 0
    %2229 = vmatmul.mubr.bf16.gmra.mrb[0].mxu0 %v2168
    %v2230 = vpop.f32.mrb[0].mxu0
    %v2231 = vadd.f32 0.0, %v2230
    %v2232 = vpop.f32.mrb[0].mxu0
    %v2233 = vpop.f32.mrb[0].mxu0
    %v2234 = vadd.f32 0.0, %v2233
    %v2235 = vpop.f32.mrb[0].mxu0
    %2236 = vmatprep.mubr.bf16.mxu0 0
    %2237 = vmatmul.mubr.bf16.gmra.mrb[0].mxu0 %v2171
    %v2238 = vpop.f32.mrb[0].mxu0
    %v2239 = vadd.f32 0.0, %v2238
    %v2240 = vpop.f32.mrb[0].mxu0
    %v2241 = vpop.f32.mrb[0].mxu0
    %v2242 = vadd.f32 0.0, %v2241
    %v2243 = vpop.f32.mrb[0].mxu0
    %2244 = vmatprep.mubr.bf16.mxu0 0
    %2245 = vmatmul.mubr.bf16.gmra.mrb[0].mxu0 %v2174
    %v2246 = vpop.f32.mrb[0].mxu0
    %v2247 = vadd.f32 0.0, %v2246
    %v2248 = vpop.f32.mrb[0].mxu0
    %v2249 = vpop.f32.mrb[0].mxu0
    %v2250 = vadd.f32 0.0, %v2249
    %v2251 = vpop.f32.mrb[0].mxu0
    %2252 = vdwg.mxu0
    %v2253 = vmul.f32 %v2223, 0.35355338
    %v2254 = vmul.f32 %v2226, 0.35355338
    %v2255 = vmul.f32 %v2231, 0.35355338
    %v2256 = vmul.f32 %v2234, 0.35355338
    %v2257 = vmul.f32 %v2239, 0.35355338
    %v2258 = vmul.f32 %v2242, 0.35355338
    %v2259 = vmul.f32 %v2247, 0.35355338
    %v2260 = vmul.f32 %v2250, 0.35355338
    %v2261 = vadd.f32 %v2253, %v210
    %v2262 = vadd.f32 %v2254, %v211
    %v2263 = vadd.f32 %v2255, %v212
    %v2264 = vadd.f32 %v2256, %v213
    %v2265 = vadd.f32 %v2257, %v214
    %v2266 = vadd.f32 %v2258, %v215
    %v2267 = vadd.f32 %v2259, %v216
    %v2268 = vadd.f32 %v2260, %v217
    %v2269 = vsel %vm444, %v2261, -inf
    %2270 = vmax.xlane.f32.xlu0 %v2269
    %v2271 = vpop.xlane.xlu0 %2270
    %v2272 = vsel %vm444, %v2262, -inf
    %2273 = vmax.xlane.f32.xlu0 %v2272
    %v2274 = vpop.xlane.xlu0 %2273
    %v2275 = vsel %vm444, %v2263, -inf
    %2276 = vmax.xlane.f32.xlu0 %v2275
    %v2277 = vpop.xlane.xlu0 %2276
    %v2278 = vsel %vm444, %v2264, -inf
    %2279 = vmax.xlane.f32.xlu0 %v2278
    %v2280 = vpop.xlane.xlu0 %2279
    %v2281 = vsel %vm444, %v2265, -inf
    %2282 = vmax.xlane.f32.xlu0 %v2281
    %v2283 = vpop.xlane.xlu0 %2282
    %v2284 = vsel %vm444, %v2266, -inf
    %2285 = vmax.xlane.f32.xlu0 %v2284
    %v2286 = vpop.xlane.xlu0 %2285
    %v2287 = vsel %vm444, %v2267, -inf
    %2288 = vmax.xlane.f32.xlu0 %v2287
    %v2289 = vpop.xlane.xlu0 %2288
    %v2290 = vsel %vm444, %v2268, -inf
    %2291 = vmax.xlane.f32.xlu0 %v2290
    %v2292 = vpop.xlane.xlu0 %2291
    %v2293 = vsub.f32 %v2261, %v2271
    %v2294 = vsub.f32 %v2262, %v2274
    %v2295 = vsub.f32 %v2263, %v2277
    %v2296 = vsub.f32 %v2264, %v2280
    %v2297 = vsub.f32 %v2265, %v2283
    %v2298 = vsub.f32 %v2266, %v2286
    %v2299 = vsub.f32 %v2267, %v2289
    %v2300 = vsub.f32 %v2268, %v2292
    %v2301 = vmul.f32 %v2293, 1.442695
    %v2302 = vpow.pop %v2301
    %v2303 = vmul.f32 %v2294, 1.442695
    %v2304 = vpow.pop %v2303
    %v2305 = vmul.f32 %v2295, 1.442695
    %v2306 = vpow.pop %v2305
    %v2307 = vmul.f32 %v2296, 1.442695
    %v2308 = vpow.pop %v2307
    %v2309 = vmul.f32 %v2297, 1.442695
    %v2310 = vpow.pop %v2309
    %v2311 = vmul.f32 %v2298, 1.442695
    %v2312 = vpow.pop %v2311
    %v2313 = vmul.f32 %v2299, 1.442695
    %v2314 = vpow.pop %v2313
    %v2315 = vmul.f32 %v2300, 1.442695
    %v2316 = vpow.pop %v2315
    %v2317 = vsel %vm444, %v2302, 0.0
    %2318 = vadd.xlane.f32.xlu0 %v2317
    %v2319 = vpop.xlane.xlu0 %2318
    %v2320 = vsel %vm444, %v2304, 0.0
    %2321 = vadd.xlane.f32.xlu0 %v2320
    %v2322 = vpop.xlane.xlu0 %2321
    %v2323 = vsel %vm444, %v2306, 0.0
    %2324 = vadd.xlane.f32.xlu0 %v2323
    %v2325 = vpop.xlane.xlu0 %2324
    %v2326 = vsel %vm444, %v2308, 0.0
    %2327 = vadd.xlane.f32.xlu0 %v2326
    %v2328 = vpop.xlane.xlu0 %2327
    %v2329 = vsel %vm444, %v2310, 0.0
    %2330 = vadd.xlane.f32.xlu0 %v2329
    %v2331 = vpop.xlane.xlu0 %2330
    %v2332 = vsel %vm444, %v2312, 0.0
    %2333 = vadd.xlane.f32.xlu0 %v2332
    %v2334 = vpop.xlane.xlu0 %2333
    %v2335 = vsel %vm444, %v2314, 0.0
    %2336 = vadd.xlane.f32.xlu0 %v2335
    %v2337 = vpop.xlane.xlu0 %2336
    %v2338 = vsel %vm444, %v2316, 0.0
    %2339 = vadd.xlane.f32.xlu0 %v2338
    %v2340 = vpop.xlane.xlu0 %2339
    %v2341 = vrcp.pop %v2319
    %v2342 = vrcp.pop %v2322
    %v2343 = vrcp.pop %v2325
    %v2344 = vrcp.pop %v2328
    %v2345 = vrcp.pop %v2331
    %v2346 = vrcp.pop %v2334
    %v2347 = vrcp.pop %v2337
    %v2348 = vrcp.pop %v2340
    %v2349 = vmul.f32 %v2302, %v2341
    %v2350 = vmul.f32 %v2304, %v2342
    %v2351 = vmul.f32 %v2306, %v2343
    %v2352 = vmul.f32 %v2308, %v2344
    %v2353 = vmul.f32 %v2310, %v2345
    %v2354 = vmul.f32 %v2312, %v2346
    %v2355 = vmul.f32 %v2314, %v2347
    %v2356 = vmul.f32 %v2316, %v2348
    %v2357 = vpack.c.bf16 %v2350, %v2349
    %v2358 = vpack.c.bf16 %v2352, %v2351
    %v2359 = vpack.c.bf16 %v2354, %v2353
    %v2360 = vpack.c.bf16 %v2356, %v2355
    %2361 = vrot.lane.b32.xlu0 %v2148, 64
    %v2362 = vpop.permute.xlu0 %2361
    %2363 = vrot.lane.b32.xlu0 %v2149, 64
    %v2364 = vpop.permute.xlu0 %2363
    %2365 = vrot.lane.b32.xlu0 %v2150, 64
    %v2366 = vpop.permute.xlu0 %2365
    %2367 = vrot.lane.b32.xlu0 %v2151, 64
    %v2368 = vpop.permute.xlu0 %2367
    %v2374 = vsel %vm444, %v2357, 0
    %v2377 = vsel %vm444, %v2358, 0
    %v2380 = vsel %vm444, %v2359, 0
    %v2383 = vsel %vm444, %v2360, 0
    %2385 = vmatprep.subr.bf16.mxu0 0
    %2386 = vmatpush1.bf16.msra.mxu0 %v2362
    %2387 = vmatprep.subr.bf16.mxu0 0
    %2388 = vmatpush1.bf16.msra.mxu0 %v2364
    %2389 = vmatprep.subr.bf16.mxu0 0
    %2390 = vmatpush1.bf16.msra.mxu0 %v2366
    %2391 = vmatprep.subr.bf16.mxu0 0
    %2392 = vmatpush1.bf16.msra.mxu0 %v2368
    %2393 = vmatprep.subr.bf16.mxu0 0
    %2394 = vmatpush1.bf16.msra.mxu0 0
    %2395 = vmatprep.subr.bf16.mxu0 0
    %2396 = vmatpush1.bf16.msra.mxu0 0
    %2397 = vmatprep.subr.bf16.mxu0 0
    %2398 = vmatpush1.bf16.msra.mxu0 0
    %2399 = vmatprep.subr.bf16.mxu0 0
    %2400 = vmatpush1.bf16.msra.mxu0 0
    %2401 = vmatprep.subr.bf16.mxu0 0
    %2402 = vmatpush1.bf16.msra.mxu0 0
    %2403 = vmatprep.subr.bf16.mxu0 0
    %2404 = vmatpush1.bf16.msra.mxu0 0
    %2405 = vmatprep.subr.bf16.mxu0 0
    %2406 = vmatpush1.bf16.msra.mxu0 0
    %2407 = vmatprep.subr.bf16.mxu0 0
    %2408 = vmatpush1.bf16.msra.mxu0 0
    %2409 = vmatprep.subr.bf16.mxu0 0
    %2410 = vmatpush1.bf16.msra.mxu0 0
    %2411 = vmatprep.subr.bf16.mxu0 0
    %2412 = vmatpush1.bf16.msra.mxu0 0
    %2413 = vmatprep.subr.bf16.mxu0 0
    %2414 = vmatpush1.bf16.msra.mxu0 0
    %2415 = vmatprep.subr.bf16.mxu0 0
    %2416 = vmatpush1.bf16.msra.mxu0 0
    %2417 = vmatprep.mubr.bf16.mxu0 0
    %2418 = vmatmul.mubr.bf16.gmra.mrb[0].mxu0 %v2374
    %v2419 = vpop.f32.mrb[0].mxu0
    %v2420 = vadd.f32 0.0, %v2419
    %v2421 = vpop.f32.mrb[0].mxu0
    %v2422 = vpop.f32.mrb[0].mxu0
    %v2423 = vadd.f32 0.0, %v2422
    %v2424 = vpop.f32.mrb[0].mxu0
    %2425 = vmatprep.mubr.bf16.mxu0 0
    %2426 = vmatmul.mubr.bf16.gmra.mrb[0].mxu0 %v2377
    %v2427 = vpop.f32.mrb[0].mxu0
    %v2428 = vadd.f32 0.0, %v2427
    %v2429 = vpop.f32.mrb[0].mxu0
    %v2430 = vpop.f32.mrb[0].mxu0
    %v2431 = vadd.f32 0.0, %v2430
    %v2432 = vpop.f32.mrb[0].mxu0
    %2433 = vmatprep.mubr.bf16.mxu0 0
    %2434 = vmatmul.mubr.bf16.gmra.mrb[0].mxu0 %v2380
    %v2435 = vpop.f32.mrb[0].mxu0
    %v2436 = vadd.f32 0.0, %v2435
    %v2437 = vpop.f32.mrb[0].mxu0
    %v2438 = vpop.f32.mrb[0].mxu0
    %v2439 = vadd.f32 0.0, %v2438
    %v2440 = vpop.f32.mrb[0].mxu0
    %2441 = vmatprep.mubr.bf16.mxu0 0
    %2442 = vmatmul.mubr.bf16.gmra.mrb[0].mxu0 %v2383
    %v2443 = vpop.f32.mrb[0].mxu0
    %v2444 = vadd.f32 0.0, %v2443
    %v2445 = vpop.f32.mrb[0].mxu0
    %v2446 = vpop.f32.mrb[0].mxu0
    %v2447 = vadd.f32 0.0, %v2446
    %v2448 = vpop.f32.mrb[0].mxu0
    %2449 = vdwg.mxu0
    %2451 = vrot.lane.b32.xlu0 %v2423, 8
    %v2452 = vpop.permute.xlu0 %2451
    %2455 = vrot.lane.b32.xlu0 %v2428, 16
    %v2456 = vpop.permute.xlu0 %2455
    %2459 = vrot.lane.b32.xlu0 %v2431, 24
    %v2460 = vpop.permute.xlu0 %2459
    %v2462 = vsel %vm338, %v2420, %v2452
    %v2463 = vsel %vm639, %v2462, %v2456
    %v2464 = vsel %vm641, %v2463, %v2460
    %2466 = vrot.lane.b32.xlu0 %v2439, 8
    %v2467 = vpop.permute.xlu0 %2466
    %2470 = vrot.lane.b32.xlu0 %v2444, 16
    %v2471 = vpop.permute.xlu0 %2470
    %2474 = vrot.lane.b32.xlu0 %v2447, 24
    %v2475 = vpop.permute.xlu0 %2474
    %v2477 = vsel %vm338, %v2436, %v2467
    %v2478 = vsel %vm639, %v2477, %v2471
    %v2479 = vsel %vm641, %v2478, %v2475
    %v2480 = vpack.c.bf16 %v2479, %v2464
    %s2481 = scalar_lea.vmem %s10, 16
    %v2482 = vld [vmem:[%s2481] sm:$0xf]
    %v2483 = vld [vmem:[%s2481 + $0x4] sm:$0xf]
    %v2484 = vld [vmem:[%s2481 + $0x8] sm:$0xf]
    %v2485 = vld [vmem:[%s2481 + $0xc] sm:$0xf]
    %v2486 = vlaneseq
    %v2487 = vshrl.u32 %v2486, 7
    %v2488 = vsub.s32 4, %v2487
    %v2489 = vrot.slane %v2060, %v2488
    %v2494 = vunpack.c.l.b16 %v2482
    %v2495 = vunpack.c.l.b16 %v2483
    %v2496 = vunpack.c.l.b16 %v2484
    %v2497 = vunpack.c.l.b16 %v2485
    %v2498 = vpack.c.b16 %v2495, %v2494
    %v2499 = vpack.c.b16 %v2497, %v2496
    %v2503 = vsel %vm257, %v2480, 0
    %2505 = vmatprep.subr.bf16.mxu0 0
    %2506 = vmatpush1.bf16.msra.mxu0 %v2498
    %2507 = vmatprep.subr.bf16.mxu0 0
    %2508 = vmatpush1.bf16.msra.mxu0 %v2499
    %2509 = vmatprep.subr.bf16.mxu0 0
    %2510 = vmatpush1.bf16.msra.mxu0 0
    %2511 = vmatprep.subr.bf16.mxu0 0
    %2512 = vmatpush1.bf16.msra.mxu0 0
    %2513 = vmatprep.subr.bf16.mxu0 0
    %2514 = vmatpush1.bf16.msra.mxu0 0
    %2515 = vmatprep.subr.bf16.mxu0 0
    %2516 = vmatpush1.bf16.msra.mxu0 0
    %2517 = vmatprep.subr.bf16.mxu0 0
    %2518 = vmatpush1.bf16.msra.mxu0 0
    %2519 = vmatprep.subr.bf16.mxu0 0
    %2520 = vmatpush1.bf16.msra.mxu0 0
    %2521 = vmatprep.subr.bf16.mxu0 0
    %2522 = vmatpush1.bf16.msra.mxu0 0
    %2523 = vmatprep.subr.bf16.mxu0 0
    %2524 = vmatpush1.bf16.msra.mxu0 0
    %2525 = vmatprep.subr.bf16.mxu0 0
    %2526 = vmatpush1.bf16.msra.mxu0 0
    %2527 = vmatprep.subr.bf16.mxu0 0
    %2528 = vmatpush1.bf16.msra.mxu0 0
    %2529 = vmatprep.subr.bf16.mxu0 0
    %2530 = vmatpush1.bf16.msra.mxu0 0
    %2531 = vmatprep.subr.bf16.mxu0 0
    %2532 = vmatpush1.bf16.msra.mxu0 0
    %2533 = vmatprep.subr.bf16.mxu0 0
    %2534 = vmatpush1.bf16.msra.mxu0 0
    %2535 = vmatprep.subr.bf16.mxu0 0
    %2536 = vmatpush1.bf16.msra.mxu0 0
    %2537 = vmatprep.mubr.bf16.mxu0 0
    %2538 = vmatmul.mubr.bf16.gmra.mrb[0].mxu0 %v2503
    %v2539 = vpop.f32.mrb[0].mxu0
    %v2540 = vadd.f32 %v2489, %v2539
    %v2541 = vpop.f32.mrb[0].mxu0
    %v2542 = vpop.f32.mrb[0].mxu0
    %v2543 = vadd.f32 %v2489, %v2542
    %v2544 = vpop.f32.mrb[0].mxu0
    %2545 = vdwg.mxu0
    %v2546 = vadd.f32 %v2057, %v2540
    %v2547 = vadd.f32 %v2058, %v2543
    %v2548 = vsel %vm257, %v2546, 0.0
    %2549 = vadd.xlane.f32.xlu0 %v2548
    %v2550 = vpop.xlane.xlu0 %2549
    %v2551 = vsel %vm257, %v2547, 0.0
    %2552 = vadd.xlane.f32.xlu0 %v2551
    %v2553 = vpop.xlane.xlu0 %2552
    %v2554 = vmul.f32 %v2550, %v731
    %v2555 = vmul.f32 %v2553, %v731
    %v2556 = vmul.f32 %v2546, %v2546
    %v2557 = vmul.f32 %v2547, %v2547
    %v2558 = vsel %vm257, %v2556, 0.0
    %2559 = vadd.xlane.f32.xlu0 %v2558
    %v2560 = vpop.xlane.xlu0 %2559
    %v2561 = vsel %vm257, %v2557, 0.0
    %2562 = vadd.xlane.f32.xlu0 %v2561
    %v2563 = vpop.xlane.xlu0 %2562
    %v2564 = vmul.f32 %v2560, %v731
    %v2565 = vmul.f32 %v2563, %v731
    %v2566 = vmul.f32 %v2554, %v2554
    %v2567 = vmul.f32 %v2555, %v2555
    %v2568 = vsub.f32 %v2564, %v2566
    %v2569 = vsub.f32 %v2565, %v2567
    %v2570 = vsub.f32 %v2546, %v2554
    %v2571 = vsub.f32 %v2547, %v2555
    %v2572 = vadd.f32 %v2568, 1e-05
    %v2573 = vadd.f32 %v2569, 1e-05
    %v2574 = vrsqrt.pop %v2572
    %v2575 = vrsqrt.pop %v2573
    %v2576 = vmul.f32 %v2570, %v2574
    %v2577 = vmul.f32 %v2571, %v2575
    %v2578 = vlaneseq
    %v2579 = vshrl.u32 %v2578, 7
    %v2580 = vsub.s32 0, %v2579
    %v2581 = vrot.slane %v2061, %v2580
    %v2582 = vmul.f32 %v2576, %v2581
    %v2583 = vmul.f32 %v2577, %v2581
    %v2584 = vlaneseq
    %v2585 = vshrl.u32 %v2584, 7
    %v2586 = vsub.s32 1, %v2585
    %v2587 = vrot.slane %v2061, %v2586
    %v2588 = vadd.f32 %v2582, %v2587
    %v2589 = vadd.f32 %v2583, %v2587
    %v2590 = vpack.c.bf16 %v2589, %v2588
    %s2591 = scalar_lea.vmem [#allocation11], 16
    %v2592 = vld [vmem:[%s2591] sm:$0xf]
    %v2593 = vld [vmem:[%s2591 + $0x4] sm:$0xf]
    %v2594 = vld [vmem:[%s2591 + $0x8] sm:$0xf]
    %v2595 = vld [vmem:[%s2591 + $0xc] sm:$0xf]
    %v2596 = vlaneseq
    %v2597 = vshrl.u32 %v2596, 7
    %v2598 = vsub.s32 1, %v2597
    %v2599 = vrot.slane %v2060, %v2598
    %v2604 = vunpack.c.l.b16 %v2592
    %v2605 = vunpack.c.l.b16 %v2593
    %v2606 = vunpack.c.l.b16 %v2594
    %v2607 = vunpack.c.l.b16 %v2595
    %v2608 = vpack.c.b16 %v2605, %v2604
    %v2609 = vpack.c.b16 %v2607, %v2606
    %v2613 = vsel %vm257, %v2590, 0
    %2615 = vmatprep.subr.bf16.mxu0 0
    %2616 = vmatpush1.bf16.msra.mxu0 %v2608
    %2617 = vmatprep.subr.bf16.mxu0 0
    %2618 = vmatpush1.bf16.msra.mxu0 %v2609
    %2619 = vmatprep.subr.bf16.mxu0 0
    %2620 = vmatpush1.bf16.msra.mxu0 0
    %2621 = vmatprep.subr.bf16.mxu0 0
    %2622 = vmatpush1.bf16.msra.mxu0 0
    %2623 = vmatprep.subr.bf16.mxu0 0
    %2624 = vmatpush1.bf16.msra.mxu0 0
    %2625 = vmatprep.subr.bf16.mxu0 0
    %2626 = vmatpush1.bf16.msra.mxu0 0
    %2627 = vmatprep.subr.bf16.mxu0 0
    %2628 = vmatpush1.bf16.msra.mxu0 0
    %2629 = vmatprep.subr.bf16.mxu0 0
    %2630 = vmatpush1.bf16.msra.mxu0 0
    %2631 = vmatprep.subr.bf16.mxu0 0
    %2632 = vmatpush1.bf16.msra.mxu0 0
    %2633 = vmatprep.subr.bf16.mxu0 0
    %2634 = vmatpush1.bf16.msra.mxu0 0
    %2635 = vmatprep.subr.bf16.mxu0 0
    %2636 = vmatpush1.bf16.msra.mxu0 0
    %2637 = vmatprep.subr.bf16.mxu0 0
    %2638 = vmatpush1.bf16.msra.mxu0 0
    %2639 = vmatprep.subr.bf16.mxu0 0
    %2640 = vmatpush1.bf16.msra.mxu0 0
    %2641 = vmatprep.subr.bf16.mxu0 0
    %2642 = vmatpush1.bf16.msra.mxu0 0
    %2643 = vmatprep.subr.bf16.mxu0 0
    %2644 = vmatpush1.bf16.msra.mxu0 0
    %2645 = vmatprep.subr.bf16.mxu0 0
    %2646 = vmatpush1.bf16.msra.mxu0 0
    %2647 = vmatprep.mubr.bf16.mxu0 0
    %2648 = vmatmul.mubr.bf16.gmra.mrb[0].mxu0 %v2613
    %v2649 = vpop.f32.mrb[0].mxu0
    %v2650 = vadd.f32 %v2599, %v2649
    %v2651 = vpop.f32.mrb[0].mxu0
    %v2652 = vpop.f32.mrb[0].mxu0
    %v2653 = vadd.f32 %v2599, %v2652
    %v2654 = vpop.f32.mrb[0].mxu0
    %2655 = vdwg.mxu0
    %s2656 = scalar_lea.vmem [#allocation13], 16
    %v2657 = vld [vmem:[%s2656] sm:$0xf]
    %v2658 = vld [vmem:[%s2656 + $0x4] sm:$0xf]
    %v2659 = vld [vmem:[%s2656 + $0x8] sm:$0xf]
    %v2660 = vld [vmem:[%s2656 + $0xc] sm:$0xf]
    %v2661 = vlaneseq
    %v2662 = vshrl.u32 %v2661, 7
    %v2663 = vsub.s32 2, %v2662
    %v2664 = vrot.slane %v2060, %v2663
    %v2669 = vunpack.c.l.b16 %v2657
    %v2670 = vunpack.c.l.b16 %v2658
    %v2671 = vunpack.c.l.b16 %v2659
    %v2672 = vunpack.c.l.b16 %v2660
    %v2673 = vpack.c.b16 %v2670, %v2669
    %v2674 = vpack.c.b16 %v2672, %v2671
    %2677 = vmatprep.subr.bf16.mxu0 0
    %2678 = vmatpush1.bf16.msra.mxu0 %v2673
    %2679 = vmatprep.subr.bf16.mxu0 0
    %2680 = vmatpush1.bf16.msra.mxu0 %v2674
    %2681 = vmatprep.subr.bf16.mxu0 0
    %2682 = vmatpush1.bf16.msra.mxu0 0
    %2683 = vmatprep.subr.bf16.mxu0 0
    %2684 = vmatpush1.bf16.msra.mxu0 0
    %2685 = vmatprep.subr.bf16.mxu0 0
    %2686 = vmatpush1.bf16.msra.mxu0 0
    %2687 = vmatprep.subr.bf16.mxu0 0
    %2688 = vmatpush1.bf16.msra.mxu0 0
    %2689 = vmatprep.subr.bf16.mxu0 0
    %2690 = vmatpush1.bf16.msra.mxu0 0
    %2691 = vmatprep.subr.bf16.mxu0 0
    %2692 = vmatpush1.bf16.msra.mxu0 0
    %2693 = vmatprep.subr.bf16.mxu0 0
    %2694 = vmatpush1.bf16.msra.mxu0 0
    %2695 = vmatprep.subr.bf16.mxu0 0
    %2696 = vmatpush1.bf16.msra.mxu0 0
    %2697 = vmatprep.subr.bf16.mxu0 0
    %2698 = vmatpush1.bf16.msra.mxu0 0
    %2699 = vmatprep.subr.bf16.mxu0 0
    %2700 = vmatpush1.bf16.msra.mxu0 0
    %2701 = vmatprep.subr.bf16.mxu0 0
    %2702 = vmatpush1.bf16.msra.mxu0 0
    %2703 = vmatprep.subr.bf16.mxu0 0
    %2704 = vmatpush1.bf16.msra.mxu0 0
    %2705 = vmatprep.subr.bf16.mxu0 0
    %2706 = vmatpush1.bf16.msra.mxu0 0
    %2707 = vmatprep.subr.bf16.mxu0 0
    %2708 = vmatpush1.bf16.msra.mxu0 0
    %2709 = vmatprep.mubr.bf16.mxu0 0
    %2710 = vmatmul.mubr.bf16.gmra.mrb[0].mxu0 %v859
    %v2711 = vpop.f32.mrb[0].mxu0
    %v2712 = vadd.f32 %v2664, %v2711
    %v2713 = vpop.f32.mrb[0].mxu0
    %v2714 = vpop.f32.mrb[0].mxu0
    %v2715 = vadd.f32 %v2664, %v2714
    %v2716 = vpop.f32.mrb[0].mxu0
    %2717 = vdwg.mxu0
    %s2718 = scalar_lea.vmem [#allocation14], 16
    %v2719 = vld [vmem:[%s2718] sm:$0xf]
    %v2720 = vld [vmem:[%s2718 + $0x4] sm:$0xf]
    %v2721 = vld [vmem:[%s2718 + $0x8] sm:$0xf]
    %v2722 = vld [vmem:[%s2718 + $0xc] sm:$0xf]
    %v2723 = vlaneseq
    %v2724 = vshrl.u32 %v2723, 7
    %v2725 = vsub.s32 3, %v2724
    %v2726 = vrot.slane %v2060, %v2725
    %v2731 = vunpack.c.l.b16 %v2719
    %v2732 = vunpack.c.l.b16 %v2720
    %v2733 = vunpack.c.l.b16 %v2721
    %v2734 = vunpack.c.l.b16 %v2722
    %v2735 = vpack.c.b16 %v2732, %v2731
    %v2736 = vpack.c.b16 %v2734, %v2733
    %2739 = vmatprep.subr.bf16.mxu0 0
    %2740 = vmatpush1.bf16.msra.mxu0 %v2735
    %2741 = vmatprep.subr.bf16.mxu0 0
    %2742 = vmatpush1.bf16.msra.mxu0 %v2736
    %2743 = vmatprep.subr.bf16.mxu0 0
    %2744 = vmatpush1.bf16.msra.mxu0 0
    %2745 = vmatprep.subr.bf16.mxu0 0
    %2746 = vmatpush1.bf16.msra.mxu0 0
    %2747 = vmatprep.subr.bf16.mxu0 0
    %2748 = vmatpush1.bf16.msra.mxu0 0
    %2749 = vmatprep.subr.bf16.mxu0 0
    %2750 = vmatpush1.bf16.msra.mxu0 0
    %2751 = vmatprep.subr.bf16.mxu0 0
    %2752 = vmatpush1.bf16.msra.mxu0 0
    %2753 = vmatprep.subr.bf16.mxu0 0
    %2754 = vmatpush1.bf16.msra.mxu0 0
    %2755 = vmatprep.subr.bf16.mxu0 0
    %2756 = vmatpush1.bf16.msra.mxu0 0
    %2757 = vmatprep.subr.bf16.mxu0 0
    %2758 = vmatpush1.bf16.msra.mxu0 0
    %2759 = vmatprep.subr.bf16.mxu0 0
    %2760 = vmatpush1.bf16.msra.mxu0 0
    %2761 = vmatprep.subr.bf16.mxu0 0
    %2762 = vmatpush1.bf16.msra.mxu0 0
    %2763 = vmatprep.subr.bf16.mxu0 0
    %2764 = vmatpush1.bf16.msra.mxu0 0
    %2765 = vmatprep.subr.bf16.mxu0 0
    %2766 = vmatpush1.bf16.msra.mxu0 0
    %2767 = vmatprep.subr.bf16.mxu0 0
    %2768 = vmatpush1.bf16.msra.mxu0 0
    %2769 = vmatprep.subr.bf16.mxu0 0
    %2770 = vmatpush1.bf16.msra.mxu0 0
    %2771 = vmatprep.mubr.bf16.mxu0 0
    %2772 = vmatmul.mubr.bf16.gmra.mrb[0].mxu0 %v928
    %v2773 = vpop.f32.mrb[0].mxu0
    %v2774 = vadd.f32 %v2726, %v2773
    %v2775 = vpop.f32.mrb[0].mxu0
    %v2776 = vpop.f32.mrb[0].mxu0
    %v2777 = vadd.f32 %v2726, %v2776
    %v2778 = vpop.f32.mrb[0].mxu0
    %2779 = vdwg.mxu0
    %2781 = vrot.lane.b32.xlu0 %v2650, 120
    %v2782 = vpop.permute.xlu0 %2781
    %2784 = vrot.lane.b32.xlu0 %v2650, 112
    %v2785 = vpop.permute.xlu0 %2784
    %2787 = vrot.lane.b32.xlu0 %v2650, 104
    %v2788 = vpop.permute.xlu0 %2787
    %2791 = vrot.lane.b32.xlu0 %v2653, 120
    %v2792 = vpop.permute.xlu0 %2791
    %2794 = vrot.lane.b32.xlu0 %v2653, 112
    %v2795 = vpop.permute.xlu0 %2794
    %2797 = vrot.lane.b32.xlu0 %v2653, 104
    %v2798 = vpop.permute.xlu0 %2797
    %v2800 = vpack.c.bf16 %v2782, %v2650
    %v2801 = vpack.c.bf16 %v2788, %v2785
    %v2802 = vpack.c.bf16 %v2792, %v2653
    %v2803 = vpack.c.bf16 %v2798, %v2795
    %2805 = vrot.lane.b32.xlu0 %v2712, 120
    %v2806 = vpop.permute.xlu0 %2805
    %2808 = vrot.lane.b32.xlu0 %v2712, 112
    %v2809 = vpop.permute.xlu0 %2808
    %2811 = vrot.lane.b32.xlu0 %v2712, 104
    %v2812 = vpop.permute.xlu0 %2811
    %2815 = vrot.lane.b32.xlu0 %v2715, 120
    %v2816 = vpop.permute.xlu0 %2815
    %2818 = vrot.lane.b32.xlu0 %v2715, 112
    %v2819 = vpop.permute.xlu0 %2818
    %2821 = vrot.lane.b32.xlu0 %v2715, 104
    %v2822 = vpop.permute.xlu0 %2821
    %v2824 = vpack.c.bf16 %v2806, %v2712
    %v2825 = vpack.c.bf16 %v2812, %v2809
    %v2826 = vpack.c.bf16 %v2816, %v2715
    %v2827 = vpack.c.bf16 %v2822, %v2819
    %v2829 = vsel %vm338, %v2800, 0
    %v2832 = vsel %vm338, %v2801, 0
    %v2835 = vsel %vm338, %v2802, 0
    %v2838 = vsel %vm338, %v2803, 0
    %v2841 = vsel %vm338, %v2824, 0
    %v2844 = vsel %vm338, %v2825, 0
    %v2847 = vsel %vm338, %v2826, 0
    %v2850 = vsel %vm338, %v2827, 0
    %2852 = vmatprep.subr.bf16.mxu0 0
    %2853 = vmatpush1.bf16.xpose.msra.mxu0 %v2841
    %2854 = vmatprep.subr.bf16.mxu0 0
    %2855 = vmatpush1.bf16.xpose.msra.mxu0 %v2844
    %2856 = vmatprep.subr.bf16.mxu0 0
    %2857 = vmatpush1.bf16.xpose.msra.mxu0 %v2847
    %2858 = vmatprep.subr.bf16.mxu0 0
    %2859 = vmatpush1.bf16.xpose.msra.mxu0 %v2850
    %2860 = vmatprep.subr.bf16.mxu0 0
    %2861 = vmatpush1.bf16.xpose.msra.mxu0 0
    %2862 = vmatprep.subr.bf16.mxu0 0
    %2863 = vmatpush1.bf16.xpose.msra.mxu0 0
    %2864 = vmatprep.subr.bf16.mxu0 0
    %2865 = vmatpush1.bf16.xpose.msra.mxu0 0
    %2866 = vmatprep.subr.bf16.mxu0 0
    %2867 = vmatpush1.bf16.xpose.msra.mxu0 0
    %2868 = vmatprep.subr.bf16.mxu0 0
    %2869 = vmatpush1.bf16.xpose.msra.mxu0 0
    %2870 = vmatprep.subr.bf16.mxu0 0
    %2871 = vmatpush1.bf16.xpose.msra.mxu0 0
    %2872 = vmatprep.subr.bf16.mxu0 0
    %2873 = vmatpush1.bf16.xpose.msra.mxu0 0
    %2874 = vmatprep.subr.bf16.mxu0 0
    %2875 = vmatpush1.bf16.xpose.msra.mxu0 0
    %2876 = vmatprep.subr.bf16.mxu0 0
    %2877 = vmatpush1.bf16.xpose.msra.mxu0 0
    %2878 = vmatprep.subr.bf16.mxu0 0
    %2879 = vmatpush1.bf16.xpose.msra.mxu0 0
    %2880 = vmatprep.subr.bf16.mxu0 0
    %2881 = vmatpush1.bf16.xpose.msra.mxu0 0
    %2882 = vmatprep.subr.bf16.mxu0 0
    %2883 = vmatpush1.bf16.xpose.msra.mxu0 0
    %2884 = vmatprep.mubr.bf16.mxu0 0
    %2885 = vmatmul.mubr.bf16.gmra.mrb[0].mxu0 %v2829
    %v2886 = vpop.f32.mrb[0].mxu0
    %v2887 = vadd.f32 0.0, %v2886
    %v2888 = vpop.f32.mrb[0].mxu0
    %v2889 = vpop.f32.mrb[0].mxu0
    %v2890 = vadd.f32 0.0, %v2889
    %v2891 = vpop.f32.mrb[0].mxu0
    %2892 = vmatprep.mubr.bf16.mxu0 0
    %2893 = vmatmul.mubr.bf16.gmra.mrb[0].mxu0 %v2832
    %v2894 = vpop.f32.mrb[0].mxu0
    %v2895 = vadd.f32 0.0, %v2894
    %v2896 = vpop.f32.mrb[0].mxu0
    %v2897 = vpop.f32.mrb[0].mxu0
    %v2898 = vadd.f32 0.0, %v2897
    %v2899 = vpop.f32.mrb[0].mxu0
    %2900 = vmatprep.mubr.bf16.mxu0 0
    %2901 = vmatmul.mubr.bf16.gmra.mrb[0].mxu0 %v2835
    %v2902 = vpop.f32.mrb[0].mxu0
    %v2903 = vadd.f32 0.0, %v2902
    %v2904 = vpop.f32.mrb[0].mxu0
    %v2905 = vpop.f32.mrb[0].mxu0
    %v2906 = vadd.f32 0.0, %v2905
    %v2907 = vpop.f32.mrb[0].mxu0
    %2908 = vmatprep.mubr.bf16.mxu0 0
    %2909 = vmatmul.mubr.bf16.gmra.mrb[0].mxu0 %v2838
    %v2910 = vpop.f32.mrb[0].mxu0
    %v2911 = vadd.f32 0.0, %v2910
    %v2912 = vpop.f32.mrb[0].mxu0
    %v2913 = vpop.f32.mrb[0].mxu0
    %v2914 = vadd.f32 0.0, %v2913
    %v2915 = vpop.f32.mrb[0].mxu0
    %2916 = vdwg.mxu0
    %v2917 = vmul.f32 %v2887, 0.35355338
    %v2918 = vmul.f32 %v2890, 0.35355338
    %v2919 = vmul.f32 %v2895, 0.35355338
    %v2920 = vmul.f32 %v2898, 0.35355338
    %v2921 = vmul.f32 %v2903, 0.35355338
    %v2922 = vmul.f32 %v2906, 0.35355338
    %v2923 = vmul.f32 %v2911, 0.35355338
    %v2924 = vmul.f32 %v2914, 0.35355338
    %v2925 = vadd.f32 %v2917, %v218
    %v2926 = vadd.f32 %v2918, %v219
    %v2927 = vadd.f32 %v2919, %v220
    %v2928 = vadd.f32 %v2920, %v221
    %v2929 = vadd.f32 %v2921, %v222
    %v2930 = vadd.f32 %v2922, %v223
    %v2931 = vadd.f32 %v2923, %v224
    %v2932 = vadd.f32 %v2924, %v225
    %v2933 = vsel %vm444, %v2925, -inf
    %2934 = vmax.xlane.f32.xlu0 %v2933
    %v2935 = vpop.xlane.xlu0 %2934
    %v2936 = vsel %vm444, %v2926, -inf
    %2937 = vmax.xlane.f32.xlu0 %v2936
    %v2938 = vpop.xlane.xlu0 %2937
    %v2939 = vsel %vm444, %v2927, -inf
    %2940 = vmax.xlane.f32.xlu0 %v2939
    %v2941 = vpop.xlane.xlu0 %2940
    %v2942 = vsel %vm444, %v2928, -inf
    %2943 = vmax.xlane.f32.xlu0 %v2942
    %v2944 = vpop.xlane.xlu0 %2943
    %v2945 = vsel %vm444, %v2929, -inf
    %2946 = vmax.xlane.f32.xlu0 %v2945
    %v2947 = vpop.xlane.xlu0 %2946
    %v2948 = vsel %vm444, %v2930, -inf
    %2949 = vmax.xlane.f32.xlu0 %v2948
    %v2950 = vpop.xlane.xlu0 %2949
    %v2951 = vsel %vm444, %v2931, -inf
    %2952 = vmax.xlane.f32.xlu0 %v2951
    %v2953 = vpop.xlane.xlu0 %2952
    %v2954 = vsel %vm444, %v2932, -inf
    %2955 = vmax.xlane.f32.xlu0 %v2954
    %v2956 = vpop.xlane.xlu0 %2955
    %v2957 = vsub.f32 %v2925, %v2935
    %v2958 = vsub.f32 %v2926, %v2938
    %v2959 = vsub.f32 %v2927, %v2941
    %v2960 = vsub.f32 %v2928, %v2944
    %v2961 = vsub.f32 %v2929, %v2947
    %v2962 = vsub.f32 %v2930, %v2950
    %v2963 = vsub.f32 %v2931, %v2953
    %v2964 = vsub.f32 %v2932, %v2956
    %v2965 = vmul.f32 %v2957, 1.442695
    %v2966 = vpow.pop %v2965
    %v2967 = vmul.f32 %v2958, 1.442695
    %v2968 = vpow.pop %v2967
    %v2969 = vmul.f32 %v2959, 1.442695
    %v2970 = vpow.pop %v2969
    %v2971 = vmul.f32 %v2960, 1.442695
    %v2972 = vpow.pop %v2971
    %v2973 = vmul.f32 %v2961, 1.442695
    %v2974 = vpow.pop %v2973
    %v2975 = vmul.f32 %v2962, 1.442695
    %v2976 = vpow.pop %v2975
    %v2977 = vmul.f32 %v2963, 1.442695
    %v2978 = vpow.pop %v2977
    %v2979 = vmul.f32 %v2964, 1.442695
    %v2980 = vpow.pop %v2979
    %v2981 = vsel %vm444, %v2966, 0.0
    %2982 = vadd.xlane.f32.xlu0 %v2981
    %v2983 = vpop.xlane.xlu0 %2982
    %v2984 = vsel %vm444, %v2968, 0.0
    %2985 = vadd.xlane.f32.xlu0 %v2984
    %v2986 = vpop.xlane.xlu0 %2985
    %v2987 = vsel %vm444, %v2970, 0.0
    %2988 = vadd.xlane.f32.xlu0 %v2987
    %v2989 = vpop.xlane.xlu0 %2988
    %v2990 = vsel %vm444, %v2972, 0.0
    %2991 = vadd.xlane.f32.xlu0 %v2990
    %v2992 = vpop.xlane.xlu0 %2991
    %v2993 = vsel %vm444, %v2974, 0.0
    %2994 = vadd.xlane.f32.xlu0 %v2993
    %v2995 = vpop.xlane.xlu0 %2994
    %v2996 = vsel %vm444, %v2976, 0.0
    %2997 = vadd.xlane.f32.xlu0 %v2996
    %v2998 = vpop.xlane.xlu0 %2997
    %v2999 = vsel %vm444, %v2978, 0.0
    %3000 = vadd.xlane.f32.xlu0 %v2999
    %v3001 = vpop.xlane.xlu0 %3000
    %v3002 = vsel %vm444, %v2980, 0.0
    %3003 = vadd.xlane.f32.xlu0 %v3002
    %v3004 = vpop.xlane.xlu0 %3003
    %v3005 = vrcp.pop %v2983
    %v3006 = vrcp.pop %v2986
    %v3007 = vrcp.pop %v2989
    %v3008 = vrcp.pop %v2992
    %v3009 = vrcp.pop %v2995
    %v3010 = vrcp.pop %v2998
    %v3011 = vrcp.pop %v3001
    %v3012 = vrcp.pop %v3004
    %v3013 = vmul.f32 %v2966, %v3005
    %v3014 = vmul.f32 %v2968, %v3006
    %v3015 = vmul.f32 %v2970, %v3007
    %v3016 = vmul.f32 %v2972, %v3008
    %v3017 = vmul.f32 %v2974, %v3009
    %v3018 = vmul.f32 %v2976, %v3010
    %v3019 = vmul.f32 %v2978, %v3011
    %v3020 = vmul.f32 %v2980, %v3012
    %v3021 = vpack.c.bf16 %v3014, %v3013
    %v3022 = vpack.c.bf16 %v3016, %v3015
    %v3023 = vpack.c.bf16 %v3018, %v3017
    %v3024 = vpack.c.bf16 %v3020, %v3019
    %3029 = vrot.lane.b32.xlu0 %v2824, 96
    %v3030 = vpop.permute.xlu0 %3029
    %3031 = vrot.lane.b32.xlu0 %v2825, 96
    %v3032 = vpop.permute.xlu0 %3031
    %3033 = vrot.lane.b32.xlu0 %v2826, 96
    %v3034 = vpop.permute.xlu0 %3033
    %3035 = vrot.lane.b32.xlu0 %v2827, 96
    %v3036 = vpop.permute.xlu0 %3035
    %v3042 = vsel %vm444, %v3021, 0
    %v3045 = vsel %vm444, %v3022, 0
    %v3048 = vsel %vm444, %v3023, 0
    %v3051 = vsel %vm444, %v3024, 0
    %3053 = vmatprep.subr.bf16.mxu0 0
    %3054 = vmatpush1.bf16.msra.mxu0 %v3030
    %3055 = vmatprep.subr.bf16.mxu0 0
    %3056 = vmatpush1.bf16.msra.mxu0 %v3032
    %3057 = vmatprep.subr.bf16.mxu0 0
    %3058 = vmatpush1.bf16.msra.mxu0 %v3034
    %3059 = vmatprep.subr.bf16.mxu0 0
    %3060 = vmatpush1.bf16.msra.mxu0 %v3036
    %3061 = vmatprep.subr.bf16.mxu0 0
    %3062 = vmatpush1.bf16.msra.mxu0 0
    %3063 = vmatprep.subr.bf16.mxu0 0
    %3064 = vmatpush1.bf16.msra.mxu0 0
    %3065 = vmatprep.subr.bf16.mxu0 0
    %3066 = vmatpush1.bf16.msra.mxu0 0
    %3067 = vmatprep.subr.bf16.mxu0 0
    %3068 = vmatpush1.bf16.msra.mxu0 0
    %3069 = vmatprep.subr.bf16.mxu0 0
    %3070 = vmatpush1.bf16.msra.mxu0 0
    %3071 = vmatprep.subr.bf16.mxu0 0
    %3072 = vmatpush1.bf16.msra.mxu0 0
    %3073 = vmatprep.subr.bf16.mxu0 0
    %3074 = vmatpush1.bf16.msra.mxu0 0
    %3075 = vmatprep.subr.bf16.mxu0 0
    %3076 = vmatpush1.bf16.msra.mxu0 0
    %3077 = vmatprep.subr.bf16.mxu0 0
    %3078 = vmatpush1.bf16.msra.mxu0 0
    %3079 = vmatprep.subr.bf16.mxu0 0
    %3080 = vmatpush1.bf16.msra.mxu0 0
    %3081 = vmatprep.subr.bf16.mxu0 0
    %3082 = vmatpush1.bf16.msra.mxu0 0
    %3083 = vmatprep.subr.bf16.mxu0 0
    %3084 = vmatpush1.bf16.msra.mxu0 0
    %3085 = vmatprep.mubr.bf16.mxu0 0
    %3086 = vmatmul.mubr.bf16.gmra.mrb[0].mxu0 %v3042
    %v3087 = vpop.f32.mrb[0].mxu0
    %v3088 = vadd.f32 0.0, %v3087
    %v3089 = vpop.f32.mrb[0].mxu0
    %v3090 = vpop.f32.mrb[0].mxu0
    %v3091 = vadd.f32 0.0, %v3090
    %v3092 = vpop.f32.mrb[0].mxu0
    %3093 = vmatprep.mubr.bf16.mxu0 0
    %3094 = vmatmul.mubr.bf16.gmra.mrb[0].mxu0 %v3045
    %v3095 = vpop.f32.mrb[0].mxu0
    %v3096 = vadd.f32 0.0, %v3095
    %v3097 = vpop.f32.mrb[0].mxu0
    %v3098 = vpop.f32.mrb[0].mxu0
    %v3099 = vadd.f32 0.0, %v3098
    %v3100 = vpop.f32.mrb[0].mxu0
    %3101 = vmatprep.mubr.bf16.mxu0 0
    %3102 = vmatmul.mubr.bf16.gmra.mrb[0].mxu0 %v3048
    %v3103 = vpop.f32.mrb[0].mxu0
    %v3104 = vadd.f32 0.0, %v3103
    %v3105 = vpop.f32.mrb[0].mxu0
    %v3106 = vpop.f32.mrb[0].mxu0
    %v3107 = vadd.f32 0.0, %v3106
    %v3108 = vpop.f32.mrb[0].mxu0
    %3109 = vmatprep.mubr.bf16.mxu0 0
    %3110 = vmatmul.mubr.bf16.gmra.mrb[0].mxu0 %v3051
    %v3111 = vpop.f32.mrb[0].mxu0
    %v3112 = vadd.f32 0.0, %v3111
    %v3113 = vpop.f32.mrb[0].mxu0
    %v3114 = vpop.f32.mrb[0].mxu0
    %v3115 = vadd.f32 0.0, %v3114
    %v3116 = vpop.f32.mrb[0].mxu0
    %3117 = vdwg.mxu0
    %3119 = vrot.lane.b32.xlu0 %v3091, 8
    %v3120 = vpop.permute.xlu0 %3119
    %3123 = vrot.lane.b32.xlu0 %v3096, 16
    %v3124 = vpop.permute.xlu0 %3123
    %3127 = vrot.lane.b32.xlu0 %v3099, 24
    %v3128 = vpop.permute.xlu0 %3127
    %v3130 = vsel %vm338, %v3088, %v3120
    %v3131 = vsel %vm639, %v3130, %v3124
    %v3132 = vsel %vm641, %v3131, %v3128
    %3134 = vrot.lane.b32.xlu0 %v3107, 8
    %v3135 = vpop.permute.xlu0 %3134
    %3138 = vrot.lane.b32.xlu0 %v3112, 16
    %v3139 = vpop.permute.xlu0 %3138
    %3142 = vrot.lane.b32.xlu0 %v3115, 24
    %v3143 = vpop.permute.xlu0 %3142
    %v3145 = vsel %vm338, %v3104, %v3135
    %v3146 = vsel %vm639, %v3145, %v3139
    %v3147 = vsel %vm641, %v3146, %v3143
    %3149 = vrot.lane.b32.xlu0 %v2774, 120
    %v3150 = vpop.permute.xlu0 %3149
    %3152 = vrot.lane.b32.xlu0 %v2774, 112
    %v3153 = vpop.permute.xlu0 %3152
    %3155 = vrot.lane.b32.xlu0 %v2774, 104
    %v3156 = vpop.permute.xlu0 %3155
    %3159 = vrot.lane.b32.xlu0 %v2777, 120
    %v3160 = vpop.permute.xlu0 %3159
    %3162 = vrot.lane.b32.xlu0 %v2777, 112
    %v3163 = vpop.permute.xlu0 %3162
    %3165 = vrot.lane.b32.xlu0 %v2777, 104
    %v3166 = vpop.permute.xlu0 %3165
    %v3168 = vpack.c.bf16 %v3150, %v2774
    %v3169 = vpack.c.bf16 %v3156, %v3153
    %v3170 = vpack.c.bf16 %v3160, %v2777
    %v3171 = vpack.c.bf16 %v3166, %v3163
    %3176 = vrot.lane.b32.xlu0 %v2800, 96
    %v3177 = vpop.permute.xlu0 %3176
    %3178 = vrot.lane.b32.xlu0 %v2801, 96
    %v3179 = vpop.permute.xlu0 %3178
    %3180 = vrot.lane.b32.xlu0 %v2802, 96
    %v3181 = vpop.permute.xlu0 %3180
    %3182 = vrot.lane.b32.xlu0 %v2803, 96
    %v3183 = vpop.permute.xlu0 %3182
    %v3185 = vsel %vm338, %v3177, 0
    %v3188 = vsel %vm338, %v3179, 0
    %v3191 = vsel %vm338, %v3181, 0
    %v3194 = vsel %vm338, %v3183, 0
    %v3197 = vsel %vm338, %v3168, 0
    %v3200 = vsel %vm338, %v3169, 0
    %v3203 = vsel %vm338, %v3170, 0
    %v3206 = vsel %vm338, %v3171, 0
    %3208 = vmatprep.subr.bf16.mxu0 0
    %3209 = vmatpush1.bf16.xpose.msra.mxu0 %v3197
    %3210 = vmatprep.subr.bf16.mxu0 0
    %3211 = vmatpush1.bf16.xpose.msra.mxu0 %v3200
    %3212 = vmatprep.subr.bf16.mxu0 0
    %3213 = vmatpush1.bf16.xpose.msra.mxu0 %v3203
    %3214 = vmatprep.subr.bf16.mxu0 0
    %3215 = vmatpush1.bf16.xpose.msra.mxu0 %v3206
    %3216 = vmatprep.subr.bf16.mxu0 0
    %3217 = vmatpush1.bf16.xpose.msra.mxu0 0
    %3218 = vmatprep.subr.bf16.mxu0 0
    %3219 = vmatpush1.bf16.xpose.msra.mxu0 0
    %3220 = vmatprep.subr.bf16.mxu0 0
    %3221 = vmatpush1.bf16.xpose.msra.mxu0 0
    %3222 = vmatprep.subr.bf16.mxu0 0
    %3223 = vmatpush1.bf16.xpose.msra.mxu0 0
    %3224 = vmatprep.subr.bf16.mxu0 0
    %3225 = vmatpush1.bf16.xpose.msra.mxu0 0
    %3226 = vmatprep.subr.bf16.mxu0 0
    %3227 = vmatpush1.bf16.xpose.msra.mxu0 0
    %3228 = vmatprep.subr.bf16.mxu0 0
    %3229 = vmatpush1.bf16.xpose.msra.mxu0 0
    %3230 = vmatprep.subr.bf16.mxu0 0
    %3231 = vmatpush1.bf16.xpose.msra.mxu0 0
    %3232 = vmatprep.subr.bf16.mxu0 0
    %3233 = vmatpush1.bf16.xpose.msra.mxu0 0
    %3234 = vmatprep.subr.bf16.mxu0 0
    %3235 = vmatpush1.bf16.xpose.msra.mxu0 0
    %3236 = vmatprep.subr.bf16.mxu0 0
    %3237 = vmatpush1.bf16.xpose.msra.mxu0 0
    %3238 = vmatprep.subr.bf16.mxu0 0
    %3239 = vmatpush1.bf16.xpose.msra.mxu0 0
    %3240 = vmatprep.mubr.bf16.mxu0 0
    %3241 = vmatmul.mubr.bf16.gmra.mrb[0].mxu0 %v3185
    %v3242 = vpop.f32.mrb[0].mxu0
    %v3243 = vadd.f32 0.0, %v3242
    %v3244 = vpop.f32.mrb[0].mxu0
    %v3245 = vpop.f32.mrb[0].mxu0
    %v3246 = vadd.f32 0.0, %v3245
    %v3247 = vpop.f32.mrb[0].mxu0
    %3248 = vmatprep.mubr.bf16.mxu0 0
    %3249 = vmatmul.mubr.bf16.gmra.mrb[0].mxu0 %v3188
    %v3250 = vpop.f32.mrb[0].mxu0
    %v3251 = vadd.f32 0.0, %v3250
    %v3252 = vpop.f32.mrb[0].mxu0
    %v3253 = vpop.f32.mrb[0].mxu0
    %v3254 = vadd.f32 0.0, %v3253
    %v3255 = vpop.f32.mrb[0].mxu0
    %3256 = vmatprep.mubr.bf16.mxu0 0
    %3257 = vmatmul.mubr.bf16.gmra.mrb[0].mxu0 %v3191
    %v3258 = vpop.f32.mrb[0].mxu0
    %v3259 = vadd.f32 0.0, %v3258
    %v3260 = vpop.f32.mrb[0].mxu0
    %v3261 = vpop.f32.mrb[0].mxu0
    %v3262 = vadd.f32 0.0, %v3261
    %v3263 = vpop.f32.mrb[0].mxu0
    %3264 = vmatprep.mubr.bf16.mxu0 0
    %3265 = vmatmul.mubr.bf16.gmra.mrb[0].mxu0 %v3194
    %v3266 = vpop.f32.mrb[0].mxu0
    %v3267 = vadd.f32 0.0, %v3266
    %v3268 = vpop.f32.mrb[0].mxu0
    %v3269 = vpop.f32.mrb[0].mxu0
    %v3270 = vadd.f32 0.0, %v3269
    %v3271 = vpop.f32.mrb[0].mxu0
    %3272 = vdwg.mxu0
    %v3273 = vmul.f32 %v3243, 0.35355338
    %v3274 = vmul.f32 %v3246, 0.35355338
    %v3275 = vmul.f32 %v3251, 0.35355338
    %v3276 = vmul.f32 %v3254, 0.35355338
    %v3277 = vmul.f32 %v3259, 0.35355338
    %v3278 = vmul.f32 %v3262, 0.35355338
    %v3279 = vmul.f32 %v3267, 0.35355338
    %v3280 = vmul.f32 %v3270, 0.35355338
    %v3281 = vadd.f32 %v3273, %v226
    %v3282 = vadd.f32 %v3274, %v227
    %v3283 = vadd.f32 %v3275, %v228
    %v3284 = vadd.f32 %v3276, %v229
    %v3285 = vadd.f32 %v3277, %v230
    %v3286 = vadd.f32 %v3278, %v231
    %v3287 = vadd.f32 %v3279, %v232
    %v3288 = vadd.f32 %v3280, %v233
    %v3289 = vsel %vm444, %v3281, -inf
    %3290 = vmax.xlane.f32.xlu0 %v3289
    %v3291 = vpop.xlane.xlu0 %3290
    %v3292 = vsel %vm444, %v3282, -inf
    %3293 = vmax.xlane.f32.xlu0 %v3292
    %v3294 = vpop.xlane.xlu0 %3293
    %v3295 = vsel %vm444, %v3283, -inf
    %3296 = vmax.xlane.f32.xlu0 %v3295
    %v3297 = vpop.xlane.xlu0 %3296
    %v3298 = vsel %vm444, %v3284, -inf
    %3299 = vmax.xlane.f32.xlu0 %v3298
    %v3300 = vpop.xlane.xlu0 %3299
    %v3301 = vsel %vm444, %v3285, -inf
    %3302 = vmax.xlane.f32.xlu0 %v3301
    %v3303 = vpop.xlane.xlu0 %3302
    %v3304 = vsel %vm444, %v3286, -inf
    %3305 = vmax.xlane.f32.xlu0 %v3304
    %v3306 = vpop.xlane.xlu0 %3305
    %v3307 = vsel %vm444, %v3287, -inf
    %3308 = vmax.xlane.f32.xlu0 %v3307
    %v3309 = vpop.xlane.xlu0 %3308
    %v3310 = vsel %vm444, %v3288, -inf
    %3311 = vmax.xlane.f32.xlu0 %v3310
    %v3312 = vpop.xlane.xlu0 %3311
    %v3313 = vsub.f32 %v3281, %v3291
    %v3314 = vsub.f32 %v3282, %v3294
    %v3315 = vsub.f32 %v3283, %v3297
    %v3316 = vsub.f32 %v3284, %v3300
    %v3317 = vsub.f32 %v3285, %v3303
    %v3318 = vsub.f32 %v3286, %v3306
    %v3319 = vsub.f32 %v3287, %v3309
    %v3320 = vsub.f32 %v3288, %v3312
    %v3321 = vmul.f32 %v3313, 1.442695
    %v3322 = vpow.pop %v3321
    %v3323 = vmul.f32 %v3314, 1.442695
    %v3324 = vpow.pop %v3323
    %v3325 = vmul.f32 %v3315, 1.442695
    %v3326 = vpow.pop %v3325
    %v3327 = vmul.f32 %v3316, 1.442695
    %v3328 = vpow.pop %v3327
    %v3329 = vmul.f32 %v3317, 1.442695
    %v3330 = vpow.pop %v3329
    %v3331 = vmul.f32 %v3318, 1.442695
    %v3332 = vpow.pop %v3331
    %v3333 = vmul.f32 %v3319, 1.442695
    %v3334 = vpow.pop %v3333
    %v3335 = vmul.f32 %v3320, 1.442695
    %v3336 = vpow.pop %v3335
    %v3337 = vsel %vm444, %v3322, 0.0
    %3338 = vadd.xlane.f32.xlu0 %v3337
    %v3339 = vpop.xlane.xlu0 %3338
    %v3340 = vsel %vm444, %v3324, 0.0
    %3341 = vadd.xlane.f32.xlu0 %v3340
    %v3342 = vpop.xlane.xlu0 %3341
    %v3343 = vsel %vm444, %v3326, 0.0
    %3344 = vadd.xlane.f32.xlu0 %v3343
    %v3345 = vpop.xlane.xlu0 %3344
    %v3346 = vsel %vm444, %v3328, 0.0
    %3347 = vadd.xlane.f32.xlu0 %v3346
    %v3348 = vpop.xlane.xlu0 %3347
    %v3349 = vsel %vm444, %v3330, 0.0
    %3350 = vadd.xlane.f32.xlu0 %v3349
    %v3351 = vpop.xlane.xlu0 %3350
    %v3352 = vsel %vm444, %v3332, 0.0
    %3353 = vadd.xlane.f32.xlu0 %v3352
    %v3354 = vpop.xlane.xlu0 %3353
    %v3355 = vsel %vm444, %v3334, 0.0
    %3356 = vadd.xlane.f32.xlu0 %v3355
    %v3357 = vpop.xlane.xlu0 %3356
    %v3358 = vsel %vm444, %v3336, 0.0
    %3359 = vadd.xlane.f32.xlu0 %v3358
    %v3360 = vpop.xlane.xlu0 %3359
    %v3361 = vrcp.pop %v3339
    %v3362 = vrcp.pop %v3342
    %v3363 = vrcp.pop %v3345
    %v3364 = vrcp.pop %v3348
    %v3365 = vrcp.pop %v3351
    %v3366 = vrcp.pop %v3354
    %v3367 = vrcp.pop %v3357
    %v3368 = vrcp.pop %v3360
    %v3369 = vmul.f32 %v3322, %v3361
    %v3370 = vmul.f32 %v3324, %v3362
    %v3371 = vmul.f32 %v3326, %v3363
    %v3372 = vmul.f32 %v3328, %v3364
    %v3373 = vmul.f32 %v3330, %v3365
    %v3374 = vmul.f32 %v3332, %v3366
    %v3375 = vmul.f32 %v3334, %v3367
    %v3376 = vmul.f32 %v3336, %v3368
    %v3377 = vpack.c.bf16 %v3370, %v3369
    %v3378 = vpack.c.bf16 %v3372, %v3371
    %v3379 = vpack.c.bf16 %v3374, %v3373
    %v3380 = vpack.c.bf16 %v3376, %v3375
    %3385 = vrot.lane.b32.xlu0 %v3168, 96
    %v3386 = vpop.permute.xlu0 %3385
    %3387 = vrot.lane.b32.xlu0 %v3169, 96
    %v3388 = vpop.permute.xlu0 %3387
    %3389 = vrot.lane.b32.xlu0 %v3170, 96
    %v3390 = vpop.permute.xlu0 %3389
    %3391 = vrot.lane.b32.xlu0 %v3171, 96
    %v3392 = vpop.permute.xlu0 %3391
    %v3398 = vsel %vm444, %v3377, 0
    %v3401 = vsel %vm444, %v3378, 0
    %v3404 = vsel %vm444, %v3379, 0
    %v3407 = vsel %vm444, %v3380, 0
    %3409 = vmatprep.subr.bf16.mxu0 0
    %3410 = vmatpush1.bf16.msra.mxu0 %v3386
    %3411 = vmatprep.subr.bf16.mxu0 0
    %3412 = vmatpush1.bf16.msra.mxu0 %v3388
    %3413 = vmatprep.subr.bf16.mxu0 0
    %3414 = vmatpush1.bf16.msra.mxu0 %v3390
    %3415 = vmatprep.subr.bf16.mxu0 0
    %3416 = vmatpush1.bf16.msra.mxu0 %v3392
    %3417 = vmatprep.subr.bf16.mxu0 0
    %3418 = vmatpush1.bf16.msra.mxu0 0
    %3419 = vmatprep.subr.bf16.mxu0 0
    %3420 = vmatpush1.bf16.msra.mxu0 0
    %3421 = vmatprep.subr.bf16.mxu0 0
    %3422 = vmatpush1.bf16.msra.mxu0 0
    %3423 = vmatprep.subr.bf16.mxu0 0
    %3424 = vmatpush1.bf16.msra.mxu0 0
    %3425 = vmatprep.subr.bf16.mxu0 0
    %3426 = vmatpush1.bf16.msra.mxu0 0
    %3427 = vmatprep.subr.bf16.mxu0 0
    %3428 = vmatpush1.bf16.msra.mxu0 0
    %3429 = vmatprep.subr.bf16.mxu0 0
    %3430 = vmatpush1.bf16.msra.mxu0 0
    %3431 = vmatprep.subr.bf16.mxu0 0
    %3432 = vmatpush1.bf16.msra.mxu0 0
    %3433 = vmatprep.subr.bf16.mxu0 0
    %3434 = vmatpush1.bf16.msra.mxu0 0
    %3435 = vmatprep.subr.bf16.mxu0 0
    %3436 = vmatpush1.bf16.msra.mxu0 0
    %3437 = vmatprep.subr.bf16.mxu0 0
    %3438 = vmatpush1.bf16.msra.mxu0 0
    %3439 = vmatprep.subr.bf16.mxu0 0
    %3440 = vmatpush1.bf16.msra.mxu0 0
    %3441 = vmatprep.mubr.bf16.mxu0 0
    %3442 = vmatmul.mubr.bf16.gmra.mrb[0].mxu0 %v3398
    %v3443 = vpop.f32.mrb[0].mxu0
    %v3444 = vadd.f32 0.0, %v3443
    %v3445 = vpop.f32.mrb[0].mxu0
    %v3446 = vpop.f32.mrb[0].mxu0
    %v3447 = vadd.f32 0.0, %v3446
    %v3448 = vpop.f32.mrb[0].mxu0
    %3449 = vmatprep.mubr.bf16.mxu0 0
    %3450 = vmatmul.mubr.bf16.gmra.mrb[0].mxu0 %v3401
    %v3451 = vpop.f32.mrb[0].mxu0
    %v3452 = vadd.f32 0.0, %v3451
    %v3453 = vpop.f32.mrb[0].mxu0
    %v3454 = vpop.f32.mrb[0].mxu0
    %v3455 = vadd.f32 0.0, %v3454
    %v3456 = vpop.f32.mrb[0].mxu0
    %3457 = vmatprep.mubr.bf16.mxu0 0
    %3458 = vmatmul.mubr.bf16.gmra.mrb[0].mxu0 %v3404
    %v3459 = vpop.f32.mrb[0].mxu0
    %v3460 = vadd.f32 0.0, %v3459
    %v3461 = vpop.f32.mrb[0].mxu0
    %v3462 = vpop.f32.mrb[0].mxu0
    %v3463 = vadd.f32 0.0, %v3462
    %v3464 = vpop.f32.mrb[0].mxu0
    %3465 = vmatprep.mubr.bf16.mxu0 0
    %3466 = vmatmul.mubr.bf16.gmra.mrb[0].mxu0 %v3407
    %v3467 = vpop.f32.mrb[0].mxu0
    %v3468 = vadd.f32 0.0, %v3467
    %v3469 = vpop.f32.mrb[0].mxu0
    %v3470 = vpop.f32.mrb[0].mxu0
    %v3471 = vadd.f32 0.0, %v3470
    %v3472 = vpop.f32.mrb[0].mxu0
    %3473 = vdwg.mxu0
    %3475 = vrot.lane.b32.xlu0 %v3447, 8
    %v3476 = vpop.permute.xlu0 %3475
    %3479 = vrot.lane.b32.xlu0 %v3452, 16
    %v3480 = vpop.permute.xlu0 %3479
    %3483 = vrot.lane.b32.xlu0 %v3455, 24
    %v3484 = vpop.permute.xlu0 %3483
    %v3486 = vsel %vm338, %v3444, %v3476
    %v3487 = vsel %vm639, %v3486, %v3480
    %v3488 = vsel %vm641, %v3487, %v3484
    %3490 = vrot.lane.b32.xlu0 %v3463, 8
    %v3491 = vpop.permute.xlu0 %3490
    %3494 = vrot.lane.b32.xlu0 %v3468, 16
    %v3495 = vpop.permute.xlu0 %3494
    %3498 = vrot.lane.b32.xlu0 %v3471, 24
    %v3499 = vpop.permute.xlu0 %3498
    %v3501 = vsel %vm338, %v3460, %v3491
    %v3502 = vsel %vm639, %v3501, %v3495
    %v3503 = vsel %vm641, %v3502, %v3499
    %v3504 = vpack.c.bf16 %v3147, %v3132
    %s3505 = scalar_lea.vmem [#allocation16], 16
    %v3506 = vld [vmem:[%s3505] sm:$0xf]
    %v3507 = vld [vmem:[%s3505 + $0x4] sm:$0xf]
    %v3508 = vld [vmem:[%s3505 + $0x8] sm:$0xf]
    %v3509 = vld [vmem:[%s3505 + $0xc] sm:$0xf]
    %v3510 = vpack.c.bf16 %v3503, %v3488
    %s3511 = scalar_lea.vmem [#allocation17], 16
    %v3512 = vld [vmem:[%s3511] sm:$0xf]
    %v3513 = vld [vmem:[%s3511 + $0x4] sm:$0xf]
    %v3514 = vld [vmem:[%s3511 + $0x8] sm:$0xf]
    %v3515 = vld [vmem:[%s3511 + $0xc] sm:$0xf]
    %v3520 = vunpack.c.l.b16 %v3512
    %v3521 = vunpack.c.l.b16 %v3513
    %v3522 = vunpack.c.l.b16 %v3514
    %v3523 = vunpack.c.l.b16 %v3515
    %v3524 = vpack.c.b16 %v3521, %v3520
    %v3525 = vpack.c.b16 %v3523, %v3522
    %v3529 = vsel %vm257, %v3510, 0
    %3531 = vmatprep.subr.bf16.mxu0 0
    %3532 = vmatpush1.bf16.msra.mxu0 %v3524
    %3533 = vmatprep.subr.bf16.mxu0 0
    %3534 = vmatpush1.bf16.msra.mxu0 %v3525
    %3535 = vmatprep.subr.bf16.mxu0 0
    %3536 = vmatpush1.bf16.msra.mxu0 0
    %3537 = vmatprep.subr.bf16.mxu0 0
    %3538 = vmatpush1.bf16.msra.mxu0 0
    %3539 = vmatprep.subr.bf16.mxu0 0
    %3540 = vmatpush1.bf16.msra.mxu0 0
    %3541 = vmatprep.subr.bf16.mxu0 0
    %3542 = vmatpush1.bf16.msra.mxu0 0
    %3543 = vmatprep.subr.bf16.mxu0 0
    %3544 = vmatpush1.bf16.msra.mxu0 0
    %3545 = vmatprep.subr.bf16.mxu0 0
    %3546 = vmatpush1.bf16.msra.mxu0 0
    %3547 = vmatprep.subr.bf16.mxu0 0
    %3548 = vmatpush1.bf16.msra.mxu0 0
    %3549 = vmatprep.subr.bf16.mxu0 0
    %3550 = vmatpush1.bf16.msra.mxu0 0
    %3551 = vmatprep.subr.bf16.mxu0 0
    %3552 = vmatpush1.bf16.msra.mxu0 0
    %3553 = vmatprep.subr.bf16.mxu0 0
    %3554 = vmatpush1.bf16.msra.mxu0 0
    %3555 = vmatprep.subr.bf16.mxu0 0
    %3556 = vmatpush1.bf16.msra.mxu0 0
    %3557 = vmatprep.subr.bf16.mxu0 0
    %3558 = vmatpush1.bf16.msra.mxu0 0
    %3559 = vmatprep.subr.bf16.mxu0 0
    %3560 = vmatpush1.bf16.msra.mxu0 0
    %3561 = vmatprep.subr.bf16.mxu0 0
    %3562 = vmatpush1.bf16.msra.mxu0 0
    %3563 = vmatprep.mubr.bf16.mxu0 0
    %3564 = vmatmul.mubr.bf16.gmra.mrb[0].mxu0 %v3529
    %v3565 = vpop.f32.mrb[0].mxu0
    %v3566 = vadd.f32 0.0, %v3565
    %v3567 = vpop.f32.mrb[0].mxu0
    %v3568 = vpop.f32.mrb[0].mxu0
    %v3569 = vadd.f32 0.0, %v3568
    %v3570 = vpop.f32.mrb[0].mxu0
    %3571 = vdwg.mxu0
    %v3576 = vunpack.c.l.b16 %v3506
    %v3577 = vunpack.c.l.b16 %v3507
    %v3578 = vunpack.c.l.b16 %v3508
    %v3579 = vunpack.c.l.b16 %v3509
    %v3580 = vpack.c.b16 %v3577, %v3576
    %v3581 = vpack.c.b16 %v3579, %v3578
    %v3585 = vsel %vm257, %v3504, 0
    %3587 = vmatprep.subr.bf16.mxu0 0
    %3588 = vmatpush1.bf16.msra.mxu0 %v3580
    %3589 = vmatprep.subr.bf16.mxu0 0
    %3590 = vmatpush1.bf16.msra.mxu0 %v3581
    %3591 = vmatprep.subr.bf16.mxu0 0
    %3592 = vmatpush1.bf16.msra.mxu0 0
    %3593 = vmatprep.subr.bf16.mxu0 0
    %3594 = vmatpush1.bf16.msra.mxu0 0
    %3595 = vmatprep.subr.bf16.mxu0 0
    %3596 = vmatpush1.bf16.msra.mxu0 0
    %3597 = vmatprep.subr.bf16.mxu0 0
    %3598 = vmatpush1.bf16.msra.mxu0 0
    %3599 = vmatprep.subr.bf16.mxu0 0
    %3600 = vmatpush1.bf16.msra.mxu0 0
    %3601 = vmatprep.subr.bf16.mxu0 0
    %3602 = vmatpush1.bf16.msra.mxu0 0
    %3603 = vmatprep.subr.bf16.mxu0 0
    %3604 = vmatpush1.bf16.msra.mxu0 0
    %3605 = vmatprep.subr.bf16.mxu0 0
    %3606 = vmatpush1.bf16.msra.mxu0 0
    %3607 = vmatprep.subr.bf16.mxu0 0
    %3608 = vmatpush1.bf16.msra.mxu0 0
    %3609 = vmatprep.subr.bf16.mxu0 0
    %3610 = vmatpush1.bf16.msra.mxu0 0
    %3611 = vmatprep.subr.bf16.mxu0 0
    %3612 = vmatpush1.bf16.msra.mxu0 0
    %3613 = vmatprep.subr.bf16.mxu0 0
    %3614 = vmatpush1.bf16.msra.mxu0 0
    %3615 = vmatprep.subr.bf16.mxu0 0
    %3616 = vmatpush1.bf16.msra.mxu0 0
    %3617 = vmatprep.subr.bf16.mxu0 0
    %3618 = vmatpush1.bf16.msra.mxu0 0
    %3619 = vmatprep.mubr.bf16.mxu0 0
    %3620 = vmatmul.mubr.bf16.gmra.mrb[0].mxu0 %v3585
    %v3621 = vpop.f32.mrb[0].mxu0
    %v3622 = vadd.f32 %v3566, %v3621
    %v3623 = vpop.f32.mrb[0].mxu0
    %v3624 = vpop.f32.mrb[0].mxu0
    %v3625 = vadd.f32 %v3569, %v3624
    %v3626 = vpop.f32.mrb[0].mxu0
    %3627 = vdwg.mxu0
    %v3628 = vlaneseq
    %v3629 = vshrl.u32 %v3628, 7
    %v3630 = vsub.s32 5, %v3629
    %v3631 = vrot.slane %v2060, %v3630
    %v3632 = vadd.f32 %v3622, %v3631
    %v3633 = vadd.f32 %v3625, %v3631
    %v3634 = vadd.f32 %v2588, %v3632
    %v3635 = vadd.f32 %v2589, %v3633
    %v3636 = vsel %vm257, %v3634, 0.0
    %3637 = vadd.xlane.f32.xlu0 %v3636
    %v3638 = vpop.xlane.xlu0 %3637
    %v3639 = vsel %vm257, %v3635, 0.0
    %3640 = vadd.xlane.f32.xlu0 %v3639
    %v3641 = vpop.xlane.xlu0 %3640
    %v3642 = vmul.f32 %v3638, %v731
    %v3643 = vmul.f32 %v3641, %v731
    %v3644 = vmul.f32 %v3634, %v3634
    %v3645 = vmul.f32 %v3635, %v3635
    %v3646 = vsel %vm257, %v3644, 0.0
    %3647 = vadd.xlane.f32.xlu0 %v3646
    %v3648 = vpop.xlane.xlu0 %3647
    %v3649 = vsel %vm257, %v3645, 0.0
    %3650 = vadd.xlane.f32.xlu0 %v3649
    %v3651 = vpop.xlane.xlu0 %3650
    %v3652 = vmul.f32 %v3648, %v731
    %v3653 = vmul.f32 %v3651, %v731
    %v3654 = vmul.f32 %v3642, %v3642
    %v3655 = vmul.f32 %v3643, %v3643
    %v3656 = vsub.f32 %v3652, %v3654
    %v3657 = vsub.f32 %v3653, %v3655
    %v3658 = vsub.f32 %v3634, %v3642
    %v3659 = vsub.f32 %v3635, %v3643
    %v3660 = vadd.f32 %v3656, 1e-05
    %v3661 = vadd.f32 %v3657, 1e-05
    %v3662 = vrsqrt.pop %v3660
    %v3663 = vrsqrt.pop %v3661
    %v3664 = vmul.f32 %v3658, %v3662
    %v3665 = vmul.f32 %v3659, %v3663
    %v3666 = vlaneseq
    %v3667 = vshrl.u32 %v3666, 7
    %v3668 = vsub.s32 2, %v3667
    %v3669 = vrot.slane %v2061, %v3668
    %v3670 = vmul.f32 %v3664, %v3669
    %v3671 = vmul.f32 %v3665, %v3669
    %v3672 = vlaneseq
    %v3673 = vshrl.u32 %v3672, 7
    %v3674 = vsub.s32 3, %v3673
    %v3675 = vrot.slane %v2061, %v3674
    %v3676 = vadd.f32 %v3670, %v3675
    %v3677 = vadd.f32 %v3671, %v3675
    %v3678 = vpack.c.bf16 %v3677, %v3676
    %s3679 = scalar_lea.vmem [#allocation19], 16
    %v3680 = vld [vmem:[%s3679] sm:$0xf]
    %v3681 = vld [vmem:[%s3679 + $0x4] sm:$0xf]
    %v3682 = vld [vmem:[%s3679 + $0x8] sm:$0xf]
    %v3683 = vld [vmem:[%s3679 + $0xc] sm:$0xf]
    %v3684 = vlaneseq
    %v3685 = vshrl.u32 %v3684, 7
    %v3686 = vsub.s32 6, %v3685
    %v3687 = vrot.slane %v2060, %v3686
    %v3692 = vunpack.c.l.b16 %v3680
    %v3693 = vunpack.c.l.b16 %v3681
    %v3694 = vunpack.c.l.b16 %v3682
    %v3695 = vunpack.c.l.b16 %v3683
    %v3696 = vpack.c.b16 %v3693, %v3692
    %v3697 = vpack.c.b16 %v3695, %v3694
    %v3701 = vsel %vm257, %v3678, 0
    %3703 = vmatprep.subr.bf16.mxu0 0
    %3704 = vmatpush1.bf16.msra.mxu0 %v3696
    %3705 = vmatprep.subr.bf16.mxu0 0
    %3706 = vmatpush1.bf16.msra.mxu0 %v3697
    %3707 = vmatprep.subr.bf16.mxu0 0
    %3708 = vmatpush1.bf16.msra.mxu0 0
    %3709 = vmatprep.subr.bf16.mxu0 0
    %3710 = vmatpush1.bf16.msra.mxu0 0
    %3711 = vmatprep.subr.bf16.mxu0 0
    %3712 = vmatpush1.bf16.msra.mxu0 0
    %3713 = vmatprep.subr.bf16.mxu0 0
    %3714 = vmatpush1.bf16.msra.mxu0 0
    %3715 = vmatprep.subr.bf16.mxu0 0
    %3716 = vmatpush1.bf16.msra.mxu0 0
    %3717 = vmatprep.subr.bf16.mxu0 0
    %3718 = vmatpush1.bf16.msra.mxu0 0
    %3719 = vmatprep.subr.bf16.mxu0 0
    %3720 = vmatpush1.bf16.msra.mxu0 0
    %3721 = vmatprep.subr.bf16.mxu0 0
    %3722 = vmatpush1.bf16.msra.mxu0 0
    %3723 = vmatprep.subr.bf16.mxu0 0
    %3724 = vmatpush1.bf16.msra.mxu0 0
    %3725 = vmatprep.subr.bf16.mxu0 0
    %3726 = vmatpush1.bf16.msra.mxu0 0
    %3727 = vmatprep.subr.bf16.mxu0 0
    %3728 = vmatpush1.bf16.msra.mxu0 0
    %3729 = vmatprep.subr.bf16.mxu0 0
    %3730 = vmatpush1.bf16.msra.mxu0 0
    %3731 = vmatprep.subr.bf16.mxu0 0
    %3732 = vmatpush1.bf16.msra.mxu0 0
    %3733 = vmatprep.subr.bf16.mxu0 0
    %3734 = vmatpush1.bf16.msra.mxu0 0
    %3735 = vmatprep.mubr.bf16.mxu0 0
    %3736 = vmatmul.mubr.bf16.gmra.mrb[0].mxu0 %v3701
    %v3737 = vpop.f32.mrb[0].mxu0
    %v3738 = vadd.f32 %v3687, %v3737
    %v3739 = vpop.f32.mrb[0].mxu0
    %v3740 = vpop.f32.mrb[0].mxu0
    %v3741 = vadd.f32 %v3687, %v3740
    %v3742 = vpop.f32.mrb[0].mxu0
    %3743 = vdwg.mxu0
    %v3744 = vmax.f32 %v3738, 0.0
    %v3745 = vmax.f32 %v3741, 0.0
    %v3746 = vpack.c.bf16 %v3745, %v3744
    %s3747 = scalar_lea.vmem %s14, 32
    %v3748 = vld [vmem:[%s3747] sm:$0xf]
    %v3749 = vld [vmem:[%s3747 + $0x4] sm:$0xf]
    %v3750 = vld [vmem:[%s3747 + $0x8] sm:$0xf]
    %v3751 = vld [vmem:[%s3747 + $0xc] sm:$0xf]
    %v3752 = vld [vmem:[%s3747 + $0x10] sm:$0xf]
    %v3753 = vld [vmem:[%s3747 + $0x14] sm:$0xf]
    %v3754 = vld [vmem:[%s3747 + $0x18] sm:$0xf]
    %v3755 = vld [vmem:[%s3747 + $0x1c] sm:$0xf]
    %v3756 = vlaneseq
    %v3757 = vshrl.u32 %v3756, 7
    %v3758 = vsub.s32 7, %v3757
    %v3759 = vrot.slane %v2060, %v3758
    %v3768 = vunpack.c.l.b16 %v3748
    %v3769 = vunpack.c.l.b16 %v3749
    %v3770 = vunpack.c.l.b16 %v3750
    %v3771 = vunpack.c.l.b16 %v3751
    %v3772 = vunpack.c.l.b16 %v3752
    %v3773 = vunpack.c.l.b16 %v3753
    %v3774 = vunpack.c.l.b16 %v3754
    %v3775 = vunpack.c.l.b16 %v3755
    %v3776 = vpack.c.b16 %v3769, %v3768
    %v3777 = vpack.c.b16 %v3771, %v3770
    %v3778 = vpack.c.b16 %v3773, %v3772
    %v3779 = vpack.c.b16 %v3775, %v3774
    %v3785 = vsel %vm444, %v3746, 0
    %3787 = vmatprep.subr.bf16.mxu0 0
    %3788 = vmatpush1.bf16.msra.mxu0 %v3776
    %3789 = vmatprep.subr.bf16.mxu0 0
    %3790 = vmatpush1.bf16.msra.mxu0 %v3777
    %3791 = vmatprep.subr.bf16.mxu0 0
    %3792 = vmatpush1.bf16.msra.mxu0 %v3778
    %3793 = vmatprep.subr.bf16.mxu0 0
    %3794 = vmatpush1.bf16.msra.mxu0 %v3779
    %3795 = vmatprep.subr.bf16.mxu0 0
    %3796 = vmatpush1.bf16.msra.mxu0 0
    %3797 = vmatprep.subr.bf16.mxu0 0
    %3798 = vmatpush1.bf16.msra.mxu0 0
    %3799 = vmatprep.subr.bf16.mxu0 0
    %3800 = vmatpush1.bf16.msra.mxu0 0
    %3801 = vmatprep.subr.bf16.mxu0 0
    %3802 = vmatpush1.bf16.msra.mxu0 0
    %3803 = vmatprep.subr.bf16.mxu0 0
    %3804 = vmatpush1.bf16.msra.mxu0 0
    %3805 = vmatprep.subr.bf16.mxu0 0
    %3806 = vmatpush1.bf16.msra.mxu0 0
    %3807 = vmatprep.subr.bf16.mxu0 0
    %3808 = vmatpush1.bf16.msra.mxu0 0
    %3809 = vmatprep.subr.bf16.mxu0 0
    %3810 = vmatpush1.bf16.msra.mxu0 0
    %3811 = vmatprep.subr.bf16.mxu0 0
    %3812 = vmatpush1.bf16.msra.mxu0 0
    %3813 = vmatprep.subr.bf16.mxu0 0
    %3814 = vmatpush1.bf16.msra.mxu0 0
    %3815 = vmatprep.subr.bf16.mxu0 0
    %3816 = vmatpush1.bf16.msra.mxu0 0
    %3817 = vmatprep.subr.bf16.mxu0 0
    %3818 = vmatpush1.bf16.msra.mxu0 0
    %3819 = vmatprep.mubr.bf16.mxu0 0
    %3820 = vmatmul.mubr.bf16.gmra.mrb[0].mxu0 %v3785
    %v3821 = vpop.f32.mrb[0].mxu0
    %v3822 = vadd.f32 %v3759, %v3821
    %v3823 = vpop.f32.mrb[0].mxu0
    %v3824 = vpop.f32.mrb[0].mxu0
    %v3825 = vadd.f32 %v3759, %v3824
    %v3826 = vpop.f32.mrb[0].mxu0
    %3827 = vdwg.mxu0
    %v3828 = vadd.f32 %v3676, %v3822
    %v3829 = vadd.f32 %v3677, %v3825
    %v3830 = vsel %vm257, %v3828, 0.0
    %3831 = vadd.xlane.f32.xlu0 %v3830
    %v3832 = vpop.xlane.xlu0 %3831
    %v3833 = vsel %vm257, %v3829, 0.0
    %3834 = vadd.xlane.f32.xlu0 %v3833
    %v3835 = vpop.xlane.xlu0 %3834
    %v3836 = vmul.f32 %v3832, %v731
    %v3837 = vmul.f32 %v3835, %v731
    %v3838 = vmul.f32 %v3828, %v3828
    %v3839 = vmul.f32 %v3829, %v3829
    %v3840 = vsel %vm257, %v3838, 0.0
    %3841 = vadd.xlane.f32.xlu0 %v3840
    %v3842 = vpop.xlane.xlu0 %3841
    %v3843 = vsel %vm257, %v3839, 0.0
    %3844 = vadd.xlane.f32.xlu0 %v3843
    %v3845 = vpop.xlane.xlu0 %3844
    %v3846 = vmul.f32 %v3842, %v731
    %v3847 = vmul.f32 %v3845, %v731
    %v3848 = vmul.f32 %v3836, %v3836
    %v3849 = vmul.f32 %v3837, %v3837
    %v3850 = vsub.f32 %v3846, %v3848
    %v3851 = vsub.f32 %v3847, %v3849
    %v3852 = vsub.f32 %v3828, %v3836
    %v3853 = vsub.f32 %v3829, %v3837
    %v3854 = vadd.f32 %v3850, 1e-05
    %v3855 = vadd.f32 %v3851, 1e-05
    %v3856 = vrsqrt.pop %v3854
    %v3857 = vrsqrt.pop %v3855
    %v3858 = vmul.f32 %v3852, %v3856
    %v3859 = vmul.f32 %v3853, %v3857
    %v3860 = vlaneseq
    %v3861 = vshrl.u32 %v3860, 7
    %v3862 = vsub.s32 4, %v3861
    %v3863 = vrot.slane %v2061, %v3862
    %v3864 = vmul.f32 %v3858, %v3863
    %v3865 = vmul.f32 %v3859, %v3863
    %v3866 = vlaneseq
    %v3867 = vshrl.u32 %v3866, 7
    %v3868 = vsub.s32 5, %v3867
    %v3869 = vrot.slane %v2061, %v3868
    %v3870 = vadd.f32 %v3864, %v3869
    %v3871 = vadd.f32 %v3865, %v3869
    %3872 = vst.msk [vmem:[#allocation20] sm:$0xff] %vm257, %v3870
    %3873 = vst.msk [vmem:[#allocation20 + $0x8] sm:$0xff] %vm257, %v3871
    // Predicated region
    $region110: #{tpu_custom_call.1} parent=1 // pred_check
      _
    $region111: #{tpu_custom_call.1} parent=1 // pred_check_branch
      %3875 = sbr.rel (0) target = $region113
    $region112: #{tpu_custom_call.1} parent=1 // pred_region
      %s3877 = ssub.s32 256, 256
      %3878 = vsyncadd [#allocation4], %s3877
      %s3879 = sshll.u32 [#allocation20], 4
      %s3880 = int_to_ptr.vmem [resolvable:$true] %s3879
      %3885 = dma.vmem_to_hbm [thread:$0]  %s3880, 256, %s16, [#allocation4], 128, 128, 8
    $region113: #{tpu_custom_call.1} parent=1 // pred_fallthru
      _
    // Predicated region
    $region114: #{tpu_custom_call.1} parent=1 // pred_check
      _
    $region115: #{tpu_custom_call.1} parent=1 // pred_check_branch
      %3887 = sbr.rel (0) target = $region117
    $region116: #{tpu_custom_call.1} parent=1 // pred_region
      %3888 = dma.done [#allocation4], 256
    $region117: #{tpu_custom_call.1} parent=1 // pred_fallthru
      _
    %3889 = vsyncpa [#allocation3], 1
    %3890 = vsyncpa [#allocation6], 1
    %3891 = vsyncpa [#allocation9], 1
    %3892 = vsyncpa [#allocation12], 1
    %3893 = vsyncpa [#allocation15], 1
    %3894 = vsyncpa [#allocation18], 1
    %3895 = vsyncpa [#allocation4], 1

</llo_original>
